<compile_context>
chip_gen: v7x
topology: tpu7x:2x2x1
jax: 0.10.0
libtpu: 0.0.40
codegen_flags: <defaults>
</compile_context>

<pallas_src>
import functools
import math

import jax
import jax.numpy as jnp
from jax import lax
from jax.experimental import pallas as pl
from jax.experimental.pallas import tpu as pltpu

_LN_EPS = 1e-5  # nn.LayerNorm default


def _round_up(n, m):
    return ((n + m - 1) // m) * m


def _layernorm(v, g, b, d_real):
    """LayerNorm over the last axis where only the first d_real lanes are real.

    Padded lanes of v are zero and padded lanes of g/b are zero, so real lanes get
    the exact (unpadded) LayerNorm and padded output lanes come out exactly zero.
    """
    lane = lax.broadcasted_iota(jnp.int32, v.shape, v.ndim - 1)
    mask = (lane < d_real).astype(v.dtype)
    inv_d = 1.0 / float(d_real)
    mu = jnp.sum(v, axis=-1, keepdims=True) * inv_d          # padded lanes are zero
    c = (v - mu) * mask
    var = jnp.sum(c * c, axis=-1, keepdims=True) * inv_d
    return c * lax.rsqrt(var + _LN_EPS) * g + b


def _gelu_exact(v):
    # nn.GELU() default (approximate='none').
    # TODO(synk): switch to the tanh approximation (EUP) only if VALU becomes the
    # binding slot and tolerance allows.
    return 0.5 * v * (1.0 + lax.erf(v * (1.0 / math.sqrt(2.0))))


def _const_spec(shape):
    # Grid-invariant block: constant index_map, single-buffered.
    return pl.BlockSpec(shape, lambda *_: (0,) * len(shape),
                        pipeline_mode=pl.Buffered(1))


def _vmem_limit_bytes():
    # Generation-aware VMEM cap: ~75% of physical (v5e/v6e 128 MiB -> 96 MiB,
    # v7x 64 MiB -> 48 MiB), capped at 100 MiB; conservative fallback 48 MiB.
    try:
        cap = int(pltpu.get_tpu_info().vmem_capacity_bytes)
    except Exception:
        cap = 64 * 1024 * 1024
    return max(32 * 1024 * 1024, min(cap * 3 // 4, 100 * 1024 * 1024))


def _compiler_params(dim_sem):
    return pltpu.CompilerParams(dimension_semantics=dim_sem,
                                vmem_limit_bytes=_vmem_limit_bytes())


# --------------------------------------------------------------------------- #
# Attention sub-layer:  out = x + Wo( SDPA( LN(x) Wq, LN(x) Wk, LN(x) Wv ) )
# --------------------------------------------------------------------------- #
def _attn_block_kernel(xq_ref, xkv_ref, ln_g_ref, ln_b_ref,
                       wq_ref, wk_ref, wv_ref, wo_ref, o_ref, *,
                       n_heads, head_dim_p, d_real, s_real, scale,
                       compute_dtype, approx_recip):
    xq = xq_ref[0]                     # (tq,  D_p) f32: query rows of this tile
    xkv = xkv_ref[0]                   # (S_p, D_p) f32: full sequence for K/V
    g, b = ln_g_ref[...], ln_b_ref[...]

    xnq = _layernorm(xq, g, b, d_real).astype(compute_dtype)
    xnk = _layernorm(xkv, g, b, d_real).astype(compute_dtype)

    # QKV projections: one big lane-dense matmul each, f32 accumulation on the MXU.
    q = jnp.dot(xnq, wq_ref[...], preferred_element_type=jnp.float32)   # (tq,  NH*hd_p)
    k = jnp.dot(xnk, wk_ref[...], preferred_element_type=jnp.float32)   # (S_p, NH*hd_p)
    v = jnp.dot(xnk, wv_ref[...], preferred_element_type=jnp.float32)

    tq, skv = xq.shape[0], xkv.shape[0]
    # Head-leading layout for one batched contraction (no per-head loop/concat).
    q = jnp.transpose(q.reshape(tq, n_heads, head_dim_p), (1, 0, 2))    # (NH, tq,  hd_p)
    k = jnp.transpose(k.reshape(skv, n_heads, head_dim_p), (1, 0, 2))   # (NH, S_p, hd_p)
    v = jnp.transpose(v.reshape(skv, n_heads, head_dim_p), (1, 0, 2))

    s = jnp.einsum("hqd,hkd->hqk", q.astype(compute_dtype), k.astype(compute_dtype),
                   preferred_element_type=jnp.float32) * scale          # (NH, tq, S_p)
    if skv != s_real:                   # static branch: mask zero-padded key rows
        kidx = lax.broadcasted_iota(jnp.int32, s.shape, 2)
        s = jnp.where(kidx < s_real, s, -1e30)

    s = s - jnp.max(s, axis=-1, keepdims=True)
    p = jnp.exp(s)
    denom = jnp.sum(p, axis=-1, keepdims=True)
    if approx_recip:
        p = p * pl.reciprocal(denom, approx=True)     # EUP slot, free vs VALU divide
    else:
        p = p / denom                                  # exact (f32 parity mode)

    o = jnp.einsum("hqk,hkd->hqd", p.astype(compute_dtype), v.astype(compute_dtype),
                   preferred_element_type=jnp.float32)                  # (NH, tq, hd_p)
    attn = jnp.transpose(o, (1, 0, 2)).reshape(tq, n_heads * head_dim_p)
    proj = jnp.dot(attn.astype(compute_dtype), wo_ref[...],
                   preferred_element_type=jnp.float32)                  # (tq, D_p)
    # TODO(synk): training-mode attention/resid dropout not applied (eval-mode identity).
    o_ref[0] = (xq + proj).astype(o_ref.dtype)


def _attention_sublayer(x_p, ln_g, ln_b, wq_p, wk_p, wv_p, wo_p, *,
                        n_heads, head_dim_p, d_real, s_real, scale,
                        compute_dtype, q_tile):
    B, S_p, D_p = x_p.shape
    W = n_heads * head_dim_p
    tq = min(q_tile, S_p)
    approx = jnp.dtype(compute_dtype) != jnp.dtype(jnp.float32)

    kernel = functools.partial(
        _attn_block_kernel, n_heads=n_heads, head_dim_p=head_dim_p,
        d_real=d_real, s_real=s_real, scale=scale,
        compute_dtype=compute_dtype, approx_recip=approx)

    wbytes = 4 * D_p * W * jnp.dtype(compute_dtype).itemsize
    cost = pl.CostEstimate(
        flops=int(B * (3 * 2 * S_p * D_p * W                       # qkv projections
                       + 2 * 2 * n_heads * S_p * S_p * head_dim_p  # scores + p@v
                       + 2 * S_p * W * D_p)),                      # output projection
        transcendentals=int(B * n_heads * S_p * S_p),               # exp
        bytes_accessed=int(2 * 4 * B * S_p * D_p + wbytes + 2 * 4 * D_p),
    )

    # TODO(synk): at real sequence lengths, add a kv ("arbitrary") grid axis with
    # online-softmax m/l/acc scratch (flash-style) instead of materializing the
    # full (tq, S) scores and keeping full K/V resident.
    return pl.pallas_call(
        kernel,
        out_shape=jax.ShapeDtypeStruct((B, S_p, D_p), x_p.dtype),
        grid_spec=pltpu.PrefetchScalarGridSpec(
            num_scalar_prefetch=0,
            grid=(B, S_p // tq),
            in_specs=[
                pl.BlockSpec((1, tq, D_p), lambda b, qi: (b, qi, 0)),   # query rows
                pl.BlockSpec((1, S_p, D_p), lambda b, qi: (b, 0, 0)),   # full seq (K/V)
                _const_spec((1, D_p)), _const_spec((1, D_p)),
                _const_spec((D_p, W)), _const_spec((D_p, W)),
                _const_spec((D_p, W)), _const_spec((W, D_p)),
            ],
            out_specs=pl.BlockSpec((1, tq, D_p), lambda b, qi: (b, qi, 0)),
        ),
        compiler_params=_compiler_params(("parallel", "parallel")),
        cost_estimate=cost,
    )(x_p, x_p, ln_g, ln_b, wq_p, wk_p, wv_p, wo_p)


# --------------------------------------------------------------------------- #
# FFN sub-layer:  out = h + W2( GELU( W1 LN(h) + b1 ) ) + b2
#   grid = (row tiles ["parallel"], hidden tiles ["arbitrary", last])
# --------------------------------------------------------------------------- #
def _ffn_block_kernel(h_ref, ln_g_ref, ln_b_ref, w1t_ref, b1_ref, w2t_ref, b2_ref,
                      o_ref, hn_ref, acc_ref, *, d_real, compute_dtype):
    j = pl.program_id(1)

    @pl.when(j == 0)
    def _():
        hn = _layernorm(h_ref[...], ln_g_ref[...], ln_b_ref[...], d_real)
        hn_ref[...] = hn.astype(hn_ref.dtype)   # cached across the hidden axis
        acc_ref[...] = jnp.zeros_like(acc_ref)

    a = jnp.dot(hn_ref[...], w1t_ref[...],
                preferred_element_type=jnp.float32) + b1_ref[...]        # (tm, th)
    a = _gelu_exact(a)
    acc_ref[...] += jnp.dot(a.astype(compute_dtype), w2t_ref[...],
                            preferred_element_type=jnp.float32)          # (tm, D_p)

    @pl.when(j == pl.num_programs(1) - 1)
    def _():
        # TODO(synk): training-mode resid dropout not applied (eval-mode identity).
        o_ref[...] = (h_ref[...] + acc_ref[...] + b2_ref[...]).astype(o_ref.dtype)


def _ffn_sublayer(h_p, ln_g, ln_b, w1t_p, b1_p, w2t_p, b2_p, *,
                  d_real, compute_dtype, row_tile, hidden_tile):
    B, S_p, D_p = h_p.shape
    H_p = w1t_p.shape[1]
    M = B * S_p
    cdt = jnp.dtype(compute_dtype)

    # Largest row tile <= row_tile covering M (multiple of 8 sublanes), keeping the
    # "parallel" axis with >=2 steps where possible (v7x has 2 TensorCores).
    tm = min(row_tile, _round_up(M, 8))
    if M > 8 and _round_up(M, tm) // tm < 2:
        half = _round_up(tm // 2, 8)
        if half >= 8:
            tm = half
    m_pad = _round_up(M, tm)

    # Hidden-axis tile: multiple of 128 that divides H_p.
    th = max(128, (min(hidden_tile, H_p) // 128) * 128)
    while H_p % th:
        th -= 128

    h2 = h_p.reshape(M, D_p)
    if m_pad != M:
        # TODO(synk): at real sizes replace this whole-tensor pad with a masked
        # tail-block store to avoid the extra HBM copy.
        h2 = jnp.pad(h2, ((0, m_pad - M), (0, 0)))

    cost = pl.CostEstimate(
        flops=int(2 * 2 * m_pad * D_p * H_p),
        transcendentals=int(m_pad * H_p),                                # erf
        bytes_accessed=int(2 * 4 * m_pad * D_p
                           + 2 * D_p * H_p * cdt.itemsize * (m_pad // tm)
                           + 3 * 4 * D_p + 4 * H_p),
    )

    out2 = pl.pallas_call(
        functools.partial(_ffn_block_kernel, d_real=d_real, compute_dtype=cdt),
        out_shape=jax.ShapeDtypeStruct((m_pad, D_p), h_p.dtype),
        grid_spec=pltpu.PrefetchScalarGridSpec(
            num_scalar_prefetch=0,
            grid=(m_pad // tm, H_p // th),            # rows parallel, hidden reduction last
            in_specs=[
                pl.BlockSpec((tm, D_p), lambda i, j: (i, 0)),
                _const_spec((1, D_p)), _const_spec((1, D_p)),
                pl.BlockSpec((D_p, th), lambda i, j: (0, j)),   # W1^T hidden tile
                pl.BlockSpec((1, th), lambda i, j: (0, j)),     # b1 hidden tile
                pl.BlockSpec((th, D_p), lambda i, j: (j, 0)),   # W2^T hidden tile
                _const_spec((1, D_p)),
            ],
            out_specs=pl.BlockSpec((tm, D_p), lambda i, j: (i, 0)),
            scratch_shapes=[pltpu.VMEM((tm, D_p), cdt),          # cached LayerNorm(h)
                            pltpu.VMEM((tm, D_p), jnp.float32)], # f32 accumulator
        ),
        compiler_params=_compiler_params(("parallel", "arbitrary")),
        cost_estimate=cost,
    )(h2, ln_g, ln_b, w1t_p, b1_p, w2t_p, b2_p)
    return out2[:M].reshape(B, S_p, D_p)


# --------------------------------------------------------------------------- #
# Wrapper: one-time weight relayout / padding / casting, then the two kernels.
# --------------------------------------------------------------------------- #
def _prep_qkv_weight(w, n_heads, d_p, hd_p, dtype):
    # w: PyTorch nn.Linear weight [out=D, in=D] -> head-blocked (D_p, n_heads*hd_p).
    d_out, d_in = w.shape
    hd = d_out // n_heads
    wt = w.T.reshape(d_in, n_heads, hd)
    wt = jnp.pad(wt, ((0, d_p - d_in), (0, 0), (0, hd_p - hd)))
    return wt.reshape(d_p, n_heads * hd_p).astype(dtype)


def _prep_out_weight(w, n_heads, d_p, hd_p, dtype):
    # w: PyTorch nn.Linear weight [out=D, in=n_heads*hd] -> (n_heads*hd_p, D_p).
    d_out, d_in = w.shape
    hd = d_in // n_heads
    wt = w.T.reshape(n_heads, hd, d_out)
    wt = jnp.pad(wt, ((0, 0), (0, hd_p - hd), (0, d_p - d_out)))
    return wt.reshape(n_heads * hd_p, d_p).astype(dtype)


def _prep_vec(v, n_p):
    return jnp.pad(v, (0, n_p - v.shape[0])).reshape(1, n_p).astype(jnp.float32)


def transformer_block(x, params, *, n_heads, compute_dtype=jnp.bfloat16,
                      row_tile=512, hidden_tile=512, q_tile=256):
    """x: (batch, seq, dim); params use PyTorch nn.Linear layout ([out, in]).

    compute_dtype: MXU input dtype (bf16 default; f32 for bit-exact parity).
    Accumulation is always f32.  Dropout layers are eval-mode identities.
    """
    B, S, D = x.shape
    H = params["w1"].shape[0]
    hd = D // n_heads

    # Lane-dense padded sizes.  At real (128-aligned) sizes these pads are no-ops.
    D_p = _round_up(D, 128)
    H_p = _round_up(H, 128)
    hd_p = _round_up(hd, 128)
    S_p = _round_up(S, 8)
    if S_p > q_tile:
        S_p = _round_up(S_p, q_tile)

    cdt = jnp.dtype(compute_dtype)

    # One-time weight relayout/cast outside the kernels (halves weight DMA in bf16).
    wq_p = _prep_qkv_weight(params["wq"], n_heads, D_p, hd_p, cdt)
    wk_p = _prep_qkv_weight(params["wk"], n_heads, D_p, hd_p, cdt)
    wv_p = _prep_qkv_weight(params["wv"], n_heads, D_p, hd_p, cdt)
    wo_p = _prep_out_weight(params["wo"], n_heads, D_p, hd_p, cdt)
    ln1_g = _prep_vec(params["ln1_g"], D_p)
    ln1_b = _prep_vec(params["ln1_b"], D_p)
    ln2_g = _prep_vec(params["ln2_g"], D_p)
    ln2_b = _prep_vec(params["ln2_b"], D_p)
    w1t_p = jnp.pad(params["w1"].T, ((0, D_p - D), (0, H_p - H))).astype(cdt)
    w2t_p = jnp.pad(params["w2"].T, ((0, H_p - H), (0, D_p - D))).astype(cdt)
    b1_p = _prep_vec(params["b1"], H_p)
    b2_p = _prep_vec(params["b2"], D_p)

    # Activations padded once; kept padded through both sub-layers, sliced at the end.
    x_p = jnp.pad(x, ((0, 0), (0, S_p - S), (0, D_p - D)))

    h_p = _attention_sublayer(
        x_p, ln1_g, ln1_b, wq_p, wk_p, wv_p, wo_p,
        n_heads=n_heads, head_dim_p=hd_p, d_real=D, s_real=S,
        scale=1.0 / math.sqrt(hd), compute_dtype=cdt, q_tile=q_tile)

    out_p = _ffn_sublayer(
        h_p, ln2_g, ln2_b, w1t_p, b1_p, w2t_p, b2_p,
        d_real=D, compute_dtype=cdt, row_tile=row_tile, hidden_tile=hidden_tile)

    return out_p[:, :S, :D]


if __name__ == "__main__":
    # ModelArgs: dim=16, n_heads=4, max_seq_len=16, dropout_p=0.1 (eval -> identity).
    B, S, D, NH = 2, 16, 16, 4
    HID = 4 * D

    key = jax.random.PRNGKey(0)
    ks = jax.random.split(key, 16)
    x = jax.random.normal(ks[0], (B, S, D), dtype=jnp.float32)

    def uinit(k, shape, fan_in):
        lim = 1.0 / math.sqrt(fan_in)
        return jax.random.uniform(k, shape, minval=-lim, maxval=lim, dtype=jnp.float32)

    params = dict(
        ln1_g=1.0 + 0.1 * jax.random.normal(ks[1], (D,), jnp.float32),
        ln1_b=0.1 * jax.random.normal(ks[2], (D,), jnp.float32),
        wq=uinit(ks[3], (D, D), D), wk=uinit(ks[4], (D, D), D),
        wv=uinit(ks[5], (D, D), D), wo=uinit(ks[6], (D, D), D),
        ln2_g=1.0 + 0.1 * jax.random.normal(ks[7], (D,), jnp.float32),
        ln2_b=0.1 * jax.random.normal(ks[8], (D,), jnp.float32),
        w1=uinit(ks[9], (HID, D), D), b1=uinit(ks[10], (HID,), D),
        w2=uinit(ks[11], (D, HID), HID), b2=uinit(ks[12], (D,), HID),
    )

    # Pure-JAX reference for the full TransformerBlock (eval mode).
    def ref_block(x):
        def ln(v, g, b):
            mu = v.mean(-1, keepdims=True)
            var = ((v - mu) ** 2).mean(-1, keepdims=True)
            return (v - mu) / jnp.sqrt(var + _LN_EPS) * g + b

        xn = ln(x, params["ln1_g"], params["ln1_b"])
        q = xn @ params["wq"].T
        k = xn @ params["wk"].T
        v = xn @ params["wv"].T
        hd = D // NH
        q = q.reshape(B, S, NH, hd).transpose(0, 2, 1, 3)
        k = k.reshape(B, S, NH, hd).transpose(0, 2, 1, 3)
        v = v.reshape(B, S, NH, hd).transpose(0, 2, 1, 3)
        s = jnp.einsum("bhqd,bhkd->bhqk", q, k) / math.sqrt(hd)
        p = jax.nn.softmax(s, axis=-1)
        o = jnp.einsum("bhqk,bhkd->bhqd", p, v)
        o = o.transpose(0, 2, 1, 3).reshape(B, S, D)
        h = x + o @ params["wo"].T
        hn = ln(h, params["ln2_g"], params["ln2_b"])
        a = hn @ params["w1"].T + params["b1"]
        a = 0.5 * a * (1.0 + lax.erf(a / math.sqrt(2.0)))
        return h + (a @ params["w2"].T + params["b2"])

    expected = ref_block(x)

    # f32 MXU inputs: exact-parity check against the reference.
    f32_fn = jax.jit(functools.partial(transformer_block, n_heads=NH,
                                       compute_dtype=jnp.float32))
    out_f32 = jax.block_until_ready(f32_fn(x, params))
    assert out_f32.shape == (B, S, D)
    assert jnp.allclose(out_f32, expected, atol=1e-4, rtol=1e-4), "f32 mismatch vs reference"

    # bf16 MXU inputs (default on TPU): f32 accumulation, looser tolerance.
    bf16_fn = jax.jit(functools.partial(transformer_block, n_heads=NH))
    out_bf16 = jax.block_until_ready(bf16_fn(x, params))
    assert out_bf16.shape == (B, S, D)
    assert jnp.allclose(out_bf16, expected, atol=5e-2, rtol=5e-2), "bf16 mismatch vs reference"

    print("KERNEL_OK")
</pallas_src>

<mosaic_0001>
module attributes {stable_mosaic.version = 11 : i64} {
  func.func @_attn_block_kernel(%arg0: i32, %arg1: i32, %arg2: memref<1x16x128xf32, #tpu.memory_space<vmem>>, %arg3: memref<1x16x128xf32, #tpu.memory_space<vmem>>, %arg4: memref<1x128xf32, #tpu.memory_space<vmem>>, %arg5: memref<1x128xf32, #tpu.memory_space<vmem>>, %arg6: memref<128x512xf32, #tpu.memory_space<vmem>>, %arg7: memref<128x512xf32, #tpu.memory_space<vmem>>, %arg8: memref<128x512xf32, #tpu.memory_space<vmem>>, %arg9: memref<512x128xf32, #tpu.memory_space<vmem>>, %arg10: memref<1x16x128xf32, #tpu.memory_space<vmem>>) attributes {dimension_semantics = [#tpu.dimension_semantics<parallel>, #tpu.dimension_semantics<parallel>], iteration_bounds = array<i64: 2, 1>, scalar_prefetch = 0 : i64, scratch_operands = 0 : i64, tpu.core_type = #tpu.core_type<tc>, window_params = [{transform_indices = @transform_0, window_bounds = array<i64: 1, 16, 128>}, {transform_indices = @transform_1, window_bounds = array<i64: 1, 16, 128>}, {pipeline_mode = #tpu.pipeline_mode<synchronous>, transform_indices = @transform_2, window_bounds = array<i64: 1, 128>}, {pipeline_mode = #tpu.pipeline_mode<synchronous>, transform_indices = @transform_3, window_bounds = array<i64: 1, 128>}, {pipeline_mode = #tpu.pipeline_mode<synchronous>, transform_indices = @transform_4, window_bounds = array<i64: 128, 512>}, {pipeline_mode = #tpu.pipeline_mode<synchronous>, transform_indices = @transform_5, window_bounds = array<i64: 128, 512>}, {pipeline_mode = #tpu.pipeline_mode<synchronous>, transform_indices = @transform_6, window_bounds = array<i64: 128, 512>}, {pipeline_mode = #tpu.pipeline_mode<synchronous>, transform_indices = @transform_7, window_bounds = array<i64: 512, 128>}, {transform_indices = @transform_8, window_bounds = array<i64: 1, 16, 128>}]} {
    %c0 = arith.constant 0 : index
    %c0_0 = arith.constant 0 : index
    %c0_1 = arith.constant 0 : index
    %0 = vector.load %arg2[%c0, %c0_0, %c0_1] : memref<1x16x128xf32, #tpu.memory_space<vmem>>, vector<1x16x128xf32>
    %1 = vector.shape_cast %0 : vector<1x16x128xf32> to vector<16x128xf32>
    %c0_2 = arith.constant 0 : index
    %c0_3 = arith.constant 0 : index
    %c0_4 = arith.constant 0 : index
    %2 = vector.load %arg3[%c0_2, %c0_3, %c0_4] : memref<1x16x128xf32, #tpu.memory_space<vmem>>, vector<1x16x128xf32>
    %3 = vector.shape_cast %2 : vector<1x16x128xf32> to vector<16x128xf32>
    %c0_5 = arith.constant 0 : index
    %c0_6 = arith.constant 0 : index
    %4 = vector.load %arg4[%c0_5, %c0_6] : memref<1x128xf32, #tpu.memory_space<vmem>>, vector<1x128xf32>
    %c0_7 = arith.constant 0 : index
    %c0_8 = arith.constant 0 : index
    %5 = vector.load %arg5[%c0_7, %c0_8] : memref<1x128xf32, #tpu.memory_space<vmem>>, vector<1x128xf32>
    %6 = tpu.iota {dimensions = array<i32: 1>} : vector<16x128xi32>
    %c16_i32 = arith.constant 16 : i32
    %7 = vector.broadcast %c16_i32 : i32 to vector<16x128xi32>
    %8 = arith.cmpi slt, %6, %7 : vector<16x128xi32>
    %9 = arith.extui %8 : vector<16x128xi1> to vector<16x128xi32>
    %10 = arith.sitofp %9 : vector<16x128xi32> to vector<16x128xf32>
    %cst = arith.constant dense<0.000000e+00> : vector<16xf32>
    %11 = vector.multi_reduction <add>, %1, %cst [1] : vector<16x128xf32> to vector<16xf32>
    %12 = vector.shape_cast %11 : vector<16xf32> to vector<16x1xf32>
    %cst_9 = arith.constant 6.250000e-02 : f32
    %13 = vector.broadcast %cst_9 : f32 to vector<16x1xf32>
    %14 = arith.mulf %12, %13 : vector<16x1xf32>
    %15 = vector.broadcast %14 : vector<16x1xf32> to vector<16x128xf32>
    %16 = arith.subf %1, %15 : vector<16x128xf32>
    %17 = arith.mulf %16, %10 : vector<16x128xf32>
    %18 = arith.mulf %17, %17 : vector<16x128xf32>
    %cst_10 = arith.constant dense<0.000000e+00> : vector<16xf32>
    %19 = vector.multi_reduction <add>, %18, %cst_10 [1] : vector<16x128xf32> to vector<16xf32>
    %20 = vector.shape_cast %19 : vector<16xf32> to vector<16x1xf32>
    %cst_11 = arith.constant 6.250000e-02 : f32
    %21 = vector.broadcast %cst_11 : f32 to vector<16x1xf32>
    %22 = arith.mulf %20, %21 : vector<16x1xf32>
    %cst_12 = arith.constant 9.99999974E-6 : f32
    %23 = vector.broadcast %cst_12 : f32 to vector<16x1xf32>
    %24 = arith.addf %22, %23 : vector<16x1xf32>
    %25 = math.rsqrt %24 : vector<16x1xf32>
    %26 = vector.broadcast %25 : vector<16x1xf32> to vector<16x128xf32>
    %27 = arith.mulf %17, %26 : vector<16x128xf32>
    %28 = vector.broadcast %4 : vector<1x128xf32> to vector<16x128xf32>
    %29 = arith.mulf %27, %28 : vector<16x128xf32>
    %30 = vector.broadcast %5 : vector<1x128xf32> to vector<16x128xf32>
    %31 = arith.addf %29, %30 : vector<16x128xf32>
    %32 = tpu.iota {dimensions = array<i32: 1>} : vector<16x128xi32>
    %c16_i32_13 = arith.constant 16 : i32
    %33 = vector.broadcast %c16_i32_13 : i32 to vector<16x128xi32>
    %34 = arith.cmpi slt, %32, %33 : vector<16x128xi32>
    %35 = arith.extui %34 : vector<16x128xi1> to vector<16x128xi32>
    %36 = arith.sitofp %35 : vector<16x128xi32> to vector<16x128xf32>
    %cst_14 = arith.constant dense<0.000000e+00> : vector<16xf32>
    %37 = vector.multi_reduction <add>, %3, %cst_14 [1] : vector<16x128xf32> to vector<16xf32>
    %38 = vector.shape_cast %37 : vector<16xf32> to vector<16x1xf32>
    %cst_15 = arith.constant 6.250000e-02 : f32
    %39 = vector.broadcast %cst_15 : f32 to vector<16x1xf32>
    %40 = arith.mulf %38, %39 : vector<16x1xf32>
    %41 = vector.broadcast %40 : vector<16x1xf32> to vector<16x128xf32>
    %42 = arith.subf %3, %41 : vector<16x128xf32>
    %43 = arith.mulf %42, %36 : vector<16x128xf32>
    %44 = arith.mulf %43, %43 : vector<16x128xf32>
    %cst_16 = arith.constant dense<0.000000e+00> : vector<16xf32>
    %45 = vector.multi_reduction <add>, %44, %cst_16 [1] : vector<16x128xf32> to vector<16xf32>
    %46 = vector.shape_cast %45 : vector<16xf32> to vector<16x1xf32>
    %cst_17 = arith.constant 6.250000e-02 : f32
    %47 = vector.broadcast %cst_17 : f32 to vector<16x1xf32>
    %48 = arith.mulf %46, %47 : vector<16x1xf32>
    %cst_18 = arith.constant 9.99999974E-6 : f32
    %49 = vector.broadcast %cst_18 : f32 to vector<16x1xf32>
    %50 = arith.addf %48, %49 : vector<16x1xf32>
    %51 = math.rsqrt %50 : vector<16x1xf32>
    %52 = vector.broadcast %51 : vector<16x1xf32> to vector<16x128xf32>
    %53 = arith.mulf %43, %52 : vector<16x128xf32>
    %54 = vector.broadcast %4 : vector<1x128xf32> to vector<16x128xf32>
    %55 = arith.mulf %53, %54 : vector<16x128xf32>
    %56 = vector.broadcast %5 : vector<1x128xf32> to vector<16x128xf32>
    %57 = arith.addf %55, %56 : vector<16x128xf32>
    %c0_19 = arith.constant 0 : index
    %c0_20 = arith.constant 0 : index
    %58 = vector.load %arg6[%c0_19, %c0_20] : memref<128x512xf32, #tpu.memory_space<vmem>>, vector<128x512xf32>
    %cst_21 = arith.constant dense<0.000000e+00> : vector<16x512xf32>
    %59 = tpu.matmul %31, %58, %cst_21 {dimension_numbers = #tpu.dot_dimension_numbers<[1], [0], [0], [1], [0, 0, 1, 1], [], []>} : vector<16x128xf32>, vector<128x512xf32>, vector<16x512xf32> -> vector<16x512xf32>
    %c0_22 = arith.constant 0 : index
    %c0_23 = arith.constant 0 : index
    %60 = vector.load %arg7[%c0_22, %c0_23] : memref<128x512xf32, #tpu.memory_space<vmem>>, vector<128x512xf32>
    %cst_24 = arith.constant dense<0.000000e+00> : vector<16x512xf32>
    %61 = tpu.matmul %57, %60, %cst_24 {dimension_numbers = #tpu.dot_dimension_numbers<[1], [0], [0], [1], [0, 0, 1, 1], [], []>} : vector<16x128xf32>, vector<128x512xf32>, vector<16x512xf32> -> vector<16x512xf32>
    %c0_25 = arith.constant 0 : index
    %c0_26 = arith.constant 0 : index
    %62 = vector.load %arg8[%c0_25, %c0_26] : memref<128x512xf32, #tpu.memory_space<vmem>>, vector<128x512xf32>
    %cst_27 = arith.constant dense<0.000000e+00> : vector<16x512xf32>
    %63 = tpu.matmul %57, %62, %cst_27 {dimension_numbers = #tpu.dot_dimension_numbers<[1], [0], [0], [1], [0, 0, 1, 1], [], []>} : vector<16x128xf32>, vector<128x512xf32>, vector<16x512xf32> -> vector<16x512xf32>
    %64 = vector.shape_cast %59 : vector<16x512xf32> to vector<16x4x128xf32>
    %65 = tpu.transpose %64, [1, 0, 2] : vector<16x4x128xf32> -> vector<4x16x128xf32>
    %66 = vector.shape_cast %61 : vector<16x512xf32> to vector<16x4x128xf32>
    %67 = tpu.transpose %66, [1, 0, 2] : vector<16x4x128xf32> -> vector<4x16x128xf32>
    %68 = vector.shape_cast %63 : vector<16x512xf32> to vector<16x4x128xf32>
    %69 = tpu.transpose %68, [1, 0, 2] : vector<16x4x128xf32> -> vector<4x16x128xf32>
    "tpu.trace_start"() <{level = 10 : i32, message = "hqd,hkd->hqk"}> : () -> ()
    %cst_28 = arith.constant dense<0.000000e+00> : vector<4x16x16xf32>
    %70 = tpu.matmul %65, %67, %cst_28 {dimension_numbers = #tpu.dot_dimension_numbers<[2], [2], [1], [1], [0, 0, 0, 1, 1, 1], [0], [0]>} : vector<4x16x128xf32>, vector<4x16x128xf32>, vector<4x16x16xf32> -> vector<4x16x16xf32>
    "tpu.trace_stop"() : () -> ()
    %cst_29 = arith.constant 5.000000e-01 : f32
    %71 = vector.broadcast %cst_29 : f32 to vector<4x16x16xf32>
    %72 = arith.mulf %70, %71 : vector<4x16x16xf32>
    %cst_30 = arith.constant dense<0xFF800000> : vector<4x16xf32>
    %73 = vector.multi_reduction <maximumf>, %72, %cst_30 [2] : vector<4x16x16xf32> to vector<4x16xf32>
    %74 = vector.shape_cast %73 : vector<4x16xf32> to vector<4x16x1xf32>
    %75 = vector.broadcast %74 : vector<4x16x1xf32> to vector<4x16x16xf32>
    %76 = arith.subf %72, %75 : vector<4x16x16xf32>
    %77 = math.exp %76 : vector<4x16x16xf32>
    %cst_31 = arith.constant dense<0.000000e+00> : vector<4x16xf32>
    %78 = vector.multi_reduction <add>, %77, %cst_31 [2] : vector<4x16x16xf32> to vector<4x16xf32>
    %79 = vector.shape_cast %78 : vector<4x16xf32> to vector<4x16x1xf32>
    %80 = vector.broadcast %79 : vector<4x16x1xf32> to vector<4x16x16xf32>
    %81 = arith.divf %77, %80 : vector<4x16x16xf32>
    "tpu.trace_start"() <{level = 10 : i32, message = "hqk,hkd->hqd"}> : () -> ()
    %cst_32 = arith.constant dense<0.000000e+00> : vector<4x16x128xf32>
    %82 = tpu.matmul %81, %69, %cst_32 {dimension_numbers = #tpu.dot_dimension_numbers<[2], [1], [1], [2], [0, 0, 0, 1, 1, 2], [0], [0]>} : vector<4x16x16xf32>, vector<4x16x128xf32>, vector<4x16x128xf32> -> vector<4x16x128xf32>
    "tpu.trace_stop"() : () -> ()
    %83 = tpu.transpose %82, [1, 0, 2] : vector<4x16x128xf32> -> vector<16x4x128xf32>
    %84 = vector.shape_cast %83 : vector<16x4x128xf32> to vector<16x512xf32>
    %c0_33 = arith.constant 0 : index
    %c0_34 = arith.constant 0 : index
    %85 = vector.load %arg9[%c0_33, %c0_34] : memref<512x128xf32, #tpu.memory_space<vmem>>, vector<512x128xf32>
    %cst_35 = arith.constant dense<0.000000e+00> : vector<16x128xf32>
    %86 = tpu.matmul %84, %85, %cst_35 {dimension_numbers = #tpu.dot_dimension_numbers<[1], [0], [0], [1], [0, 0, 1, 1], [], []>} : vector<16x512xf32>, vector<512x128xf32>, vector<16x128xf32> -> vector<16x128xf32>
    %87 = arith.addf %1, %86 : vector<16x128xf32>
    %c0_36 = arith.constant 0 : index
    %c0_37 = arith.constant 0 : index
    %c0_38 = arith.constant 0 : index
    %88 = vector.load %arg10[%c0_36, %c0_37, %c0_38] : memref<1x16x128xf32, #tpu.memory_space<vmem>>, vector<1x16x128xf32>
    %89 = vector.shape_cast %88 : vector<1x16x128xf32> to vector<16x128xf32>
    %90 = vector.shape_cast %87 : vector<16x128xf32> to vector<1x16x128xf32>
    tpu.vector_store %arg10[%c0_36, %c0_37, %c0_38], %90 {strides = array<i32>} : memref<1x16x128xf32, #tpu.memory_space<vmem>>, vector<1x16x128xf32>,
    return
  }
  func.func @transform_0(%arg0: i32, %arg1: i32) -> (i32, i32, i32) {
    %c0_i32 = arith.constant 0 : i32
    %c0_i32_0 = arith.constant 0 : i32
    return %arg0, %arg1, %c0_i32 : i32, i32, i32
  }
  func.func @transform_1(%arg0: i32, %arg1: i32) -> (i32, i32, i32) {
    %c0_i32 = arith.constant 0 : i32
    %c0_i32_0 = arith.constant 0 : i32
    %c0_i32_1 = arith.constant 0 : i32
    return %arg0, %c0_i32, %c0_i32_0 : i32, i32, i32
  }
  func.func @transform_2(%arg0: i32, %arg1: i32) -> (i32, i32) {
    %c0_i32 = arith.constant 0 : i32
    %c0_i32_0 = arith.constant 0 : i32
    %c0_i32_1 = arith.constant 0 : i32
    return %c0_i32, %c0_i32_0 : i32, i32
  }
  func.func @transform_3(%arg0: i32, %arg1: i32) -> (i32, i32) {
    %c0_i32 = arith.constant 0 : i32
    %c0_i32_0 = arith.constant 0 : i32
    %c0_i32_1 = arith.constant 0 : i32
    return %c0_i32, %c0_i32_0 : i32, i32
  }
  func.func @transform_4(%arg0: i32, %arg1: i32) -> (i32, i32) {
    %c0_i32 = arith.constant 0 : i32
    %c0_i32_0 = arith.constant 0 : i32
    %c0_i32_1 = arith.constant 0 : i32
    return %c0_i32, %c0_i32_0 : i32, i32
  }
  func.func @transform_5(%arg0: i32, %arg1: i32) -> (i32, i32) {
    %c0_i32 = arith.constant 0 : i32
    %c0_i32_0 = arith.constant 0 : i32
    %c0_i32_1 = arith.constant 0 : i32
    return %c0_i32, %c0_i32_0 : i32, i32
  }
  func.func @transform_6(%arg0: i32, %arg1: i32) -> (i32, i32) {
    %c0_i32 = arith.constant 0 : i32
    %c0_i32_0 = arith.constant 0 : i32
    %c0_i32_1 = arith.constant 0 : i32
    return %c0_i32, %c0_i32_0 : i32, i32
  }
  func.func @transform_7(%arg0: i32, %arg1: i32) -> (i32, i32) {
    %c0_i32 = arith.constant 0 : i32
    %c0_i32_0 = arith.constant 0 : i32
    %c0_i32_1 = arith.constant 0 : i32
    return %c0_i32, %c0_i32_0 : i32, i32
  }
  func.func @transform_8(%arg0: i32, %arg1: i32) -> (i32, i32, i32) {
    %c0_i32 = arith.constant 0 : i32
    %c0_i32_0 = arith.constant 0 : i32
    return %arg0, %arg1, %c0_i32 : i32, i32, i32
  }
}

module attributes {stable_mosaic.version = 11 : i64} {
  func.func @_ffn_block_kernel(%arg0: i32, %arg1: i32, %arg2: memref<16x128xf32, #tpu.memory_space<vmem>>, %arg3: memref<1x128xf32, #tpu.memory_space<vmem>>, %arg4: memref<1x128xf32, #tpu.memory_space<vmem>>, %arg5: memref<128x128xf32, #tpu.memory_space<vmem>>, %arg6: memref<1x128xf32, #tpu.memory_space<vmem>>, %arg7: memref<128x128xf32, #tpu.memory_space<vmem>>, %arg8: memref<1x128xf32, #tpu.memory_space<vmem>>, %arg9: memref<16x128xf32, #tpu.memory_space<vmem>>, %arg10: memref<16x128xf32, #tpu.memory_space<vmem>>, %arg11: memref<16x128xf32, #tpu.memory_space<vmem>>) attributes {dimension_semantics = [#tpu.dimension_semantics<parallel>, #tpu.dimension_semantics<arbitrary>], iteration_bounds = array<i64: 2, 1>, scalar_prefetch = 0 : i64, scratch_operands = 2 : i64, tpu.core_type = #tpu.core_type<tc>, window_params = [{transform_indices = @transform_0, window_bounds = array<i64: 16, 128>}, {pipeline_mode = #tpu.pipeline_mode<synchronous>, transform_indices = @transform_1, window_bounds = array<i64: 1, 128>}, {pipeline_mode = #tpu.pipeline_mode<synchronous>, transform_indices = @transform_2, window_bounds = array<i64: 1, 128>}, {transform_indices = @transform_3, window_bounds = array<i64: 128, 128>}, {transform_indices = @transform_4, window_bounds = array<i64: 1, 128>}, {transform_indices = @transform_5, window_bounds = array<i64: 128, 128>}, {pipeline_mode = #tpu.pipeline_mode<synchronous>, transform_indices = @transform_6, window_bounds = array<i64: 1, 128>}, {transform_indices = @transform_7, window_bounds = array<i64: 16, 128>}]} {
    %c0_i32 = arith.constant 0 : i32
    %0 = arith.cmpi eq, %arg1, %c0_i32 : i32
    %1 = arith.extui %0 : i1 to i32
    %c0_i32_0 = arith.constant 0 : i32
    %2 = arith.cmpi ne, %1, %c0_i32_0 : i32
    scf.if %2 {
      %c0_18 = arith.constant 0 : index
      %c0_19 = arith.constant 0 : index
      %25 = vector.load %arg2[%c0_18, %c0_19] : memref<16x128xf32, #tpu.memory_space<vmem>>, vector<16x128xf32>
      %c0_20 = arith.constant 0 : index
      %c0_21 = arith.constant 0 : index
      %26 = vector.load %arg3[%c0_20, %c0_21] : memref<1x128xf32, #tpu.memory_space<vmem>>, vector<1x128xf32>
      %c0_22 = arith.constant 0 : index
      %c0_23 = arith.constant 0 : index
      %27 = vector.load %arg4[%c0_22, %c0_23] : memref<1x128xf32, #tpu.memory_space<vmem>>, vector<1x128xf32>
      %28 = tpu.iota {dimensions = array<i32: 1>} : vector<16x128xi32>
      %c16_i32 = arith.constant 16 : i32
      %29 = vector.broadcast %c16_i32 : i32 to vector<16x128xi32>
      %30 = arith.cmpi slt, %28, %29 : vector<16x128xi32>
      %31 = arith.extui %30 : vector<16x128xi1> to vector<16x128xi32>
      %32 = arith.sitofp %31 : vector<16x128xi32> to vector<16x128xf32>
      %cst_24 = arith.constant dense<0.000000e+00> : vector<16xf32>
      %33 = vector.multi_reduction <add>, %25, %cst_24 [1] : vector<16x128xf32> to vector<16xf32>
      %34 = vector.shape_cast %33 : vector<16xf32> to vector<16x1xf32>
      %cst_25 = arith.constant 6.250000e-02 : f32
      %35 = vector.broadcast %cst_25 : f32 to vector<16x1xf32>
      %36 = arith.mulf %34, %35 : vector<16x1xf32>
      %37 = vector.broadcast %36 : vector<16x1xf32> to vector<16x128xf32>
      %38 = arith.subf %25, %37 : vector<16x128xf32>
      %39 = arith.mulf %38, %32 : vector<16x128xf32>
      %40 = arith.mulf %39, %39 : vector<16x128xf32>
      %cst_26 = arith.constant dense<0.000000e+00> : vector<16xf32>
      %41 = vector.multi_reduction <add>, %40, %cst_26 [1] : vector<16x128xf32> to vector<16xf32>
      %42 = vector.shape_cast %41 : vector<16xf32> to vector<16x1xf32>
      %cst_27 = arith.constant 6.250000e-02 : f32
      %43 = vector.broadcast %cst_27 : f32 to vector<16x1xf32>
      %44 = arith.mulf %42, %43 : vector<16x1xf32>
      %cst_28 = arith.constant 9.99999974E-6 : f32
      %45 = vector.broadcast %cst_28 : f32 to vector<16x1xf32>
      %46 = arith.addf %44, %45 : vector<16x1xf32>
      %47 = math.rsqrt %46 : vector<16x1xf32>
      %48 = vector.broadcast %47 : vector<16x1xf32> to vector<16x128xf32>
      %49 = arith.mulf %39, %48 : vector<16x128xf32>
      %50 = vector.broadcast %26 : vector<1x128xf32> to vector<16x128xf32>
      %51 = arith.mulf %49, %50 : vector<16x128xf32>
      %52 = vector.broadcast %27 : vector<1x128xf32> to vector<16x128xf32>
      %53 = arith.addf %51, %52 : vector<16x128xf32>
      %c0_29 = arith.constant 0 : index
      %c0_30 = arith.constant 0 : index
      %54 = vector.load %arg10[%c0_29, %c0_30] : memref<16x128xf32, #tpu.memory_space<vmem>>, vector<16x128xf32>
      tpu.vector_store %arg10[%c0_29, %c0_30], %53 {strides = array<i32>} : memref<16x128xf32, #tpu.memory_space<vmem>>, vector<16x128xf32>,
      %cst_31 = arith.constant 0.000000e+00 : f32
      %55 = vector.broadcast %cst_31 : f32 to vector<16x128xf32>
      %c0_32 = arith.constant 0 : index
      %c0_33 = arith.constant 0 : index
      %56 = vector.load %arg11[%c0_32, %c0_33] : memref<16x128xf32, #tpu.memory_space<vmem>>, vector<16x128xf32>
      tpu.vector_store %arg11[%c0_32, %c0_33], %55 {strides = array<i32>} : memref<16x128xf32, #tpu.memory_space<vmem>>, vector<16x128xf32>,
    } else {
    }
    %c0 = arith.constant 0 : index
    %c0_1 = arith.constant 0 : index
    %3 = vector.load %arg10[%c0, %c0_1] : memref<16x128xf32, #tpu.memory_space<vmem>>, vector<16x128xf32>
    %c0_2 = arith.constant 0 : index
    %c0_3 = arith.constant 0 : index
    %4 = vector.load %arg5[%c0_2, %c0_3] : memref<128x128xf32, #tpu.memory_space<vmem>>, vector<128x128xf32>
    %cst = arith.constant dense<0.000000e+00> : vector<16x128xf32>
    %5 = tpu.matmul %3, %4, %cst {dimension_numbers = #tpu.dot_dimension_numbers<[1], [0], [0], [1], [0, 0, 1, 1], [], []>} : vector<16x128xf32>, vector<128x128xf32>, vector<16x128xf32> -> vector<16x128xf32>
    %c0_4 = arith.constant 0 : index
    %c0_5 = arith.constant 0 : index
    %6 = vector.load %arg6[%c0_4, %c0_5] : memref<1x128xf32, #tpu.memory_space<vmem>>, vector<1x128xf32>
    %7 = vector.broadcast %6 : vector<1x128xf32> to vector<16x128xf32>
    %8 = arith.addf %5, %7 : vector<16x128xf32>
    %cst_6 = arith.constant 5.000000e-01 : f32
    %9 = vector.broadcast %cst_6 : f32 to vector<16x128xf32>
    %10 = arith.mulf %9, %8 : vector<16x128xf32>
    %cst_7 = arith.constant 0.707106769 : f32
    %11 = vector.broadcast %cst_7 : f32 to vector<16x128xf32>
    %12 = arith.mulf %8, %11 : vector<16x128xf32>
    %13 = math.erf %12 : vector<16x128xf32>
    %cst_8 = arith.constant 1.000000e+00 : f32
    %14 = vector.broadcast %cst_8 : f32 to vector<16x128xf32>
    %15 = arith.addf %14, %13 : vector<16x128xf32>
    %16 = arith.mulf %10, %15 : vector<16x128xf32>
    %c0_9 = arith.constant 0 : index
    %c0_10 = arith.constant 0 : index
    %17 = vector.load %arg11[%c0_9, %c0_10] : memref<16x128xf32, #tpu.memory_space<vmem>>, vector<16x128xf32>
    %c0_11 = arith.constant 0 : index
    %c0_12 = arith.constant 0 : index
    %18 = vector.load %arg7[%c0_11, %c0_12] : memref<128x128xf32, #tpu.memory_space<vmem>>, vector<128x128xf32>
    %cst_13 = arith.constant dense<0.000000e+00> : vector<16x128xf32>
    %19 = tpu.matmul %16, %18, %cst_13 {dimension_numbers = #tpu.dot_dimension_numbers<[1], [0], [0], [1], [0, 0, 1, 1], [], []>} : vector<16x128xf32>, vector<128x128xf32>, vector<16x128xf32> -> vector<16x128xf32>
    %20 = arith.addf %17, %19 : vector<16x128xf32>
    %c0_14 = arith.constant 0 : index
    %c0_15 = arith.constant 0 : index
    %21 = vector.load %arg11[%c0_14, %c0_15] : memref<16x128xf32, #tpu.memory_space<vmem>>, vector<16x128xf32>
    tpu.vector_store %arg11[%c0_14, %c0_15], %20 {strides = array<i32>} : memref<16x128xf32, #tpu.memory_space<vmem>>, vector<16x128xf32>,
    %c0_i32_16 = arith.constant 0 : i32
    %22 = arith.cmpi eq, %arg1, %c0_i32_16 : i32
    %23 = arith.extui %22 : i1 to i32
    %c0_i32_17 = arith.constant 0 : i32
    %24 = arith.cmpi ne, %23, %c0_i32_17 : i32
    scf.if %24 {
      %c0_18 = arith.constant 0 : index
      %c0_19 = arith.constant 0 : index
      %25 = vector.load %arg2[%c0_18, %c0_19] : memref<16x128xf32, #tpu.memory_space<vmem>>, vector<16x128xf32>
      %c0_20 = arith.constant 0 : index
      %c0_21 = arith.constant 0 : index
      %26 = vector.load %arg11[%c0_20, %c0_21] : memref<16x128xf32, #tpu.memory_space<vmem>>, vector<16x128xf32>
      %27 = arith.addf %25, %26 : vector<16x128xf32>
      %c0_22 = arith.constant 0 : index
      %c0_23 = arith.constant 0 : index
      %28 = vector.load %arg8[%c0_22, %c0_23] : memref<1x128xf32, #tpu.memory_space<vmem>>, vector<1x128xf32>
      %29 = vector.broadcast %28 : vector<1x128xf32> to vector<16x128xf32>
      %30 = arith.addf %27, %29 : vector<16x128xf32>
      %c0_24 = arith.constant 0 : index
      %c0_25 = arith.constant 0 : index
      %31 = vector.load %arg9[%c0_24, %c0_25] : memref<16x128xf32, #tpu.memory_space<vmem>>, vector<16x128xf32>
      tpu.vector_store %arg9[%c0_24, %c0_25], %30 {strides = array<i32>} : memref<16x128xf32, #tpu.memory_space<vmem>>, vector<16x128xf32>,
    } else {
    }
    return
  }
  func.func @transform_0(%arg0: i32, %arg1: i32) -> (i32, i32) {
    %c0_i32 = arith.constant 0 : i32
    %c0_i32_0 = arith.constant 0 : i32
    return %arg0, %c0_i32 : i32, i32
  }
  func.func @transform_1(%arg0: i32, %arg1: i32) -> (i32, i32) {
    %c0_i32 = arith.constant 0 : i32
    %c0_i32_0 = arith.constant 0 : i32
    %c0_i32_1 = arith.constant 0 : i32
    return %c0_i32, %c0_i32_0 : i32, i32
  }
  func.func @transform_2(%arg0: i32, %arg1: i32) -> (i32, i32) {
    %c0_i32 = arith.constant 0 : i32
    %c0_i32_0 = arith.constant 0 : i32
    %c0_i32_1 = arith.constant 0 : i32
    return %c0_i32, %c0_i32_0 : i32, i32
  }
  func.func @transform_3(%arg0: i32, %arg1: i32) -> (i32, i32) {
    %c0_i32 = arith.constant 0 : i32
    %c0_i32_0 = arith.constant 0 : i32
    return %c0_i32, %arg1 : i32, i32
  }
  func.func @transform_4(%arg0: i32, %arg1: i32) -> (i32, i32) {
    %c0_i32 = arith.constant 0 : i32
    %c0_i32_0 = arith.constant 0 : i32
    return %c0_i32, %arg1 : i32, i32
  }
  func.func @transform_5(%arg0: i32, %arg1: i32) -> (i32, i32) {
    %c0_i32 = arith.constant 0 : i32
    %c0_i32_0 = arith.constant 0 : i32
    return %arg1, %c0_i32 : i32, i32
  }
  func.func @transform_6(%arg0: i32, %arg1: i32) -> (i32, i32) {
    %c0_i32 = arith.constant 0 : i32
    %c0_i32_0 = arith.constant 0 : i32
    %c0_i32_1 = arith.constant 0 : i32
    return %c0_i32, %c0_i32_0 : i32, i32
  }
  func.func @transform_7(%arg0: i32, %arg1: i32) -> (i32, i32) {
    %c0_i32 = arith.constant 0 : i32
    %c0_i32_0 = arith.constant 0 : i32
    return %arg0, %c0_i32 : i32, i32
  }
}

</mosaic_0001>

<llo_original>
// kernel: transformer_block.3
$region0: #{transformer_block.3}
  #allocation0 [shape = 'u32[]', space=smem, size = 0x4, offset = 0x4, fixed_abs, tag = 'smem constant byte address 0x4 - core index']
  #allocation1 [shape = 'u32[144,128]{1,0:T(1,128)}', space=vmem, size = 0x12000, scoped, tag = 'internal scratch']
  #allocation2 [shape = 'f32[16,128]{1,0:T(8,128)}', space=vmem, size = 0x2000, scoped, tag = 'scratch operand']
  #allocation3 [shape = 'f32[16,128]{1,0:T(8,128)}', space=vmem, size = 0x2000, scoped, tag = 'scratch operand']
  %s0 = inlined_call_operand.vmem [shape: f32[32,128], index: 0, kind: input, shape index: {}]
  %s1 = inlined_call_operand.vmem [shape: f32[1,128], index: 1, kind: input, shape index: {}]
  %s2 = inlined_call_operand.vmem [shape: f32[1,128], index: 2, kind: input, shape index: {}]
  %s3 = inlined_call_operand.vmem [shape: f32[128,128], index: 3, kind: input, shape index: {}]
  %s4 = inlined_call_operand.vmem [shape: f32[1,128], index: 4, kind: input, shape index: {}]
  %s5 = inlined_call_operand.vmem [shape: f32[128,128], index: 5, kind: input, shape index: {}]
  %s6 = inlined_call_operand.vmem [shape: f32[1,128], index: 6, kind: input, shape index: {}]
  %s7 = inlined_call_operand.hbm [shape: f32[32,128], index: 7, kind: output, shape index: {}]
  %s8 = sld [smem:[#allocation0]]
  $region69: #{transformer_block.3} parent=0
    _
  %s10 = ssub.s32 1, %s8
  %s11 = scalar_select 0, %s10, %s8
  $region1: #{transformer_block.3} parent=0
    #allocation4 [shape = 'u8[16384]{0}', space=vmem, size = 0x4000, scoped, tag = 'output window, operand 0']
    #allocation5 [shape = 's32[2]{0}', space=sflag, size = 0x8, scoped, tag = 'scoped memory for transformer_block.3']
    %12 = vsyncpa [#allocation5], 0
    %s13 = scalar_lea.sflag [#allocation5], 1
    %14 = vsyncpa %s13, 0
    loop: start=0, step=1, limit=4
    $region2: #{transformer_block.3} parent=1 // loop_pre_header
      _
    $region3: #{transformer_block.3} parent=1 // loop_header
      %s16 = sphi 0, %s20
      %p17 = scmp.ge.s32.totalorder %s16, 4
      %s23 = sphi 0, %s35
      %s24 = sphi 0, %s31
      %s25 = sphi 0, %s23
      %s26 = sphi 0, %s24
      %s27 = sphi 0, %s25
      %s28 = sphi 0, %s26
      %s38 = sphi 0, %s40
      %s41 = sphi 0, %s38
      %s42 = sphi 0, %s41
      %s58 = sphi 0, %s42
      %s62 = sphi 0, %s62
      %s64 = sphi 0, %s62
      %s65 = sphi 0, %s64
      %s79 = sphi 0, %s65
      %s83 = sphi 0, %s83
      %s85 = sphi 0, %s83
      %s86 = sphi 0, %s85
      %s100 = sphi 0, %s86
      %s106 = sphi 0, %s108
      %s109 = sphi 0, %s106
      %s110 = sphi 0, %s109
      %s126 = sphi 0, %s110
      %s132 = sphi 0, %s134
      %s135 = sphi 0, %s132
      %s136 = sphi 0, %s135
      %s152 = sphi 0, %s136
      %s158 = sphi 0, %s160
      %s161 = sphi 0, %s158
      %s162 = sphi 0, %s161
      %s178 = sphi 0, %s162
      %s182 = sphi 0, %s182
      %s184 = sphi 0, %s182
      %s185 = sphi 0, %s184
      %s199 = sphi 0, %s185
      %s205 = sphi 0, %s207
      %s208 = sphi 0, %s205
      %s209 = sphi 0, %s208
      %s225 = sphi 0, %s209
    $region4: #{transformer_block.3} parent=1 // loop_header_branch
      %19 = sbr.rel (%p17) target = $region8
    $region5: #{transformer_block.3} parent=1 // loop_body
      %s21 = ssub.s32 %s16, 1
      %s22 = ssub.s32 %s16, 2
      %s29 = sadd.s32 1, %s24
      %p30 = scmp.ge.s32.totalorder %s29, 1
      %s31 = scalar_select %p30, 0, %s29
      %s32 = sadd.s32 1, %s23
      %s33 = scalar_select %p30, %s32, %s23
      %p34 = scmp.ge.s32.totalorder %s33, 2
      %s35 = scalar_select %p34, 0, %s33
      %s36 = ssub.s32 %s23, %s35
      %p37 = scmp.eq.s32.totalorder %s36, 0
      %s39 = sadd.s32 %s38, 1
      %s40 = scalar_select %p37, %s38, %s39
      %p43 = pneg %p37
      %p44 = scmp.eq.s32.totalorder %s16, 1
      %p45 = por %p43, %p44
      %p46 = scmp.ne.s32.totalorder %s38, %s41
      %p47 = scmp.eq.s32.totalorder %s16, 0
      %p48 = por %p46, %p47
      %p49 = scmp.ne.s32.totalorder %s38, %s41
      %p50 = scmp.eq.s32.totalorder %s21, 1
      %p51 = por %p49, %p50
      %p52 = scmp.ne.s32.totalorder %s41, %s42
      %p53 = scmp.eq.s32.totalorder %s21, 0
      %p54 = por %p52, %p53
      %p55 = scmp.ne.s32.totalorder %s41, %s42
      %p56 = scmp.eq.s32.totalorder %s22, 1
      %p57 = por %p55, %p56
      %p59 = scmp.ne.s32.totalorder %s42, %s58
      %p60 = scmp.eq.s32.totalorder %s22, 0
      %p61 = por %p59, %p60
      %s63 = sadd.s32 %s62, 1
      %p66 = scmp.eq.s32.totalorder %s16, 1
      %p67 = scmp.ne.s32.totalorder %s62, %s64
      %p68 = scmp.eq.s32.totalorder %s16, 0
      %p69 = por %p67, %p68
      %p70 = scmp.ne.s32.totalorder %s62, %s64
      %p71 = scmp.eq.s32.totalorder %s21, 1
      %p72 = por %p70, %p71
      %p73 = scmp.ne.s32.totalorder %s64, %s65
      %p74 = scmp.eq.s32.totalorder %s21, 0
      %p75 = por %p73, %p74
      %p76 = scmp.ne.s32.totalorder %s64, %s65
      %p77 = scmp.eq.s32.totalorder %s22, 1
      %p78 = por %p76, %p77
      %p80 = scmp.ne.s32.totalorder %s65, %s79
      %p81 = scmp.eq.s32.totalorder %s22, 0
      %p82 = por %p80, %p81
      %s84 = sadd.s32 %s83, 1
      %p87 = scmp.eq.s32.totalorder %s16, 1
      %p88 = scmp.ne.s32.totalorder %s83, %s85
      %p89 = scmp.eq.s32.totalorder %s16, 0
      %p90 = por %p88, %p89
      %p91 = scmp.ne.s32.totalorder %s83, %s85
      %p92 = scmp.eq.s32.totalorder %s21, 1
      %p93 = por %p91, %p92
      %p94 = scmp.ne.s32.totalorder %s85, %s86
      %p95 = scmp.eq.s32.totalorder %s21, 0
      %p96 = por %p94, %p95
      %p97 = scmp.ne.s32.totalorder %s85, %s86
      %p98 = scmp.eq.s32.totalorder %s22, 1
      %p99 = por %p97, %p98
      %p101 = scmp.ne.s32.totalorder %s86, %s100
      %p102 = scmp.eq.s32.totalorder %s22, 0
      %p103 = por %p101, %p102
      %s104 = ssub.s32 %s24, %s31
      %p105 = scmp.eq.s32.totalorder %s104, 0
      %s107 = sadd.s32 %s106, 1
      %s108 = scalar_select %p105, %s106, %s107
      %p111 = pneg %p105
      %p112 = scmp.eq.s32.totalorder %s16, 1
      %p113 = por %p111, %p112
      %p114 = scmp.ne.s32.totalorder %s106, %s109
      %p115 = scmp.eq.s32.totalorder %s16, 0
      %p116 = por %p114, %p115
      %p117 = scmp.ne.s32.totalorder %s106, %s109
      %p118 = scmp.eq.s32.totalorder %s21, 1
      %p119 = por %p117, %p118
      %p120 = scmp.ne.s32.totalorder %s109, %s110
      %p121 = scmp.eq.s32.totalorder %s21, 0
      %p122 = por %p120, %p121
      %p123 = scmp.ne.s32.totalorder %s109, %s110
      %p124 = scmp.eq.s32.totalorder %s22, 1
      %p125 = por %p123, %p124
      %p127 = scmp.ne.s32.totalorder %s110, %s126
      %p128 = scmp.eq.s32.totalorder %s22, 0
      %p129 = por %p127, %p128
      %s130 = ssub.s32 %s24, %s31
      %p131 = scmp.eq.s32.totalorder %s130, 0
      %s133 = sadd.s32 %s132, 1
      %s134 = scalar_select %p131, %s132, %s133
      %p137 = pneg %p131
      %p138 = scmp.eq.s32.totalorder %s16, 1
      %p139 = por %p137, %p138
      %p140 = scmp.ne.s32.totalorder %s132, %s135
      %p141 = scmp.eq.s32.totalorder %s16, 0
      %p142 = por %p140, %p141
      %p143 = scmp.ne.s32.totalorder %s132, %s135
      %p144 = scmp.eq.s32.totalorder %s21, 1
      %p145 = por %p143, %p144
      %p146 = scmp.ne.s32.totalorder %s135, %s136
      %p147 = scmp.eq.s32.totalorder %s21, 0
      %p148 = por %p146, %p147
      %p149 = scmp.ne.s32.totalorder %s135, %s136
      %p150 = scmp.eq.s32.totalorder %s22, 1
      %p151 = por %p149, %p150
      %p153 = scmp.ne.s32.totalorder %s136, %s152
      %p154 = scmp.eq.s32.totalorder %s22, 0
      %p155 = por %p153, %p154
      %s156 = ssub.s32 %s24, %s31
      %p157 = scmp.eq.s32.totalorder %s156, 0
      %s159 = sadd.s32 %s158, 1
      %s160 = scalar_select %p157, %s158, %s159
      %p163 = pneg %p157
      %p164 = scmp.eq.s32.totalorder %s16, 1
      %p165 = por %p163, %p164
      %p166 = scmp.ne.s32.totalorder %s158, %s161
      %p167 = scmp.eq.s32.totalorder %s16, 0
      %p168 = por %p166, %p167
      %p169 = scmp.ne.s32.totalorder %s158, %s161
      %p170 = scmp.eq.s32.totalorder %s21, 1
      %p171 = por %p169, %p170
      %p172 = scmp.ne.s32.totalorder %s161, %s162
      %p173 = scmp.eq.s32.totalorder %s21, 0
      %p174 = por %p172, %p173
      %p175 = scmp.ne.s32.totalorder %s161, %s162
      %p176 = scmp.eq.s32.totalorder %s22, 1
      %p177 = por %p175, %p176
      %p179 = scmp.ne.s32.totalorder %s162, %s178
      %p180 = scmp.eq.s32.totalorder %s22, 0
      %p181 = por %p179, %p180
      %s183 = sadd.s32 %s182, 1
      %p186 = scmp.eq.s32.totalorder %s16, 1
      %p187 = scmp.ne.s32.totalorder %s182, %s184
      %p188 = scmp.eq.s32.totalorder %s16, 0
      %p189 = por %p187, %p188
      %p190 = scmp.ne.s32.totalorder %s182, %s184
      %p191 = scmp.eq.s32.totalorder %s21, 1
      %p192 = por %p190, %p191
      %p193 = scmp.ne.s32.totalorder %s184, %s185
      %p194 = scmp.eq.s32.totalorder %s21, 0
      %p195 = por %p193, %p194
      %p196 = scmp.ne.s32.totalorder %s184, %s185
      %p197 = scmp.eq.s32.totalorder %s22, 1
      %p198 = por %p196, %p197
      %p200 = scmp.ne.s32.totalorder %s185, %s199
      %p201 = scmp.eq.s32.totalorder %s22, 0
      %p202 = por %p200, %p201
      %s203 = ssub.s32 %s23, %s35
      %p204 = scmp.eq.s32.totalorder %s203, 0
      %s206 = sadd.s32 %s205, 1
      %s207 = scalar_select %p204, %s205, %s206
      %p210 = pneg %p204
      %p211 = scmp.eq.s32.totalorder %s16, 1
      %p212 = por %p210, %p211
      %p213 = scmp.ne.s32.totalorder %s205, %s208
      %p214 = scmp.eq.s32.totalorder %s16, 0
      %p215 = por %p213, %p214
      %p216 = scmp.ne.s32.totalorder %s205, %s208
      %p217 = scmp.eq.s32.totalorder %s21, 1
      %p218 = por %p216, %p217
      %p219 = scmp.ne.s32.totalorder %s208, %s209
      %p220 = scmp.eq.s32.totalorder %s21, 0
      %p221 = por %p219, %p220
      %p222 = scmp.ne.s32.totalorder %s208, %s209
      %p223 = scmp.eq.s32.totalorder %s22, 1
      %p224 = por %p222, %p223
      %p226 = scmp.ne.s32.totalorder %s209, %s225
      %p227 = scmp.eq.s32.totalorder %s22, 0
      %p228 = por %p226, %p227
      %p229 = scmp.le.s32.totalorder 1, %s16
      %p230 = scmp.lt.s32.totalorder %s16, 3
      %p231 = pnand %p229, %p230
      %p232 = pneg %p231
      // Predicated region
      $region9: #{transformer_block.3} parent=5 // pred_check
        _
      $region10: #{transformer_block.3} parent=5 // pred_check_branch
        %234 = sbr.rel (%p231) target = $region12
      $region11: #{transformer_block.3} parent=5 // pred_region
        %s235 = ssub.s32 %s16, 1
        // Predicated region
        $region13: #{transformer_block.3} parent=11 // pred_check
          %p236 = pneg %p75
        $region14: #{transformer_block.3} parent=11 // pred_check_branch
          %238 = sbr.rel (%p236) target = $region16
        $region15: #{transformer_block.3} parent=11 // pred_region
          _
        $region16: #{transformer_block.3} parent=11 // pred_fallthru
          _
        // Predicated region
        $region17: #{transformer_block.3} parent=11 // pred_check
          %p239 = pneg %p96
        $region18: #{transformer_block.3} parent=11 // pred_check_branch
          %241 = sbr.rel (%p239) target = $region20
        $region19: #{transformer_block.3} parent=11 // pred_region
          _
        $region20: #{transformer_block.3} parent=11 // pred_fallthru
          _
        // Predicated region
        $region21: #{transformer_block.3} parent=11 // pred_check
          %p242 = pneg %p122
        $region22: #{transformer_block.3} parent=11 // pred_check_branch
          %244 = sbr.rel (%p242) target = $region24
        $region23: #{transformer_block.3} parent=11 // pred_region
          %p245 = scmp.lt.s32.totalorder %s26, 0
          %s246 = scalar_select %p245, %s26, 0
          %s247 = smul.addr %s246, 8
          %s248 = scalar_lea.vmem %s3, %s247
        $region24: #{transformer_block.3} parent=11 // pred_fallthru
          _
        // Predicated region
        $region25: #{transformer_block.3} parent=11 // pred_check
          %p249 = pneg %p148
        $region26: #{transformer_block.3} parent=11 // pred_check_branch
          %251 = sbr.rel (%p249) target = $region28
        $region27: #{transformer_block.3} parent=11 // pred_region
          %p252 = scmp.lt.s32.totalorder %s26, 0
          %s253 = scalar_select %p252, %s26, 0
          %s254 = scalar_lea.vmem %s4, %s253
        $region28: #{transformer_block.3} parent=11 // pred_fallthru
          _
        // Predicated region
        $region29: #{transformer_block.3} parent=11 // pred_check
          %p255 = pneg %p174
        $region30: #{transformer_block.3} parent=11 // pred_check_branch
          %257 = sbr.rel (%p255) target = $region32
        $region31: #{transformer_block.3} parent=11 // pred_region
          %s258 = smul.u32 16, %s26
          %p259 = scmp.lt.s32.totalorder %s258, 15
          %s260 = scalar_select %p259, %s258, 15
          %s261 = smul.addr %s260, 8
          %s262 = scalar_lea.vmem %s5, %s261
          %s263 = smul.u32 16, %s26
        $region32: #{transformer_block.3} parent=11 // pred_fallthru
          _
        // Predicated region
        $region33: #{transformer_block.3} parent=11 // pred_check
          %p264 = pneg %p195
        $region34: #{transformer_block.3} parent=11 // pred_check_branch
          %266 = sbr.rel (%p264) target = $region36
        $region35: #{transformer_block.3} parent=11 // pred_region
          _
        $region36: #{transformer_block.3} parent=11 // pred_fallthru
          _
      $region12: #{transformer_block.3} parent=5 // pred_fallthru
        _
      %p267 = scmp.lt.s32.totalorder %s16, 2
      // Predicated region
      $region37: #{transformer_block.3} parent=5 // pred_check
        %p268 = pneg %p267
      $region38: #{transformer_block.3} parent=5 // pred_check_branch
        %270 = sbr.rel (%p268) target = $region40
      $region39: #{transformer_block.3} parent=5 // pred_region
        // Predicated region
        $region41: #{transformer_block.3} parent=39 // pred_check
          %p271 = pneg %p48
        $region42: #{transformer_block.3} parent=39 // pred_check_branch
          %273 = sbr.rel (%p271) target = $region44
        $region43: #{transformer_block.3} parent=39 // pred_region
          %s274 = smul.u32 2, %s23
          %p275 = scmp.lt.s32.totalorder %s274, 3
          %s276 = scalar_select %p275, %s274, 3
          %s277 = smul.addr %s276, 8
          %s278 = scalar_lea.vmem %s0, %s277
          %s279 = smul.u32 2, %s23
        $region44: #{transformer_block.3} parent=39 // pred_fallthru
          _
      $region40: #{transformer_block.3} parent=5 // pred_fallthru
        _
      %p280 = scmp.le.s32.totalorder 1, %s16
      %p281 = scmp.lt.s32.totalorder %s16, 3
      %p282 = pnand %p280, %p281
      %p283 = pneg %p282
      // Predicated region
      $region45: #{transformer_block.3} parent=5 // pred_check
        _
      $region46: #{transformer_block.3} parent=5 // pred_check_branch
        %285 = sbr.rel (%p282) target = $region48
      $region47: #{transformer_block.3} parent=5 // pred_region
        %s286 = ssub.s32 %s16, 1
        %s287 = smul.u32 2, %s25
        %p288 = scmp.lt.s32.totalorder %s287, 3
        %s289 = scalar_select %p288, %s287, 3
        %s290 = smul.addr %s289, 8
        %s291 = scalar_lea.vmem %s0, %s290
        %p292 = pneg %p54
        %p293 = pneg %p51
        %p294 = pneg %p75
        %p295 = pneg %p72
        %p296 = pneg %p96
        %p297 = pneg %p93
        %p298 = scmp.lt.s32.totalorder %s26, 0
        %s299 = scalar_select %p298, %s26, 0
        %s300 = smul.addr %s299, 8
        %s301 = scalar_lea.vmem %s3, %s300
        %p302 = pneg %p122
        %p303 = pneg %p119
        %p304 = scmp.lt.s32.totalorder %s26, 0
        %s305 = scalar_select %p304, %s26, 0
        %s306 = scalar_lea.vmem %s4, %s305
        %p307 = pneg %p148
        %p308 = pneg %p145
        %s309 = smul.u32 16, %s26
        %p310 = scmp.lt.s32.totalorder %s309, 15
        %s311 = scalar_select %p310, %s309, 15
        %s312 = smul.addr %s311, 8
        %s313 = scalar_lea.vmem %s5, %s312
        %p314 = pneg %p174
        %p315 = pneg %p171
        %p316 = pneg %p195
        %p317 = pneg %p192
        %p318 = pneg %p221
        %p319 = pneg %p218
        %s320 = sand.u32 %s208, 1
        %s321 = scalar_lea.sflag [#allocation5], %s320
        %s322 = sand.u32 %s208, 1
        %s323 = smul.addr %s322, 16
        %s324 = scalar_lea.vmem [#allocation4], %s323
        %s325 = smul.u32 2, %s25
        %p326 = scmp.lt.s32.totalorder %s325, 3
        %s327 = scalar_select %p326, %s325, 3
        %s328 = smul.addr %s327, 8
        %s329 = scalar_lea.vmem %s0, %s328
        %s330 = smul.u32 2, %s25
        %p331 = scmp.lt.s32.totalorder %s26, 0
        %s332 = scalar_select %p331, %s26, 0
        %s333 = smul.addr %s332, 8
        %s334 = scalar_lea.vmem %s3, %s333
        %p335 = scmp.lt.s32.totalorder %s26, 0
        %s336 = scalar_select %p335, %s26, 0
        %s337 = scalar_lea.vmem %s4, %s336
        %s338 = smul.u32 16, %s26
        %p339 = scmp.lt.s32.totalorder %s338, 15
        %s340 = scalar_select %p339, %s338, 15
        %s341 = smul.addr %s340, 8
        %s342 = scalar_lea.vmem %s5, %s341
        %s343 = smul.u32 16, %s26
        %s344 = smul.u32 2, %s25
        %p345 = scmp.eq.s32.totalorder %s26, 0
        // Predicated region
        $region49: #{transformer_block.3} parent=47 // pred_check
          %p346 = pneg %p345
        $region50: #{transformer_block.3} parent=47 // pred_check_branch
          %348 = sbr.rel (%p346) target = $region52
        $region51: #{transformer_block.3} parent=47 // pred_region
          %v349 = vld [vmem:[%s329] sm:$0xff]
          %v350 = vld [vmem:[%s329 + $0x8] sm:$0xff]
          %v351 = vld [vmem:[%s1] sm:$0x1]
          %v352 = vld [vmem:[%s2] sm:$0x1]
          %v353 = vlaneseq
          %v354 = vand.u32 %v353, 127
          %vm355 = vcmp.lt.s32.totalorder %v354, 16
          %v356 = vsel %vm355, 1, 0
          %v357 = vcvt.s32.f32 %v356
          %358 = vadd.xlane.f32.xlu0 %v349
          %v359 = vpop.xlane.xlu0 %358
          %360 = vadd.xlane.f32.xlu0 %v350
          %v361 = vpop.xlane.xlu0 %360
          %v362 = vmul.f32 %v359, 0.0625
          %v363 = vmul.f32 %v361, 0.0625
          %v364 = vsub.f32 %v349, %v362
          %v365 = vsub.f32 %v350, %v363
          %v366 = vmul.f32 %v364, %v357
          %v367 = vmul.f32 %v365, %v357
          %v368 = vmul.f32 %v366, %v366
          %v369 = vmul.f32 %v367, %v367
          %370 = vadd.xlane.f32.xlu0 %v368
          %v371 = vpop.xlane.xlu0 %370
          %372 = vadd.xlane.f32.xlu0 %v369
          %v373 = vpop.xlane.xlu0 %372
          %v374 = vmul.f32 %v371, 0.0625
          %v375 = vmul.f32 %v373, 0.0625
          %v376 = vadd.f32 %v374, 1e-05
          %v377 = vadd.f32 %v375, 1e-05
          %v378 = vrsqrt.pop %v376
          %v379 = vrsqrt.pop %v377
          %v380 = vmul.f32 %v366, %v378
          %v381 = vmul.f32 %v367, %v379
          %v383 = vlaneseq
          %v384 = vshrl.u32 %v383, 7
          %v385 = vsub.s32 0, %v384
          %v386 = vrot.slane %v351, %v385
          %v388 = vmul.f32 %v380, %v386
          %v389 = vmul.f32 %v381, %v386
          %v391 = vlaneseq
          %v392 = vshrl.u32 %v391, 7
          %v393 = vsub.s32 0, %v392
          %v394 = vrot.slane %v352, %v393
          %v396 = vadd.f32 %v388, %v394
          %v397 = vadd.f32 %v389, %v394
          %398 = vst [vmem:[#allocation2] sm:$0xff] %v396
          %399 = vst [vmem:[#allocation2 + $0x8] sm:$0xff] %v397
          %400 = vst [vmem:[#allocation3] sm:$0xff] 0.0
          %401 = vst [vmem:[#allocation3 + $0x8] sm:$0xff] 0.0
        $region52: #{transformer_block.3} parent=47 // pred_fallthru
          _
        %v402 = vld [vmem:[#allocation2] sm:$0xff]
        %v403 = vld [vmem:[#allocation2 + $0x8] sm:$0xff]
        %v404 = vld [vmem:[%s334] sm:$0xff]
        %v405 = vld [vmem:[%s334 + $0x8] sm:$0xff]
        %v406 = vld [vmem:[%s334 + $0x10] sm:$0xff]
        %v407 = vld [vmem:[%s334 + $0x18] sm:$0xff]
        %v408 = vld [vmem:[%s334 + $0x20] sm:$0xff]
        %v409 = vld [vmem:[%s334 + $0x28] sm:$0xff]
        %v410 = vld [vmem:[%s334 + $0x30] sm:$0xff]
        %v411 = vld [vmem:[%s334 + $0x38] sm:$0xff]
        %v412 = vld [vmem:[%s334 + $0x40] sm:$0xff]
        %v413 = vld [vmem:[%s334 + $0x48] sm:$0xff]
        %v414 = vld [vmem:[%s334 + $0x50] sm:$0xff]
        %v415 = vld [vmem:[%s334 + $0x58] sm:$0xff]
        %v416 = vld [vmem:[%s334 + $0x60] sm:$0xff]
        %v417 = vld [vmem:[%s334 + $0x68] sm:$0xff]
        %v418 = vld [vmem:[%s334 + $0x70] sm:$0xff]
        %v419 = vld [vmem:[%s334 + $0x78] sm:$0xff]
        %v420 = vld [vmem:[%s337] sm:$0x1]
        %v422 = vlaneseq
        %v423 = vshrl.u32 %v422, 7
        %v424 = vsub.s32 0, %v423
        %v425 = vrot.slane %v420, %v424
        %427 = vmatprep.subr.mxu0 0.0
        %428 = vmatpush1.msra.mxu0 %v404
        %429 = vmatprep.subr.mxu0 0.0
        %430 = vmatpush1.msra.mxu0 %v405
        %431 = vmatprep.subr.mxu0 0.0
        %432 = vmatpush1.msra.mxu0 %v406
        %433 = vmatprep.subr.mxu0 0.0
        %434 = vmatpush1.msra.mxu0 %v407
        %435 = vmatprep.subr.mxu0 0.0
        %436 = vmatpush1.msra.mxu0 %v408
        %437 = vmatprep.subr.mxu0 0.0
        %438 = vmatpush1.msra.mxu0 %v409
        %439 = vmatprep.subr.mxu0 0.0
        %440 = vmatpush1.msra.mxu0 %v410
        %441 = vmatprep.subr.mxu0 0.0
        %442 = vmatpush1.msra.mxu0 %v411
        %443 = vmatprep.subr.mxu0 0.0
        %444 = vmatpush1.msra.mxu0 %v412
        %445 = vmatprep.subr.mxu0 0.0
        %446 = vmatpush1.msra.mxu0 %v413
        %447 = vmatprep.subr.mxu0 0.0
        %448 = vmatpush1.msra.mxu0 %v414
        %449 = vmatprep.subr.mxu0 0.0
        %450 = vmatpush1.msra.mxu0 %v415
        %451 = vmatprep.subr.mxu0 0.0
        %452 = vmatpush1.msra.mxu0 %v416
        %453 = vmatprep.subr.mxu0 0.0
        %454 = vmatpush1.msra.mxu0 %v417
        %455 = vmatprep.subr.mxu0 0.0
        %456 = vmatpush1.msra.mxu0 %v418
        %457 = vmatprep.subr.mxu0 0.0
        %458 = vmatpush1.msra.mxu0 %v419
        %459 = vmatprep.subr.mxu0 0.0
        %460 = vmatpush1.msra.mxu0 0.0
        %461 = vmatprep.subr.mxu0 0.0
        %462 = vmatpush1.msra.mxu0 0.0
        %463 = vmatprep.subr.mxu0 0.0
        %464 = vmatpush1.msra.mxu0 0.0
        %465 = vmatprep.subr.mxu0 0.0
        %466 = vmatpush1.msra.mxu0 0.0
        %467 = vmatprep.subr.mxu0 0.0
        %468 = vmatpush1.msra.mxu0 0.0
        %469 = vmatprep.subr.mxu0 0.0
        %470 = vmatpush1.msra.mxu0 0.0
        %471 = vmatprep.subr.mxu0 0.0
        %472 = vmatpush1.msra.mxu0 0.0
        %473 = vmatprep.subr.mxu0 0.0
        %474 = vmatpush1.msra.mxu0 0.0
        %475 = vmatprep.subr.mxu0 0.0
        %476 = vmatpush1.msra.mxu0 0.0
        %477 = vmatprep.subr.mxu0 0.0
        %478 = vmatpush1.msra.mxu0 0.0
        %479 = vmatprep.subr.mxu0 0.0
        %480 = vmatpush1.msra.mxu0 0.0
        %481 = vmatprep.subr.mxu0 0.0
        %482 = vmatpush1.msra.mxu0 0.0
        %483 = vmatprep.subr.mxu0 0.0
        %484 = vmatpush1.msra.mxu0 0.0
        %485 = vmatprep.subr.mxu0 0.0
        %486 = vmatpush1.msra.mxu0 0.0
        %487 = vmatprep.subr.mxu0 0.0
        %488 = vmatpush1.msra.mxu0 0.0
        %489 = vmatprep.subr.mxu0 0.0
        %490 = vmatpush1.msra.mxu0 0.0
        %491 = vmatprep.mubr.f32.mxu0 0.0
        %492 = vmatmul.mubr.f32.gmra.mrb[0].mxu0 %v402
        %v493 = vpop.f32.mrb[0].mxu0
        %v494 = vadd.f32 %v425, %v493
        %v495 = vpop.f32.mrb[0].mxu0
        %496 = vmatprep.mubr.f32.mxu0 0.0
        %497 = vmatmul.mubr.f32.gmra.mrb[0].mxu0 %v403
        %v498 = vpop.f32.mrb[0].mxu0
        %v499 = vadd.f32 %v425, %v498
        %v500 = vpop.f32.mrb[0].mxu0
        %501 = vdwg.mxu0
        %v502 = vmul.f32 %v494, 0.5
        %v503 = vmul.f32 %v499, 0.5
        %v504 = vmul.f32 %v494, 0.70710677
        %v505 = vmul.f32 %v499, 0.70710677
        %v506 = verf.f32.pop %v504
        %v507 = verf.f32.pop %v505
        %v508 = vadd.f32 %v506, 1.0
        %v509 = vadd.f32 %v507, 1.0
        %v510 = vmul.f32 %v502, %v508
        %v511 = vmul.f32 %v503, %v509
        %v512 = vld [vmem:[#allocation3] sm:$0xff]
        %v513 = vld [vmem:[#allocation3 + $0x8] sm:$0xff]
        %v514 = vld [vmem:[%s342] sm:$0xff]
        %v515 = vld [vmem:[%s342 + $0x8] sm:$0xff]
        %v516 = vld [vmem:[%s342 + $0x10] sm:$0xff]
        %v517 = vld [vmem:[%s342 + $0x18] sm:$0xff]
        %v518 = vld [vmem:[%s342 + $0x20] sm:$0xff]
        %v519 = vld [vmem:[%s342 + $0x28] sm:$0xff]
        %v520 = vld [vmem:[%s342 + $0x30] sm:$0xff]
        %v521 = vld [vmem:[%s342 + $0x38] sm:$0xff]
        %v522 = vld [vmem:[%s342 + $0x40] sm:$0xff]
        %v523 = vld [vmem:[%s342 + $0x48] sm:$0xff]
        %v524 = vld [vmem:[%s342 + $0x50] sm:$0xff]
        %v525 = vld [vmem:[%s342 + $0x58] sm:$0xff]
        %v526 = vld [vmem:[%s342 + $0x60] sm:$0xff]
        %v527 = vld [vmem:[%s342 + $0x68] sm:$0xff]
        %v528 = vld [vmem:[%s342 + $0x70] sm:$0xff]
        %v529 = vld [vmem:[%s342 + $0x78] sm:$0xff]
        %530 = vmatprep.subr.mxu0 0.0
        %531 = vmatpush1.msra.mxu0 %v514
        %532 = vmatprep.subr.mxu0 0.0
        %533 = vmatpush1.msra.mxu0 %v515
        %534 = vmatprep.subr.mxu0 0.0
        %535 = vmatpush1.msra.mxu0 %v516
        %536 = vmatprep.subr.mxu0 0.0
        %537 = vmatpush1.msra.mxu0 %v517
        %538 = vmatprep.subr.mxu0 0.0
        %539 = vmatpush1.msra.mxu0 %v518
        %540 = vmatprep.subr.mxu0 0.0
        %541 = vmatpush1.msra.mxu0 %v519
        %542 = vmatprep.subr.mxu0 0.0
        %543 = vmatpush1.msra.mxu0 %v520
        %544 = vmatprep.subr.mxu0 0.0
        %545 = vmatpush1.msra.mxu0 %v521
        %546 = vmatprep.subr.mxu0 0.0
        %547 = vmatpush1.msra.mxu0 %v522
        %548 = vmatprep.subr.mxu0 0.0
        %549 = vmatpush1.msra.mxu0 %v523
        %550 = vmatprep.subr.mxu0 0.0
        %551 = vmatpush1.msra.mxu0 %v524
        %552 = vmatprep.subr.mxu0 0.0
        %553 = vmatpush1.msra.mxu0 %v525
        %554 = vmatprep.subr.mxu0 0.0
        %555 = vmatpush1.msra.mxu0 %v526
        %556 = vmatprep.subr.mxu0 0.0
        %557 = vmatpush1.msra.mxu0 %v527
        %558 = vmatprep.subr.mxu0 0.0
        %559 = vmatpush1.msra.mxu0 %v528
        %560 = vmatprep.subr.mxu0 0.0
        %561 = vmatpush1.msra.mxu0 %v529
        %562 = vmatprep.subr.mxu0 0.0
        %563 = vmatpush1.msra.mxu0 0.0
        %564 = vmatprep.subr.mxu0 0.0
        %565 = vmatpush1.msra.mxu0 0.0
        %566 = vmatprep.subr.mxu0 0.0
        %567 = vmatpush1.msra.mxu0 0.0
        %568 = vmatprep.subr.mxu0 0.0
        %569 = vmatpush1.msra.mxu0 0.0
        %570 = vmatprep.subr.mxu0 0.0
        %571 = vmatpush1.msra.mxu0 0.0
        %572 = vmatprep.subr.mxu0 0.0
        %573 = vmatpush1.msra.mxu0 0.0
        %574 = vmatprep.subr.mxu0 0.0
        %575 = vmatpush1.msra.mxu0 0.0
        %576 = vmatprep.subr.mxu0 0.0
        %577 = vmatpush1.msra.mxu0 0.0
        %578 = vmatprep.subr.mxu0 0.0
        %579 = vmatpush1.msra.mxu0 0.0
        %580 = vmatprep.subr.mxu0 0.0
        %581 = vmatpush1.msra.mxu0 0.0
        %582 = vmatprep.subr.mxu0 0.0
        %583 = vmatpush1.msra.mxu0 0.0
        %584 = vmatprep.subr.mxu0 0.0
        %585 = vmatpush1.msra.mxu0 0.0
        %586 = vmatprep.subr.mxu0 0.0
        %587 = vmatpush1.msra.mxu0 0.0
        %588 = vmatprep.subr.mxu0 0.0
        %589 = vmatpush1.msra.mxu0 0.0
        %590 = vmatprep.subr.mxu0 0.0
        %591 = vmatpush1.msra.mxu0 0.0
        %592 = vmatprep.subr.mxu0 0.0
        %593 = vmatpush1.msra.mxu0 0.0
        %594 = vmatprep.mubr.f32.mxu0 0.0
        %595 = vmatmul.mubr.f32.gmra.mrb[0].mxu0 %v510
        %v596 = vpop.f32.mrb[0].mxu0
        %v597 = vadd.f32 0.0, %v596
        %v598 = vpop.f32.mrb[0].mxu0
        %599 = vmatprep.mubr.f32.mxu0 0.0
        %600 = vmatmul.mubr.f32.gmra.mrb[0].mxu0 %v511
        %v601 = vpop.f32.mrb[0].mxu0
        %v602 = vadd.f32 0.0, %v601
        %v603 = vpop.f32.mrb[0].mxu0
        %604 = vdwg.mxu0
        %v605 = vadd.f32 %v512, %v597
        %v606 = vadd.f32 %v513, %v602
        %607 = vst [vmem:[#allocation3] sm:$0xff] %v605
        %608 = vst [vmem:[#allocation3 + $0x8] sm:$0xff] %v606
        // Predicated region
        $region53: #{transformer_block.3} parent=47 // pred_check
          %p609 = pneg %p345
        $region54: #{transformer_block.3} parent=47 // pred_check_branch
          %611 = sbr.rel (%p609) target = $region56
        $region55: #{transformer_block.3} parent=47 // pred_region
          %v612 = vld [vmem:[%s329] sm:$0xff]
          %v613 = vld [vmem:[%s329 + $0x8] sm:$0xff]
          %v614 = vld [vmem:[#allocation3] sm:$0xff]
          %v615 = vld [vmem:[#allocation3 + $0x8] sm:$0xff]
          %v616 = vadd.f32 %v612, %v614
          %v617 = vadd.f32 %v613, %v615
          %v618 = vld [vmem:[%s6] sm:$0x1]
          %v620 = vlaneseq
          %v621 = vshrl.u32 %v620, 7
          %v622 = vsub.s32 0, %v621
          %v623 = vrot.slane %v618, %v622
          %v625 = vadd.f32 %v616, %v623
          %v626 = vadd.f32 %v617, %v623
          %627 = vst [vmem:[%s324] sm:$0xff] %v625
          %628 = vst [vmem:[%s324 + $0x8] sm:$0xff] %v626
        $region56: #{transformer_block.3} parent=47 // pred_fallthru
          _
        %s629 = sand.u32 %s208, 1
        %s630 = scalar_lea.sflag [#allocation5], %s629
        %s631 = sand.u32 %s208, 1
        %s632 = smul.addr %s631, 16
        %s633 = scalar_lea.vmem [#allocation4], %s632
        // Predicated region
        $region57: #{transformer_block.3} parent=47 // pred_check
          %p634 = pneg %p218
        $region58: #{transformer_block.3} parent=47 // pred_check_branch
          %636 = sbr.rel (%p634) target = $region60
        $region59: #{transformer_block.3} parent=47 // pred_region
          %s637 = smul.u32 2, %s25
          %s639 = ssub.s32 256, 256
          %640 = vsyncadd %s630, %s639
          %s641 = smul.addr %s637, 128
          %s642 = scalar_lea.hbm %s7, %s641
          %s643 = sshll.u32 %s633, 4
          %s644 = int_to_ptr.vmem [resolvable:$true] %s643
          %649 = dma.vmem_to_hbm [thread:$0]  %s644, 256, %s642, %s630, 128, 128, 8
        $region60: #{transformer_block.3} parent=47 // pred_fallthru
          _
      $region48: #{transformer_block.3} parent=5 // pred_fallthru
        _
      %p650 = scmp.le.s32.totalorder 2, %s16
      // Predicated region
      $region61: #{transformer_block.3} parent=5 // pred_check
        %p651 = pneg %p650
      $region62: #{transformer_block.3} parent=5 // pred_check_branch
        %653 = sbr.rel (%p651) target = $region64
      $region63: #{transformer_block.3} parent=5 // pred_region
        %s654 = ssub.s32 %s16, 2
        // Predicated region
        $region65: #{transformer_block.3} parent=63 // pred_check
          %p655 = pneg %p224
        $region66: #{transformer_block.3} parent=63 // pred_check_branch
          %657 = sbr.rel (%p655) target = $region68
        $region67: #{transformer_block.3} parent=63 // pred_region
          %s658 = sand.u32 %s209, 1
          %s659 = scalar_lea.sflag [#allocation5], %s658
          %s660 = sand.u32 %s209, 1
          %s661 = smul.addr %s660, 16
          %s662 = scalar_lea.vmem [#allocation4], %s661
          %663 = dma.done %s659, 256
        $region68: #{transformer_block.3} parent=63 // pred_fallthru
          _
      $region64: #{transformer_block.3} parent=5 // pred_fallthru
        _
    $region6: #{transformer_block.3} parent=1 // loop_footer
      %s20 = sadd.s32 1, %s16
    $region7: #{transformer_block.3} parent=1 // loop_footer_branch
      %15 = sbr.rel target = $region3
    $region8: #{transformer_block.3} parent=1 // loop_exit
      _
    %664 = vsyncpa [#allocation5], 1
    %s665 = scalar_lea.sflag [#allocation5], 1
    %666 = vsyncpa %s665, 1

// kernel: transformer_block.2
$region0: #{transformer_block.2}
  #allocation0 [shape = 'u32[]', space=smem, size = 0x4, offset = 0x4, fixed_abs, tag = 'smem constant byte address 0x4 - core index']
  #allocation1 [shape = 'u32[144,128]{1,0:T(1,128)}', space=vmem, size = 0x12000, scoped, tag = 'internal scratch']
  %s0 = inlined_call_operand.vmem [shape: f32[2,16,128], index: 0, kind: input, shape index: {}, may-alias: {0,1}]
  %s1 = inlined_call_operand.vmem [shape: f32[2,16,128], index: 1, kind: input, shape index: {}, may-alias: {0,1}]
  %s2 = inlined_call_operand.vmem [shape: f32[1,128], index: 2, kind: input, shape index: {}]
  %s3 = inlined_call_operand.vmem [shape: f32[1,128], index: 3, kind: input, shape index: {}]
  %s4 = inlined_call_operand.vmem [shape: f32[128,512], index: 4, kind: input, shape index: {}]
  %s5 = inlined_call_operand.vmem [shape: f32[128,512], index: 5, kind: input, shape index: {}]
  %s6 = inlined_call_operand.vmem [shape: f32[128,512], index: 6, kind: input, shape index: {}]
  %s7 = inlined_call_operand.vmem [shape: f32[512,128], index: 7, kind: input, shape index: {}]
  %s8 = inlined_call_operand.vmem [shape: f32[2,16,128], index: 8, kind: output, shape index: {}]
  %s9 = sld [smem:[#allocation0]]
  $region65: #{transformer_block.2} parent=0
    _
  %s11 = ssub.s32 1, %s9
  %s12 = scalar_select 0, %s11, %s9
  loop: start=0, step=1, limit=4
  $region2: #{transformer_block.2} parent=0 // loop_pre_header
    _
  $region3: #{transformer_block.2} parent=0 // loop_header
    %s14 = sphi 0, %s18
    %p15 = scmp.ge.s32.totalorder %s14, 4
    %s21 = sphi 0, %s33
    %s22 = sphi 0, %s29
    %s23 = sphi 0, %s21
    %s24 = sphi 0, %s22
    %s25 = sphi 0, %s23
    %s26 = sphi 0, %s24
    %s38 = sphi 0, %s40
    %s41 = sphi 0, %s38
    %s42 = sphi 0, %s41
    %s58 = sphi 0, %s42
    %s64 = sphi 0, %s66
    %s67 = sphi 0, %s64
    %s68 = sphi 0, %s67
    %s84 = sphi 0, %s68
    %s88 = sphi 0, %s88
    %s90 = sphi 0, %s88
    %s91 = sphi 0, %s90
    %s105 = sphi 0, %s91
    %s109 = sphi 0, %s109
    %s111 = sphi 0, %s109
    %s112 = sphi 0, %s111
    %s126 = sphi 0, %s112
    %s130 = sphi 0, %s130
    %s132 = sphi 0, %s130
    %s133 = sphi 0, %s132
    %s147 = sphi 0, %s133
    %s151 = sphi 0, %s151
    %s153 = sphi 0, %s151
    %s154 = sphi 0, %s153
    %s168 = sphi 0, %s154
    %s172 = sphi 0, %s172
    %s174 = sphi 0, %s172
    %s175 = sphi 0, %s174
    %s189 = sphi 0, %s175
    %s193 = sphi 0, %s193
    %s195 = sphi 0, %s193
    %s196 = sphi 0, %s195
    %s210 = sphi 0, %s196
    %s218 = sphi 0, %s220
    %s221 = sphi 0, %s218
    %s222 = sphi 0, %s221
    %s238 = sphi 0, %s222
  $region4: #{transformer_block.2} parent=0 // loop_header_branch
    %17 = sbr.rel (%p15) target = $region8
  $region5: #{transformer_block.2} parent=0 // loop_body
    %s19 = ssub.s32 %s14, 1
    %s20 = ssub.s32 %s14, 2
    %s27 = sadd.s32 1, %s22
    %p28 = scmp.ge.s32.totalorder %s27, 1
    %s29 = scalar_select %p28, 0, %s27
    %s30 = sadd.s32 1, %s21
    %s31 = scalar_select %p28, %s30, %s21
    %p32 = scmp.ge.s32.totalorder %s31, 2
    %s33 = scalar_select %p32, 0, %s31
    %s34 = ssub.s32 %s21, %s33
    %s35 = ssub.s32 %s22, %s29
    %s36 = sor.u32 %s34, %s35
    %p37 = scmp.eq.s32.totalorder %s36, 0
    %s39 = sadd.s32 %s38, 1
    %s40 = scalar_select %p37, %s38, %s39
    %p43 = pneg %p37
    %p44 = scmp.eq.s32.totalorder %s14, 1
    %p45 = por %p43, %p44
    %p46 = scmp.ne.s32.totalorder %s38, %s41
    %p47 = scmp.eq.s32.totalorder %s14, 0
    %p48 = por %p46, %p47
    %p49 = scmp.ne.s32.totalorder %s38, %s41
    %p50 = scmp.eq.s32.totalorder %s19, 1
    %p51 = por %p49, %p50
    %p52 = scmp.ne.s32.totalorder %s41, %s42
    %p53 = scmp.eq.s32.totalorder %s19, 0
    %p54 = por %p52, %p53
    %p55 = scmp.ne.s32.totalorder %s41, %s42
    %p56 = scmp.eq.s32.totalorder %s20, 1
    %p57 = por %p55, %p56
    %p59 = scmp.ne.s32.totalorder %s42, %s58
    %p60 = scmp.eq.s32.totalorder %s20, 0
    %p61 = por %p59, %p60
    %s62 = ssub.s32 %s21, %s33
    %p63 = scmp.eq.s32.totalorder %s62, 0
    %s65 = sadd.s32 %s64, 1
    %s66 = scalar_select %p63, %s64, %s65
    %p69 = pneg %p63
    %p70 = scmp.eq.s32.totalorder %s14, 1
    %p71 = por %p69, %p70
    %p72 = scmp.ne.s32.totalorder %s64, %s67
    %p73 = scmp.eq.s32.totalorder %s14, 0
    %p74 = por %p72, %p73
    %p75 = scmp.ne.s32.totalorder %s64, %s67
    %p76 = scmp.eq.s32.totalorder %s19, 1
    %p77 = por %p75, %p76
    %p78 = scmp.ne.s32.totalorder %s67, %s68
    %p79 = scmp.eq.s32.totalorder %s19, 0
    %p80 = por %p78, %p79
    %p81 = scmp.ne.s32.totalorder %s67, %s68
    %p82 = scmp.eq.s32.totalorder %s20, 1
    %p83 = por %p81, %p82
    %p85 = scmp.ne.s32.totalorder %s68, %s84
    %p86 = scmp.eq.s32.totalorder %s20, 0
    %p87 = por %p85, %p86
    %s89 = sadd.s32 %s88, 1
    %p92 = scmp.eq.s32.totalorder %s14, 1
    %p93 = scmp.ne.s32.totalorder %s88, %s90
    %p94 = scmp.eq.s32.totalorder %s14, 0
    %p95 = por %p93, %p94
    %p96 = scmp.ne.s32.totalorder %s88, %s90
    %p97 = scmp.eq.s32.totalorder %s19, 1
    %p98 = por %p96, %p97
    %p99 = scmp.ne.s32.totalorder %s90, %s91
    %p100 = scmp.eq.s32.totalorder %s19, 0
    %p101 = por %p99, %p100
    %p102 = scmp.ne.s32.totalorder %s90, %s91
    %p103 = scmp.eq.s32.totalorder %s20, 1
    %p104 = por %p102, %p103
    %p106 = scmp.ne.s32.totalorder %s91, %s105
    %p107 = scmp.eq.s32.totalorder %s20, 0
    %p108 = por %p106, %p107
    %s110 = sadd.s32 %s109, 1
    %p113 = scmp.eq.s32.totalorder %s14, 1
    %p114 = scmp.ne.s32.totalorder %s109, %s111
    %p115 = scmp.eq.s32.totalorder %s14, 0
    %p116 = por %p114, %p115
    %p117 = scmp.ne.s32.totalorder %s109, %s111
    %p118 = scmp.eq.s32.totalorder %s19, 1
    %p119 = por %p117, %p118
    %p120 = scmp.ne.s32.totalorder %s111, %s112
    %p121 = scmp.eq.s32.totalorder %s19, 0
    %p122 = por %p120, %p121
    %p123 = scmp.ne.s32.totalorder %s111, %s112
    %p124 = scmp.eq.s32.totalorder %s20, 1
    %p125 = por %p123, %p124
    %p127 = scmp.ne.s32.totalorder %s112, %s126
    %p128 = scmp.eq.s32.totalorder %s20, 0
    %p129 = por %p127, %p128
    %s131 = sadd.s32 %s130, 1
    %p134 = scmp.eq.s32.totalorder %s14, 1
    %p135 = scmp.ne.s32.totalorder %s130, %s132
    %p136 = scmp.eq.s32.totalorder %s14, 0
    %p137 = por %p135, %p136
    %p138 = scmp.ne.s32.totalorder %s130, %s132
    %p139 = scmp.eq.s32.totalorder %s19, 1
    %p140 = por %p138, %p139
    %p141 = scmp.ne.s32.totalorder %s132, %s133
    %p142 = scmp.eq.s32.totalorder %s19, 0
    %p143 = por %p141, %p142
    %p144 = scmp.ne.s32.totalorder %s132, %s133
    %p145 = scmp.eq.s32.totalorder %s20, 1
    %p146 = por %p144, %p145
    %p148 = scmp.ne.s32.totalorder %s133, %s147
    %p149 = scmp.eq.s32.totalorder %s20, 0
    %p150 = por %p148, %p149
    %s152 = sadd.s32 %s151, 1
    %p155 = scmp.eq.s32.totalorder %s14, 1
    %p156 = scmp.ne.s32.totalorder %s151, %s153
    %p157 = scmp.eq.s32.totalorder %s14, 0
    %p158 = por %p156, %p157
    %p159 = scmp.ne.s32.totalorder %s151, %s153
    %p160 = scmp.eq.s32.totalorder %s19, 1
    %p161 = por %p159, %p160
    %p162 = scmp.ne.s32.totalorder %s153, %s154
    %p163 = scmp.eq.s32.totalorder %s19, 0
    %p164 = por %p162, %p163
    %p165 = scmp.ne.s32.totalorder %s153, %s154
    %p166 = scmp.eq.s32.totalorder %s20, 1
    %p167 = por %p165, %p166
    %p169 = scmp.ne.s32.totalorder %s154, %s168
    %p170 = scmp.eq.s32.totalorder %s20, 0
    %p171 = por %p169, %p170
    %s173 = sadd.s32 %s172, 1
    %p176 = scmp.eq.s32.totalorder %s14, 1
    %p177 = scmp.ne.s32.totalorder %s172, %s174
    %p178 = scmp.eq.s32.totalorder %s14, 0
    %p179 = por %p177, %p178
    %p180 = scmp.ne.s32.totalorder %s172, %s174
    %p181 = scmp.eq.s32.totalorder %s19, 1
    %p182 = por %p180, %p181
    %p183 = scmp.ne.s32.totalorder %s174, %s175
    %p184 = scmp.eq.s32.totalorder %s19, 0
    %p185 = por %p183, %p184
    %p186 = scmp.ne.s32.totalorder %s174, %s175
    %p187 = scmp.eq.s32.totalorder %s20, 1
    %p188 = por %p186, %p187
    %p190 = scmp.ne.s32.totalorder %s175, %s189
    %p191 = scmp.eq.s32.totalorder %s20, 0
    %p192 = por %p190, %p191
    %s194 = sadd.s32 %s193, 1
    %p197 = scmp.eq.s32.totalorder %s14, 1
    %p198 = scmp.ne.s32.totalorder %s193, %s195
    %p199 = scmp.eq.s32.totalorder %s14, 0
    %p200 = por %p198, %p199
    %p201 = scmp.ne.s32.totalorder %s193, %s195
    %p202 = scmp.eq.s32.totalorder %s19, 1
    %p203 = por %p201, %p202
    %p204 = scmp.ne.s32.totalorder %s195, %s196
    %p205 = scmp.eq.s32.totalorder %s19, 0
    %p206 = por %p204, %p205
    %p207 = scmp.ne.s32.totalorder %s195, %s196
    %p208 = scmp.eq.s32.totalorder %s20, 1
    %p209 = por %p207, %p208
    %p211 = scmp.ne.s32.totalorder %s196, %s210
    %p212 = scmp.eq.s32.totalorder %s20, 0
    %p213 = por %p211, %p212
    %s214 = ssub.s32 %s21, %s33
    %s215 = ssub.s32 %s22, %s29
    %s216 = sor.u32 %s214, %s215
    %p217 = scmp.eq.s32.totalorder %s216, 0
    %s219 = sadd.s32 %s218, 1
    %s220 = scalar_select %p217, %s218, %s219
    %p223 = pneg %p217
    %p224 = scmp.eq.s32.totalorder %s14, 1
    %p225 = por %p223, %p224
    %p226 = scmp.ne.s32.totalorder %s218, %s221
    %p227 = scmp.eq.s32.totalorder %s14, 0
    %p228 = por %p226, %p227
    %p229 = scmp.ne.s32.totalorder %s218, %s221
    %p230 = scmp.eq.s32.totalorder %s19, 1
    %p231 = por %p229, %p230
    %p232 = scmp.ne.s32.totalorder %s221, %s222
    %p233 = scmp.eq.s32.totalorder %s19, 0
    %p234 = por %p232, %p233
    %p235 = scmp.ne.s32.totalorder %s221, %s222
    %p236 = scmp.eq.s32.totalorder %s20, 1
    %p237 = por %p235, %p236
    %p239 = scmp.ne.s32.totalorder %s222, %s238
    %p240 = scmp.eq.s32.totalorder %s20, 0
    %p241 = por %p239, %p240
    %p242 = scmp.le.s32.totalorder 1, %s14
    %p243 = scmp.lt.s32.totalorder %s14, 3
    %p244 = pnand %p242, %p243
    %p245 = pneg %p244
    // Predicated region
    $region9: #{transformer_block.2} parent=5 // pred_check
      _
    $region10: #{transformer_block.2} parent=5 // pred_check_branch
      %247 = sbr.rel (%p244) target = $region12
    $region11: #{transformer_block.2} parent=5 // pred_region
      %s248 = ssub.s32 %s14, 1
      // Predicated region
      $region13: #{transformer_block.2} parent=11 // pred_check
        %p249 = pneg %p101
      $region14: #{transformer_block.2} parent=11 // pred_check_branch
        %251 = sbr.rel (%p249) target = $region16
      $region15: #{transformer_block.2} parent=11 // pred_region
        _
      $region16: #{transformer_block.2} parent=11 // pred_fallthru
        _
      // Predicated region
      $region17: #{transformer_block.2} parent=11 // pred_check
        %p252 = pneg %p122
      $region18: #{transformer_block.2} parent=11 // pred_check_branch
        %254 = sbr.rel (%p252) target = $region20
      $region19: #{transformer_block.2} parent=11 // pred_region
        _
      $region20: #{transformer_block.2} parent=11 // pred_fallthru
        _
      // Predicated region
      $region21: #{transformer_block.2} parent=11 // pred_check
        %p255 = pneg %p143
      $region22: #{transformer_block.2} parent=11 // pred_check_branch
        %257 = sbr.rel (%p255) target = $region24
      $region23: #{transformer_block.2} parent=11 // pred_region
        _
      $region24: #{transformer_block.2} parent=11 // pred_fallthru
        _
      // Predicated region
      $region25: #{transformer_block.2} parent=11 // pred_check
        %p258 = pneg %p164
      $region26: #{transformer_block.2} parent=11 // pred_check_branch
        %260 = sbr.rel (%p258) target = $region28
      $region27: #{transformer_block.2} parent=11 // pred_region
        _
      $region28: #{transformer_block.2} parent=11 // pred_fallthru
        _
      // Predicated region
      $region29: #{transformer_block.2} parent=11 // pred_check
        %p261 = pneg %p185
      $region30: #{transformer_block.2} parent=11 // pred_check_branch
        %263 = sbr.rel (%p261) target = $region32
      $region31: #{transformer_block.2} parent=11 // pred_region
        _
      $region32: #{transformer_block.2} parent=11 // pred_fallthru
        _
      // Predicated region
      $region33: #{transformer_block.2} parent=11 // pred_check
        %p264 = pneg %p206
      $region34: #{transformer_block.2} parent=11 // pred_check_branch
        %266 = sbr.rel (%p264) target = $region36
      $region35: #{transformer_block.2} parent=11 // pred_region
        _
      $region36: #{transformer_block.2} parent=11 // pred_fallthru
        _
    $region12: #{transformer_block.2} parent=5 // pred_fallthru
      _
    %p267 = scmp.lt.s32.totalorder %s14, 2
    // Predicated region
    $region37: #{transformer_block.2} parent=5 // pred_check
      %p268 = pneg %p267
    $region38: #{transformer_block.2} parent=5 // pred_check_branch
      %270 = sbr.rel (%p268) target = $region40
    $region39: #{transformer_block.2} parent=5 // pred_region
      // Predicated region
      $region41: #{transformer_block.2} parent=39 // pred_check
        %p271 = pneg %p48
      $region42: #{transformer_block.2} parent=39 // pred_check_branch
        %273 = sbr.rel (%p271) target = $region44
      $region43: #{transformer_block.2} parent=39 // pred_region
        %s274 = smul.u32 2, %s22
        %p275 = scmp.lt.s32.totalorder %s21, 1
        %s276 = scalar_select %p275, %s21, 1
        %p277 = scmp.lt.s32.totalorder %s274, 1
        %s278 = scalar_select %p277, %s274, 1
        %s279 = smul.addr %s276, 2
        %s280 = sadd.s32 %s278, %s279
        %s281 = smul.addr %s280, 8
        %s282 = scalar_lea.vmem %s0, %s281
        %s283 = smul.u32 2, %s22
      $region44: #{transformer_block.2} parent=39 // pred_fallthru
        _
      // Predicated region
      $region45: #{transformer_block.2} parent=39 // pred_check
        %p284 = pneg %p74
      $region46: #{transformer_block.2} parent=39 // pred_check_branch
        %286 = sbr.rel (%p284) target = $region48
      $region47: #{transformer_block.2} parent=39 // pred_region
        %p287 = scmp.lt.s32.totalorder %s21, 1
        %s288 = scalar_select %p287, %s21, 1
        %s289 = smul.addr %s288, 2
        %s290 = smul.addr %s289, 8
        %s291 = scalar_lea.vmem %s1, %s290
      $region48: #{transformer_block.2} parent=39 // pred_fallthru
        _
    $region40: #{transformer_block.2} parent=5 // pred_fallthru
      _
    %p292 = scmp.le.s32.totalorder 1, %s14
    %p293 = scmp.lt.s32.totalorder %s14, 3
    %p294 = pnand %p292, %p293
    %p295 = pneg %p294
    // Predicated region
    $region49: #{transformer_block.2} parent=5 // pred_check
      _
    $region50: #{transformer_block.2} parent=5 // pred_check_branch
      %297 = sbr.rel (%p294) target = $region52
    $region51: #{transformer_block.2} parent=5 // pred_region
      %s298 = ssub.s32 %s14, 1
      %s299 = smul.u32 2, %s24
      %p300 = scmp.lt.s32.totalorder %s23, 1
      %s301 = scalar_select %p300, %s23, 1
      %p302 = scmp.lt.s32.totalorder %s299, 1
      %s303 = scalar_select %p302, %s299, 1
      %s304 = smul.addr %s301, 2
      %s305 = sadd.s32 %s303, %s304
      %s306 = smul.addr %s305, 8
      %s307 = scalar_lea.vmem %s0, %s306
      %p308 = pneg %p54
      %p309 = pneg %p51
      %p310 = scmp.lt.s32.totalorder %s23, 1
      %s311 = scalar_select %p310, %s23, 1
      %s312 = smul.addr %s311, 2
      %s313 = smul.addr %s312, 8
      %s314 = scalar_lea.vmem %s1, %s313
      %p315 = pneg %p80
      %p316 = pneg %p77
      %p317 = pneg %p101
      %p318 = pneg %p98
      %p319 = pneg %p122
      %p320 = pneg %p119
      %p321 = pneg %p143
      %p322 = pneg %p140
      %p323 = pneg %p164
      %p324 = pneg %p161
      %p325 = pneg %p185
      %p326 = pneg %p182
      %p327 = pneg %p206
      %p328 = pneg %p203
      %p329 = pneg %p234
      %p330 = pneg %p231
      %s331 = smul.u32 2, %s24
      %p332 = scmp.lt.s32.totalorder %s23, 1
      %s333 = scalar_select %p332, %s23, 1
      %p334 = scmp.lt.s32.totalorder %s331, 1
      %s335 = scalar_select %p334, %s331, 1
      %s336 = smul.addr %s333, 2
      %s337 = sadd.s32 %s335, %s336
      %s338 = smul.addr %s337, 8
      %s339 = scalar_lea.vmem %s8, %s338
      %s340 = smul.u32 2, %s24
      %p341 = scmp.lt.s32.totalorder %s23, 1
      %s342 = scalar_select %p341, %s23, 1
      %p343 = scmp.lt.s32.totalorder %s340, 1
      %s344 = scalar_select %p343, %s340, 1
      %s345 = smul.addr %s342, 2
      %s346 = sadd.s32 %s344, %s345
      %s347 = smul.addr %s346, 8
      %s348 = scalar_lea.vmem %s0, %s347
      %s349 = smul.u32 2, %s24
      %p350 = scmp.lt.s32.totalorder %s23, 1
      %s351 = scalar_select %p350, %s23, 1
      %s352 = smul.addr %s351, 2
      %s353 = smul.addr %s352, 8
      %s354 = scalar_lea.vmem %s1, %s353
      %s355 = smul.u32 2, %s24
      %p356 = scmp.lt.s32.totalorder %s23, 1
      %s357 = scalar_select %p356, %s23, 1
      %p358 = scmp.lt.s32.totalorder %s355, 1
      %s359 = scalar_select %p358, %s355, 1
      %s360 = smul.addr %s357, 2
      %s361 = sadd.s32 %s359, %s360
      %s362 = smul.addr %s361, 8
      %s363 = scalar_lea.vmem %s8, %s362
      %s364 = smul.u32 2, %s24
      %v365 = vld [vmem:[%s348] sm:$0xff]
      %v366 = vld [vmem:[%s348 + $0x8] sm:$0xff]
      %v367 = vld [vmem:[%s354] sm:$0xff]
      %v368 = vld [vmem:[%s354 + $0x8] sm:$0xff]
      %v369 = vld [vmem:[%s2] sm:$0x1]
      %v370 = vld [vmem:[%s3] sm:$0x1]
      %v371 = vlaneseq
      %v372 = vand.u32 %v371, 127
      %vm373 = vcmp.lt.s32.totalorder %v372, 16
      %v374 = vsel %vm373, 1, 0
      %v375 = vcvt.s32.f32 %v374
      %376 = vadd.xlane.f32.xlu0 %v365
      %v377 = vpop.xlane.xlu0 %376
      %378 = vadd.xlane.f32.xlu0 %v366
      %v379 = vpop.xlane.xlu0 %378
      %v380 = vmul.f32 %v377, 0.0625
      %v381 = vmul.f32 %v379, 0.0625
      %v382 = vsub.f32 %v365, %v380
      %v383 = vsub.f32 %v366, %v381
      %v384 = vmul.f32 %v382, %v375
      %v385 = vmul.f32 %v383, %v375
      %v386 = vmul.f32 %v384, %v384
      %v387 = vmul.f32 %v385, %v385
      %388 = vadd.xlane.f32.xlu0 %v386
      %v389 = vpop.xlane.xlu0 %388
      %390 = vadd.xlane.f32.xlu0 %v387
      %v391 = vpop.xlane.xlu0 %390
      %v392 = vmul.f32 %v389, 0.0625
      %v393 = vmul.f32 %v391, 0.0625
      %v394 = vadd.f32 %v392, 1e-05
      %v395 = vadd.f32 %v393, 1e-05
      %v396 = vrsqrt.pop %v394
      %v397 = vrsqrt.pop %v395
      %v398 = vmul.f32 %v384, %v396
      %v399 = vmul.f32 %v385, %v397
      %v401 = vlaneseq
      %v402 = vshrl.u32 %v401, 7
      %v403 = vsub.s32 0, %v402
      %v404 = vrot.slane %v369, %v403
      %v406 = vmul.f32 %v398, %v404
      %v407 = vmul.f32 %v399, %v404
      %v409 = vlaneseq
      %v410 = vshrl.u32 %v409, 7
      %v411 = vsub.s32 0, %v410
      %v412 = vrot.slane %v370, %v411
      %v414 = vadd.f32 %v406, %v412
      %v415 = vadd.f32 %v407, %v412
      %416 = vadd.xlane.f32.xlu0 %v367
      %v417 = vpop.xlane.xlu0 %416
      %418 = vadd.xlane.f32.xlu0 %v368
      %v419 = vpop.xlane.xlu0 %418
      %v420 = vmul.f32 %v417, 0.0625
      %v421 = vmul.f32 %v419, 0.0625
      %v422 = vsub.f32 %v367, %v420
      %v423 = vsub.f32 %v368, %v421
      %v424 = vmul.f32 %v422, %v375
      %v425 = vmul.f32 %v423, %v375
      %v426 = vmul.f32 %v424, %v424
      %v427 = vmul.f32 %v425, %v425
      %428 = vadd.xlane.f32.xlu0 %v426
      %v429 = vpop.xlane.xlu0 %428
      %430 = vadd.xlane.f32.xlu0 %v427
      %v431 = vpop.xlane.xlu0 %430
      %v432 = vmul.f32 %v429, 0.0625
      %v433 = vmul.f32 %v431, 0.0625
      %v434 = vadd.f32 %v432, 1e-05
      %v435 = vadd.f32 %v433, 1e-05
      %v436 = vrsqrt.pop %v434
      %v437 = vrsqrt.pop %v435
      %v438 = vmul.f32 %v424, %v436
      %v439 = vmul.f32 %v425, %v437
      %v440 = vmul.f32 %v438, %v404
      %v441 = vmul.f32 %v439, %v404
      %v442 = vadd.f32 %v440, %v412
      %v443 = vadd.f32 %v441, %v412
      %v444 = vld [vmem:[%s4] sm:$0xff]
      %v445 = vld [vmem:[%s4 + $0x8] sm:$0xff]
      %v446 = vld [vmem:[%s4 + $0x10] sm:$0xff]
      %v447 = vld [vmem:[%s4 + $0x18] sm:$0xff]
      %v448 = vld [vmem:[%s4 + $0x20] sm:$0xff]
      %v449 = vld [vmem:[%s4 + $0x28] sm:$0xff]
      %v450 = vld [vmem:[%s4 + $0x30] sm:$0xff]
      %v451 = vld [vmem:[%s4 + $0x38] sm:$0xff]
      %v452 = vld [vmem:[%s4 + $0x40] sm:$0xff]
      %v453 = vld [vmem:[%s4 + $0x48] sm:$0xff]
      %v454 = vld [vmem:[%s4 + $0x50] sm:$0xff]
      %v455 = vld [vmem:[%s4 + $0x58] sm:$0xff]
      %v456 = vld [vmem:[%s4 + $0x60] sm:$0xff]
      %v457 = vld [vmem:[%s4 + $0x68] sm:$0xff]
      %v458 = vld [vmem:[%s4 + $0x70] sm:$0xff]
      %v459 = vld [vmem:[%s4 + $0x78] sm:$0xff]
      %v460 = vld [vmem:[%s4 + $0x80] sm:$0xff]
      %v461 = vld [vmem:[%s4 + $0x88] sm:$0xff]
      %v462 = vld [vmem:[%s4 + $0x90] sm:$0xff]
      %v463 = vld [vmem:[%s4 + $0x98] sm:$0xff]
      %v464 = vld [vmem:[%s4 + $0xa0] sm:$0xff]
      %v465 = vld [vmem:[%s4 + $0xa8] sm:$0xff]
      %v466 = vld [vmem:[%s4 + $0xb0] sm:$0xff]
      %v467 = vld [vmem:[%s4 + $0xb8] sm:$0xff]
      %v468 = vld [vmem:[%s4 + $0xc0] sm:$0xff]
      %v469 = vld [vmem:[%s4 + $0xc8] sm:$0xff]
      %v470 = vld [vmem:[%s4 + $0xd0] sm:$0xff]
      %v471 = vld [vmem:[%s4 + $0xd8] sm:$0xff]
      %v472 = vld [vmem:[%s4 + $0xe0] sm:$0xff]
      %v473 = vld [vmem:[%s4 + $0xe8] sm:$0xff]
      %v474 = vld [vmem:[%s4 + $0xf0] sm:$0xff]
      %v475 = vld [vmem:[%s4 + $0xf8] sm:$0xff]
      %v476 = vld [vmem:[%s4 + $0x100] sm:$0xff]
      %v477 = vld [vmem:[%s4 + $0x108] sm:$0xff]
      %v478 = vld [vmem:[%s4 + $0x110] sm:$0xff]
      %v479 = vld [vmem:[%s4 + $0x118] sm:$0xff]
      %v480 = vld [vmem:[%s4 + $0x120] sm:$0xff]
      %v481 = vld [vmem:[%s4 + $0x128] sm:$0xff]
      %v482 = vld [vmem:[%s4 + $0x130] sm:$0xff]
      %v483 = vld [vmem:[%s4 + $0x138] sm:$0xff]
      %v484 = vld [vmem:[%s4 + $0x140] sm:$0xff]
      %v485 = vld [vmem:[%s4 + $0x148] sm:$0xff]
      %v486 = vld [vmem:[%s4 + $0x150] sm:$0xff]
      %v487 = vld [vmem:[%s4 + $0x158] sm:$0xff]
      %v488 = vld [vmem:[%s4 + $0x160] sm:$0xff]
      %v489 = vld [vmem:[%s4 + $0x168] sm:$0xff]
      %v490 = vld [vmem:[%s4 + $0x170] sm:$0xff]
      %v491 = vld [vmem:[%s4 + $0x178] sm:$0xff]
      %v492 = vld [vmem:[%s4 + $0x180] sm:$0xff]
      %v493 = vld [vmem:[%s4 + $0x188] sm:$0xff]
      %v494 = vld [vmem:[%s4 + $0x190] sm:$0xff]
      %v495 = vld [vmem:[%s4 + $0x198] sm:$0xff]
      %v496 = vld [vmem:[%s4 + $0x1a0] sm:$0xff]
      %v497 = vld [vmem:[%s4 + $0x1a8] sm:$0xff]
      %v498 = vld [vmem:[%s4 + $0x1b0] sm:$0xff]
      %v499 = vld [vmem:[%s4 + $0x1b8] sm:$0xff]
      %v500 = vld [vmem:[%s4 + $0x1c0] sm:$0xff]
      %v501 = vld [vmem:[%s4 + $0x1c8] sm:$0xff]
      %v502 = vld [vmem:[%s4 + $0x1d0] sm:$0xff]
      %v503 = vld [vmem:[%s4 + $0x1d8] sm:$0xff]
      %v504 = vld [vmem:[%s4 + $0x1e0] sm:$0xff]
      %v505 = vld [vmem:[%s4 + $0x1e8] sm:$0xff]
      %v506 = vld [vmem:[%s4 + $0x1f0] sm:$0xff]
      %v507 = vld [vmem:[%s4 + $0x1f8] sm:$0xff]
      %508 = vmatprep.subr.mxu0 %v445
      %509 = vmatpush1.msra.mxu0 %v444
      %510 = vmatprep.subr.mxu0 %v449
      %511 = vmatpush1.msra.mxu0 %v448
      %512 = vmatprep.subr.mxu0 %v453
      %513 = vmatpush1.msra.mxu0 %v452
      %514 = vmatprep.subr.mxu0 %v457
      %515 = vmatpush1.msra.mxu0 %v456
      %516 = vmatprep.subr.mxu0 %v461
      %517 = vmatpush1.msra.mxu0 %v460
      %518 = vmatprep.subr.mxu0 %v465
      %519 = vmatpush1.msra.mxu0 %v464
      %520 = vmatprep.subr.mxu0 %v469
      %521 = vmatpush1.msra.mxu0 %v468
      %522 = vmatprep.subr.mxu0 %v473
      %523 = vmatpush1.msra.mxu0 %v472
      %524 = vmatprep.subr.mxu0 %v477
      %525 = vmatpush1.msra.mxu0 %v476
      %526 = vmatprep.subr.mxu0 %v481
      %527 = vmatpush1.msra.mxu0 %v480
      %528 = vmatprep.subr.mxu0 %v485
      %529 = vmatpush1.msra.mxu0 %v484
      %530 = vmatprep.subr.mxu0 %v489
      %531 = vmatpush1.msra.mxu0 %v488
      %532 = vmatprep.subr.mxu0 %v493
      %533 = vmatpush1.msra.mxu0 %v492
      %534 = vmatprep.subr.mxu0 %v497
      %535 = vmatpush1.msra.mxu0 %v496
      %536 = vmatprep.subr.mxu0 %v501
      %537 = vmatpush1.msra.mxu0 %v500
      %538 = vmatprep.subr.mxu0 %v505
      %539 = vmatpush1.msra.mxu0 %v504
      %540 = vmatprep.subr.mxu0 0.0
      %541 = vmatpush1.msra.mxu0 0.0
      %542 = vmatprep.subr.mxu0 0.0
      %543 = vmatpush1.msra.mxu0 0.0
      %544 = vmatprep.subr.mxu0 0.0
      %545 = vmatpush1.msra.mxu0 0.0
      %546 = vmatprep.subr.mxu0 0.0
      %547 = vmatpush1.msra.mxu0 0.0
      %548 = vmatprep.subr.mxu0 0.0
      %549 = vmatpush1.msra.mxu0 0.0
      %550 = vmatprep.subr.mxu0 0.0
      %551 = vmatpush1.msra.mxu0 0.0
      %552 = vmatprep.subr.mxu0 0.0
      %553 = vmatpush1.msra.mxu0 0.0
      %554 = vmatprep.subr.mxu0 0.0
      %555 = vmatpush1.msra.mxu0 0.0
      %556 = vmatprep.subr.mxu0 0.0
      %557 = vmatpush1.msra.mxu0 0.0
      %558 = vmatprep.subr.mxu0 0.0
      %559 = vmatpush1.msra.mxu0 0.0
      %560 = vmatprep.subr.mxu0 0.0
      %561 = vmatpush1.msra.mxu0 0.0
      %562 = vmatprep.subr.mxu0 0.0
      %563 = vmatpush1.msra.mxu0 0.0
      %564 = vmatprep.subr.mxu0 0.0
      %565 = vmatpush1.msra.mxu0 0.0
      %566 = vmatprep.subr.mxu0 0.0
      %567 = vmatpush1.msra.mxu0 0.0
      %568 = vmatprep.subr.mxu0 0.0
      %569 = vmatpush1.msra.mxu0 0.0
      %570 = vmatprep.subr.mxu0 0.0
      %571 = vmatpush1.msra.mxu0 0.0
      %572 = vmatprep.mubr.f32.mxu0 0.0
      %573 = vmatmul.mubr.f32.gmra.mrb[0].mxu0 %v414
      %v574 = vpop.f32.mrb[0].mxu0
      %v575 = vadd.f32 0.0, %v574
      %v576 = vpop.f32.mrb[0].mxu0
      %v577 = vadd.f32 0.0, %v576
      %578 = vmatprep.mubr.f32.mxu0 0.0
      %579 = vmatmul.mubr.f32.gmra.mrb[0].mxu0 %v415
      %v580 = vpop.f32.mrb[0].mxu0
      %v581 = vadd.f32 0.0, %v580
      %v582 = vpop.f32.mrb[0].mxu0
      %v583 = vadd.f32 0.0, %v582
      %584 = vdwg.mxu0
      %585 = vmatprep.subr.mxu0 %v447
      %586 = vmatpush1.msra.mxu0 %v446
      %587 = vmatprep.subr.mxu0 %v451
      %588 = vmatpush1.msra.mxu0 %v450
      %589 = vmatprep.subr.mxu0 %v455
      %590 = vmatpush1.msra.mxu0 %v454
      %591 = vmatprep.subr.mxu0 %v459
      %592 = vmatpush1.msra.mxu0 %v458
      %593 = vmatprep.subr.mxu0 %v463
      %594 = vmatpush1.msra.mxu0 %v462
      %595 = vmatprep.subr.mxu0 %v467
      %596 = vmatpush1.msra.mxu0 %v466
      %597 = vmatprep.subr.mxu0 %v471
      %598 = vmatpush1.msra.mxu0 %v470
      %599 = vmatprep.subr.mxu0 %v475
      %600 = vmatpush1.msra.mxu0 %v474
      %601 = vmatprep.subr.mxu0 %v479
      %602 = vmatpush1.msra.mxu0 %v478
      %603 = vmatprep.subr.mxu0 %v483
      %604 = vmatpush1.msra.mxu0 %v482
      %605 = vmatprep.subr.mxu0 %v487
      %606 = vmatpush1.msra.mxu0 %v486
      %607 = vmatprep.subr.mxu0 %v491
      %608 = vmatpush1.msra.mxu0 %v490
      %609 = vmatprep.subr.mxu0 %v495
      %610 = vmatpush1.msra.mxu0 %v494
      %611 = vmatprep.subr.mxu0 %v499
      %612 = vmatpush1.msra.mxu0 %v498
      %613 = vmatprep.subr.mxu0 %v503
      %614 = vmatpush1.msra.mxu0 %v502
      %615 = vmatprep.subr.mxu0 %v507
      %616 = vmatpush1.msra.mxu0 %v506
      %617 = vmatprep.subr.mxu0 0.0
      %618 = vmatpush1.msra.mxu0 0.0
      %619 = vmatprep.subr.mxu0 0.0
      %620 = vmatpush1.msra.mxu0 0.0
      %621 = vmatprep.subr.mxu0 0.0
      %622 = vmatpush1.msra.mxu0 0.0
      %623 = vmatprep.subr.mxu0 0.0
      %624 = vmatpush1.msra.mxu0 0.0
      %625 = vmatprep.subr.mxu0 0.0
      %626 = vmatpush1.msra.mxu0 0.0
      %627 = vmatprep.subr.mxu0 0.0
      %628 = vmatpush1.msra.mxu0 0.0
      %629 = vmatprep.subr.mxu0 0.0
      %630 = vmatpush1.msra.mxu0 0.0
      %631 = vmatprep.subr.mxu0 0.0
      %632 = vmatpush1.msra.mxu0 0.0
      %633 = vmatprep.subr.mxu0 0.0
      %634 = vmatpush1.msra.mxu0 0.0
      %635 = vmatprep.subr.mxu0 0.0
      %636 = vmatpush1.msra.mxu0 0.0
      %637 = vmatprep.subr.mxu0 0.0
      %638 = vmatpush1.msra.mxu0 0.0
      %639 = vmatprep.subr.mxu0 0.0
      %640 = vmatpush1.msra.mxu0 0.0
      %641 = vmatprep.subr.mxu0 0.0
      %642 = vmatpush1.msra.mxu0 0.0
      %643 = vmatprep.subr.mxu0 0.0
      %644 = vmatpush1.msra.mxu0 0.0
      %645 = vmatprep.subr.mxu0 0.0
      %646 = vmatpush1.msra.mxu0 0.0
      %647 = vmatprep.subr.mxu0 0.0
      %648 = vmatpush1.msra.mxu0 0.0
      %649 = vmatprep.mubr.f32.mxu0 0.0
      %650 = vmatmul.mubr.f32.gmra.mrb[0].mxu0 %v414
      %v651 = vpop.f32.mrb[0].mxu0
      %v652 = vadd.f32 0.0, %v651
      %v653 = vpop.f32.mrb[0].mxu0
      %v654 = vadd.f32 0.0, %v653
      %655 = vmatprep.mubr.f32.mxu0 0.0
      %656 = vmatmul.mubr.f32.gmra.mrb[0].mxu0 %v415
      %v657 = vpop.f32.mrb[0].mxu0
      %v658 = vadd.f32 0.0, %v657
      %v659 = vpop.f32.mrb[0].mxu0
      %v660 = vadd.f32 0.0, %v659
      %661 = vdwg.mxu0
      %v662 = vld [vmem:[%s5] sm:$0xff]
      %v663 = vld [vmem:[%s5 + $0x8] sm:$0xff]
      %v664 = vld [vmem:[%s5 + $0x10] sm:$0xff]
      %v665 = vld [vmem:[%s5 + $0x18] sm:$0xff]
      %v666 = vld [vmem:[%s5 + $0x20] sm:$0xff]
      %v667 = vld [vmem:[%s5 + $0x28] sm:$0xff]
      %v668 = vld [vmem:[%s5 + $0x30] sm:$0xff]
      %v669 = vld [vmem:[%s5 + $0x38] sm:$0xff]
      %v670 = vld [vmem:[%s5 + $0x40] sm:$0xff]
      %v671 = vld [vmem:[%s5 + $0x48] sm:$0xff]
      %v672 = vld [vmem:[%s5 + $0x50] sm:$0xff]
      %v673 = vld [vmem:[%s5 + $0x58] sm:$0xff]
      %v674 = vld [vmem:[%s5 + $0x60] sm:$0xff]
      %v675 = vld [vmem:[%s5 + $0x68] sm:$0xff]
      %v676 = vld [vmem:[%s5 + $0x70] sm:$0xff]
      %v677 = vld [vmem:[%s5 + $0x78] sm:$0xff]
      %v678 = vld [vmem:[%s5 + $0x80] sm:$0xff]
      %v679 = vld [vmem:[%s5 + $0x88] sm:$0xff]
      %v680 = vld [vmem:[%s5 + $0x90] sm:$0xff]
      %v681 = vld [vmem:[%s5 + $0x98] sm:$0xff]
      %v682 = vld [vmem:[%s5 + $0xa0] sm:$0xff]
      %v683 = vld [vmem:[%s5 + $0xa8] sm:$0xff]
      %v684 = vld [vmem:[%s5 + $0xb0] sm:$0xff]
      %v685 = vld [vmem:[%s5 + $0xb8] sm:$0xff]
      %v686 = vld [vmem:[%s5 + $0xc0] sm:$0xff]
      %v687 = vld [vmem:[%s5 + $0xc8] sm:$0xff]
      %v688 = vld [vmem:[%s5 + $0xd0] sm:$0xff]
      %v689 = vld [vmem:[%s5 + $0xd8] sm:$0xff]
      %v690 = vld [vmem:[%s5 + $0xe0] sm:$0xff]
      %v691 = vld [vmem:[%s5 + $0xe8] sm:$0xff]
      %v692 = vld [vmem:[%s5 + $0xf0] sm:$0xff]
      %v693 = vld [vmem:[%s5 + $0xf8] sm:$0xff]
      %v694 = vld [vmem:[%s5 + $0x100] sm:$0xff]
      %v695 = vld [vmem:[%s5 + $0x108] sm:$0xff]
      %v696 = vld [vmem:[%s5 + $0x110] sm:$0xff]
      %v697 = vld [vmem:[%s5 + $0x118] sm:$0xff]
      %v698 = vld [vmem:[%s5 + $0x120] sm:$0xff]
      %v699 = vld [vmem:[%s5 + $0x128] sm:$0xff]
      %v700 = vld [vmem:[%s5 + $0x130] sm:$0xff]
      %v701 = vld [vmem:[%s5 + $0x138] sm:$0xff]
      %v702 = vld [vmem:[%s5 + $0x140] sm:$0xff]
      %v703 = vld [vmem:[%s5 + $0x148] sm:$0xff]
      %v704 = vld [vmem:[%s5 + $0x150] sm:$0xff]
      %v705 = vld [vmem:[%s5 + $0x158] sm:$0xff]
      %v706 = vld [vmem:[%s5 + $0x160] sm:$0xff]
      %v707 = vld [vmem:[%s5 + $0x168] sm:$0xff]
      %v708 = vld [vmem:[%s5 + $0x170] sm:$0xff]
      %v709 = vld [vmem:[%s5 + $0x178] sm:$0xff]
      %v710 = vld [vmem:[%s5 + $0x180] sm:$0xff]
      %v711 = vld [vmem:[%s5 + $0x188] sm:$0xff]
      %v712 = vld [vmem:[%s5 + $0x190] sm:$0xff]
      %v713 = vld [vmem:[%s5 + $0x198] sm:$0xff]
      %v714 = vld [vmem:[%s5 + $0x1a0] sm:$0xff]
      %v715 = vld [vmem:[%s5 + $0x1a8] sm:$0xff]
      %v716 = vld [vmem:[%s5 + $0x1b0] sm:$0xff]
      %v717 = vld [vmem:[%s5 + $0x1b8] sm:$0xff]
      %v718 = vld [vmem:[%s5 + $0x1c0] sm:$0xff]
      %v719 = vld [vmem:[%s5 + $0x1c8] sm:$0xff]
      %v720 = vld [vmem:[%s5 + $0x1d0] sm:$0xff]
      %v721 = vld [vmem:[%s5 + $0x1d8] sm:$0xff]
      %v722 = vld [vmem:[%s5 + $0x1e0] sm:$0xff]
      %v723 = vld [vmem:[%s5 + $0x1e8] sm:$0xff]
      %v724 = vld [vmem:[%s5 + $0x1f0] sm:$0xff]
      %v725 = vld [vmem:[%s5 + $0x1f8] sm:$0xff]
      %726 = vmatprep.subr.mxu0 %v663
      %727 = vmatpush1.msra.mxu0 %v662
      %728 = vmatprep.subr.mxu0 %v667
      %729 = vmatpush1.msra.mxu0 %v666
      %730 = vmatprep.subr.mxu0 %v671
      %731 = vmatpush1.msra.mxu0 %v670
      %732 = vmatprep.subr.mxu0 %v675
      %733 = vmatpush1.msra.mxu0 %v674
      %734 = vmatprep.subr.mxu0 %v679
      %735 = vmatpush1.msra.mxu0 %v678
      %736 = vmatprep.subr.mxu0 %v683
      %737 = vmatpush1.msra.mxu0 %v682
      %738 = vmatprep.subr.mxu0 %v687
      %739 = vmatpush1.msra.mxu0 %v686
      %740 = vmatprep.subr.mxu0 %v691
      %741 = vmatpush1.msra.mxu0 %v690
      %742 = vmatprep.subr.mxu0 %v695
      %743 = vmatpush1.msra.mxu0 %v694
      %744 = vmatprep.subr.mxu0 %v699
      %745 = vmatpush1.msra.mxu0 %v698
      %746 = vmatprep.subr.mxu0 %v703
      %747 = vmatpush1.msra.mxu0 %v702
      %748 = vmatprep.subr.mxu0 %v707
      %749 = vmatpush1.msra.mxu0 %v706
      %750 = vmatprep.subr.mxu0 %v711
      %751 = vmatpush1.msra.mxu0 %v710
      %752 = vmatprep.subr.mxu0 %v715
      %753 = vmatpush1.msra.mxu0 %v714
      %754 = vmatprep.subr.mxu0 %v719
      %755 = vmatpush1.msra.mxu0 %v718
      %756 = vmatprep.subr.mxu0 %v723
      %757 = vmatpush1.msra.mxu0 %v722
      %758 = vmatprep.subr.mxu0 0.0
      %759 = vmatpush1.msra.mxu0 0.0
      %760 = vmatprep.subr.mxu0 0.0
      %761 = vmatpush1.msra.mxu0 0.0
      %762 = vmatprep.subr.mxu0 0.0
      %763 = vmatpush1.msra.mxu0 0.0
      %764 = vmatprep.subr.mxu0 0.0
      %765 = vmatpush1.msra.mxu0 0.0
      %766 = vmatprep.subr.mxu0 0.0
      %767 = vmatpush1.msra.mxu0 0.0
      %768 = vmatprep.subr.mxu0 0.0
      %769 = vmatpush1.msra.mxu0 0.0
      %770 = vmatprep.subr.mxu0 0.0
      %771 = vmatpush1.msra.mxu0 0.0
      %772 = vmatprep.subr.mxu0 0.0
      %773 = vmatpush1.msra.mxu0 0.0
      %774 = vmatprep.subr.mxu0 0.0
      %775 = vmatpush1.msra.mxu0 0.0
      %776 = vmatprep.subr.mxu0 0.0
      %777 = vmatpush1.msra.mxu0 0.0
      %778 = vmatprep.subr.mxu0 0.0
      %779 = vmatpush1.msra.mxu0 0.0
      %780 = vmatprep.subr.mxu0 0.0
      %781 = vmatpush1.msra.mxu0 0.0
      %782 = vmatprep.subr.mxu0 0.0
      %783 = vmatpush1.msra.mxu0 0.0
      %784 = vmatprep.subr.mxu0 0.0
      %785 = vmatpush1.msra.mxu0 0.0
      %786 = vmatprep.subr.mxu0 0.0
      %787 = vmatpush1.msra.mxu0 0.0
      %788 = vmatprep.subr.mxu0 0.0
      %789 = vmatpush1.msra.mxu0 0.0
      %790 = vmatprep.mubr.f32.mxu0 0.0
      %791 = vmatmul.mubr.f32.gmra.mrb[0].mxu0 %v442
      %v792 = vpop.f32.mrb[0].mxu0
      %v793 = vadd.f32 0.0, %v792
      %v794 = vpop.f32.mrb[0].mxu0
      %v795 = vadd.f32 0.0, %v794
      %796 = vmatprep.mubr.f32.mxu0 0.0
      %797 = vmatmul.mubr.f32.gmra.mrb[0].mxu0 %v443
      %v798 = vpop.f32.mrb[0].mxu0
      %v799 = vadd.f32 0.0, %v798
      %v800 = vpop.f32.mrb[0].mxu0
      %v801 = vadd.f32 0.0, %v800
      %802 = vdwg.mxu0
      %803 = vmatprep.subr.mxu0 %v665
      %804 = vmatpush1.msra.mxu0 %v664
      %805 = vmatprep.subr.mxu0 %v669
      %806 = vmatpush1.msra.mxu0 %v668
      %807 = vmatprep.subr.mxu0 %v673
      %808 = vmatpush1.msra.mxu0 %v672
      %809 = vmatprep.subr.mxu0 %v677
      %810 = vmatpush1.msra.mxu0 %v676
      %811 = vmatprep.subr.mxu0 %v681
      %812 = vmatpush1.msra.mxu0 %v680
      %813 = vmatprep.subr.mxu0 %v685
      %814 = vmatpush1.msra.mxu0 %v684
      %815 = vmatprep.subr.mxu0 %v689
      %816 = vmatpush1.msra.mxu0 %v688
      %817 = vmatprep.subr.mxu0 %v693
      %818 = vmatpush1.msra.mxu0 %v692
      %819 = vmatprep.subr.mxu0 %v697
      %820 = vmatpush1.msra.mxu0 %v696
      %821 = vmatprep.subr.mxu0 %v701
      %822 = vmatpush1.msra.mxu0 %v700
      %823 = vmatprep.subr.mxu0 %v705
      %824 = vmatpush1.msra.mxu0 %v704
      %825 = vmatprep.subr.mxu0 %v709
      %826 = vmatpush1.msra.mxu0 %v708
      %827 = vmatprep.subr.mxu0 %v713
      %828 = vmatpush1.msra.mxu0 %v712
      %829 = vmatprep.subr.mxu0 %v717
      %830 = vmatpush1.msra.mxu0 %v716
      %831 = vmatprep.subr.mxu0 %v721
      %832 = vmatpush1.msra.mxu0 %v720
      %833 = vmatprep.subr.mxu0 %v725
      %834 = vmatpush1.msra.mxu0 %v724
      %835 = vmatprep.subr.mxu0 0.0
      %836 = vmatpush1.msra.mxu0 0.0
      %837 = vmatprep.subr.mxu0 0.0
      %838 = vmatpush1.msra.mxu0 0.0
      %839 = vmatprep.subr.mxu0 0.0
      %840 = vmatpush1.msra.mxu0 0.0
      %841 = vmatprep.subr.mxu0 0.0
      %842 = vmatpush1.msra.mxu0 0.0
      %843 = vmatprep.subr.mxu0 0.0
      %844 = vmatpush1.msra.mxu0 0.0
      %845 = vmatprep.subr.mxu0 0.0
      %846 = vmatpush1.msra.mxu0 0.0
      %847 = vmatprep.subr.mxu0 0.0
      %848 = vmatpush1.msra.mxu0 0.0
      %849 = vmatprep.subr.mxu0 0.0
      %850 = vmatpush1.msra.mxu0 0.0
      %851 = vmatprep.subr.mxu0 0.0
      %852 = vmatpush1.msra.mxu0 0.0
      %853 = vmatprep.subr.mxu0 0.0
      %854 = vmatpush1.msra.mxu0 0.0
      %855 = vmatprep.subr.mxu0 0.0
      %856 = vmatpush1.msra.mxu0 0.0
      %857 = vmatprep.subr.mxu0 0.0
      %858 = vmatpush1.msra.mxu0 0.0
      %859 = vmatprep.subr.mxu0 0.0
      %860 = vmatpush1.msra.mxu0 0.0
      %861 = vmatprep.subr.mxu0 0.0
      %862 = vmatpush1.msra.mxu0 0.0
      %863 = vmatprep.subr.mxu0 0.0
      %864 = vmatpush1.msra.mxu0 0.0
      %865 = vmatprep.subr.mxu0 0.0
      %866 = vmatpush1.msra.mxu0 0.0
      %867 = vmatprep.mubr.f32.mxu0 0.0
      %868 = vmatmul.mubr.f32.gmra.mrb[0].mxu0 %v442
      %v869 = vpop.f32.mrb[0].mxu0
      %v870 = vadd.f32 0.0, %v869
      %v871 = vpop.f32.mrb[0].mxu0
      %v872 = vadd.f32 0.0, %v871
      %873 = vmatprep.mubr.f32.mxu0 0.0
      %874 = vmatmul.mubr.f32.gmra.mrb[0].mxu0 %v443
      %v875 = vpop.f32.mrb[0].mxu0
      %v876 = vadd.f32 0.0, %v875
      %v877 = vpop.f32.mrb[0].mxu0
      %v878 = vadd.f32 0.0, %v877
      %879 = vdwg.mxu0
      %v880 = vld [vmem:[%s6] sm:$0xff]
      %v881 = vld [vmem:[%s6 + $0x8] sm:$0xff]
      %v882 = vld [vmem:[%s6 + $0x10] sm:$0xff]
      %v883 = vld [vmem:[%s6 + $0x18] sm:$0xff]
      %v884 = vld [vmem:[%s6 + $0x20] sm:$0xff]
      %v885 = vld [vmem:[%s6 + $0x28] sm:$0xff]
      %v886 = vld [vmem:[%s6 + $0x30] sm:$0xff]
      %v887 = vld [vmem:[%s6 + $0x38] sm:$0xff]
      %v888 = vld [vmem:[%s6 + $0x40] sm:$0xff]
      %v889 = vld [vmem:[%s6 + $0x48] sm:$0xff]
      %v890 = vld [vmem:[%s6 + $0x50] sm:$0xff]
      %v891 = vld [vmem:[%s6 + $0x58] sm:$0xff]
      %v892 = vld [vmem:[%s6 + $0x60] sm:$0xff]
      %v893 = vld [vmem:[%s6 + $0x68] sm:$0xff]
      %v894 = vld [vmem:[%s6 + $0x70] sm:$0xff]
      %v895 = vld [vmem:[%s6 + $0x78] sm:$0xff]
      %v896 = vld [vmem:[%s6 + $0x80] sm:$0xff]
      %v897 = vld [vmem:[%s6 + $0x88] sm:$0xff]
      %v898 = vld [vmem:[%s6 + $0x90] sm:$0xff]
      %v899 = vld [vmem:[%s6 + $0x98] sm:$0xff]
      %v900 = vld [vmem:[%s6 + $0xa0] sm:$0xff]
      %v901 = vld [vmem:[%s6 + $0xa8] sm:$0xff]
      %v902 = vld [vmem:[%s6 + $0xb0] sm:$0xff]
      %v903 = vld [vmem:[%s6 + $0xb8] sm:$0xff]
      %v904 = vld [vmem:[%s6 + $0xc0] sm:$0xff]
      %v905 = vld [vmem:[%s6 + $0xc8] sm:$0xff]
      %v906 = vld [vmem:[%s6 + $0xd0] sm:$0xff]
      %v907 = vld [vmem:[%s6 + $0xd8] sm:$0xff]
      %v908 = vld [vmem:[%s6 + $0xe0] sm:$0xff]
      %v909 = vld [vmem:[%s6 + $0xe8] sm:$0xff]
      %v910 = vld [vmem:[%s6 + $0xf0] sm:$0xff]
      %v911 = vld [vmem:[%s6 + $0xf8] sm:$0xff]
      %v912 = vld [vmem:[%s6 + $0x100] sm:$0xff]
      %v913 = vld [vmem:[%s6 + $0x108] sm:$0xff]
      %v914 = vld [vmem:[%s6 + $0x110] sm:$0xff]
      %v915 = vld [vmem:[%s6 + $0x118] sm:$0xff]
      %v916 = vld [vmem:[%s6 + $0x120] sm:$0xff]
      %v917 = vld [vmem:[%s6 + $0x128] sm:$0xff]
      %v918 = vld [vmem:[%s6 + $0x130] sm:$0xff]
      %v919 = vld [vmem:[%s6 + $0x138] sm:$0xff]
      %v920 = vld [vmem:[%s6 + $0x140] sm:$0xff]
      %v921 = vld [vmem:[%s6 + $0x148] sm:$0xff]
      %v922 = vld [vmem:[%s6 + $0x150] sm:$0xff]
      %v923 = vld [vmem:[%s6 + $0x158] sm:$0xff]
      %v924 = vld [vmem:[%s6 + $0x160] sm:$0xff]
      %v925 = vld [vmem:[%s6 + $0x168] sm:$0xff]
      %v926 = vld [vmem:[%s6 + $0x170] sm:$0xff]
      %v927 = vld [vmem:[%s6 + $0x178] sm:$0xff]
      %v928 = vld [vmem:[%s6 + $0x180] sm:$0xff]
      %v929 = vld [vmem:[%s6 + $0x188] sm:$0xff]
      %v930 = vld [vmem:[%s6 + $0x190] sm:$0xff]
      %v931 = vld [vmem:[%s6 + $0x198] sm:$0xff]
      %v932 = vld [vmem:[%s6 + $0x1a0] sm:$0xff]
      %v933 = vld [vmem:[%s6 + $0x1a8] sm:$0xff]
      %v934 = vld [vmem:[%s6 + $0x1b0] sm:$0xff]
      %v935 = vld [vmem:[%s6 + $0x1b8] sm:$0xff]
      %v936 = vld [vmem:[%s6 + $0x1c0] sm:$0xff]
      %v937 = vld [vmem:[%s6 + $0x1c8] sm:$0xff]
      %v938 = vld [vmem:[%s6 + $0x1d0] sm:$0xff]
      %v939 = vld [vmem:[%s6 + $0x1d8] sm:$0xff]
      %v940 = vld [vmem:[%s6 + $0x1e0] sm:$0xff]
      %v941 = vld [vmem:[%s6 + $0x1e8] sm:$0xff]
      %v942 = vld [vmem:[%s6 + $0x1f0] sm:$0xff]
      %v943 = vld [vmem:[%s6 + $0x1f8] sm:$0xff]
      %944 = vmatprep.subr.mxu0 %v881
      %945 = vmatpush1.msra.mxu0 %v880
      %946 = vmatprep.subr.mxu0 %v885
      %947 = vmatpush1.msra.mxu0 %v884
      %948 = vmatprep.subr.mxu0 %v889
      %949 = vmatpush1.msra.mxu0 %v888
      %950 = vmatprep.subr.mxu0 %v893
      %951 = vmatpush1.msra.mxu0 %v892
      %952 = vmatprep.subr.mxu0 %v897
      %953 = vmatpush1.msra.mxu0 %v896
      %954 = vmatprep.subr.mxu0 %v901
      %955 = vmatpush1.msra.mxu0 %v900
      %956 = vmatprep.subr.mxu0 %v905
      %957 = vmatpush1.msra.mxu0 %v904
      %958 = vmatprep.subr.mxu0 %v909
      %959 = vmatpush1.msra.mxu0 %v908
      %960 = vmatprep.subr.mxu0 %v913
      %961 = vmatpush1.msra.mxu0 %v912
      %962 = vmatprep.subr.mxu0 %v917
      %963 = vmatpush1.msra.mxu0 %v916
      %964 = vmatprep.subr.mxu0 %v921
      %965 = vmatpush1.msra.mxu0 %v920
      %966 = vmatprep.subr.mxu0 %v925
      %967 = vmatpush1.msra.mxu0 %v924
      %968 = vmatprep.subr.mxu0 %v929
      %969 = vmatpush1.msra.mxu0 %v928
      %970 = vmatprep.subr.mxu0 %v933
      %971 = vmatpush1.msra.mxu0 %v932
      %972 = vmatprep.subr.mxu0 %v937
      %973 = vmatpush1.msra.mxu0 %v936
      %974 = vmatprep.subr.mxu0 %v941
      %975 = vmatpush1.msra.mxu0 %v940
      %976 = vmatprep.subr.mxu0 0.0
      %977 = vmatpush1.msra.mxu0 0.0
      %978 = vmatprep.subr.mxu0 0.0
      %979 = vmatpush1.msra.mxu0 0.0
      %980 = vmatprep.subr.mxu0 0.0
      %981 = vmatpush1.msra.mxu0 0.0
      %982 = vmatprep.subr.mxu0 0.0
      %983 = vmatpush1.msra.mxu0 0.0
      %984 = vmatprep.subr.mxu0 0.0
      %985 = vmatpush1.msra.mxu0 0.0
      %986 = vmatprep.subr.mxu0 0.0
      %987 = vmatpush1.msra.mxu0 0.0
      %988 = vmatprep.subr.mxu0 0.0
      %989 = vmatpush1.msra.mxu0 0.0
      %990 = vmatprep.subr.mxu0 0.0
      %991 = vmatpush1.msra.mxu0 0.0
      %992 = vmatprep.subr.mxu0 0.0
      %993 = vmatpush1.msra.mxu0 0.0
      %994 = vmatprep.subr.mxu0 0.0
      %995 = vmatpush1.msra.mxu0 0.0
      %996 = vmatprep.subr.mxu0 0.0
      %997 = vmatpush1.msra.mxu0 0.0
      %998 = vmatprep.subr.mxu0 0.0
      %999 = vmatpush1.msra.mxu0 0.0
      %1000 = vmatprep.subr.mxu0 0.0
      %1001 = vmatpush1.msra.mxu0 0.0
      %1002 = vmatprep.subr.mxu0 0.0
      %1003 = vmatpush1.msra.mxu0 0.0
      %1004 = vmatprep.subr.mxu0 0.0
      %1005 = vmatpush1.msra.mxu0 0.0
      %1006 = vmatprep.subr.mxu0 0.0
      %1007 = vmatpush1.msra.mxu0 0.0
      %1008 = vmatprep.mubr.f32.mxu0 0.0
      %1009 = vmatmul.mubr.f32.gmra.mrb[0].mxu0 %v442
      %v1010 = vpop.f32.mrb[0].mxu0
      %v1011 = vadd.f32 0.0, %v1010
      %v1012 = vpop.f32.mrb[0].mxu0
      %v1013 = vadd.f32 0.0, %v1012
      %1014 = vmatprep.mubr.f32.mxu0 0.0
      %1015 = vmatmul.mubr.f32.gmra.mrb[0].mxu0 %v443
      %v1016 = vpop.f32.mrb[0].mxu0
      %v1017 = vadd.f32 0.0, %v1016
      %v1018 = vpop.f32.mrb[0].mxu0
      %v1019 = vadd.f32 0.0, %v1018
      %1020 = vdwg.mxu0
      %1021 = vmatprep.subr.mxu0 %v883
      %1022 = vmatpush1.msra.mxu0 %v882
      %1023 = vmatprep.subr.mxu0 %v887
      %1024 = vmatpush1.msra.mxu0 %v886
      %1025 = vmatprep.subr.mxu0 %v891
      %1026 = vmatpush1.msra.mxu0 %v890
      %1027 = vmatprep.subr.mxu0 %v895
      %1028 = vmatpush1.msra.mxu0 %v894
      %1029 = vmatprep.subr.mxu0 %v899
      %1030 = vmatpush1.msra.mxu0 %v898
      %1031 = vmatprep.subr.mxu0 %v903
      %1032 = vmatpush1.msra.mxu0 %v902
      %1033 = vmatprep.subr.mxu0 %v907
      %1034 = vmatpush1.msra.mxu0 %v906
      %1035 = vmatprep.subr.mxu0 %v911
      %1036 = vmatpush1.msra.mxu0 %v910
      %1037 = vmatprep.subr.mxu0 %v915
      %1038 = vmatpush1.msra.mxu0 %v914
      %1039 = vmatprep.subr.mxu0 %v919
      %1040 = vmatpush1.msra.mxu0 %v918
      %1041 = vmatprep.subr.mxu0 %v923
      %1042 = vmatpush1.msra.mxu0 %v922
      %1043 = vmatprep.subr.mxu0 %v927
      %1044 = vmatpush1.msra.mxu0 %v926
      %1045 = vmatprep.subr.mxu0 %v931
      %1046 = vmatpush1.msra.mxu0 %v930
      %1047 = vmatprep.subr.mxu0 %v935
      %1048 = vmatpush1.msra.mxu0 %v934
      %1049 = vmatprep.subr.mxu0 %v939
      %1050 = vmatpush1.msra.mxu0 %v938
      %1051 = vmatprep.subr.mxu0 %v943
      %1052 = vmatpush1.msra.mxu0 %v942
      %1053 = vmatprep.subr.mxu0 0.0
      %1054 = vmatpush1.msra.mxu0 0.0
      %1055 = vmatprep.subr.mxu0 0.0
      %1056 = vmatpush1.msra.mxu0 0.0
      %1057 = vmatprep.subr.mxu0 0.0
      %1058 = vmatpush1.msra.mxu0 0.0
      %1059 = vmatprep.subr.mxu0 0.0
      %1060 = vmatpush1.msra.mxu0 0.0
      %1061 = vmatprep.subr.mxu0 0.0
      %1062 = vmatpush1.msra.mxu0 0.0
      %1063 = vmatprep.subr.mxu0 0.0
      %1064 = vmatpush1.msra.mxu0 0.0
      %1065 = vmatprep.subr.mxu0 0.0
      %1066 = vmatpush1.msra.mxu0 0.0
      %1067 = vmatprep.subr.mxu0 0.0
      %1068 = vmatpush1.msra.mxu0 0.0
      %1069 = vmatprep.subr.mxu0 0.0
      %1070 = vmatpush1.msra.mxu0 0.0
      %1071 = vmatprep.subr.mxu0 0.0
      %1072 = vmatpush1.msra.mxu0 0.0
      %1073 = vmatprep.subr.mxu0 0.0
      %1074 = vmatpush1.msra.mxu0 0.0
      %1075 = vmatprep.subr.mxu0 0.0
      %1076 = vmatpush1.msra.mxu0 0.0
      %1077 = vmatprep.subr.mxu0 0.0
      %1078 = vmatpush1.msra.mxu0 0.0
      %1079 = vmatprep.subr.mxu0 0.0
      %1080 = vmatpush1.msra.mxu0 0.0
      %1081 = vmatprep.subr.mxu0 0.0
      %1082 = vmatpush1.msra.mxu0 0.0
      %1083 = vmatprep.subr.mxu0 0.0
      %1084 = vmatpush1.msra.mxu0 0.0
      %1085 = vmatprep.mubr.f32.mxu0 0.0
      %1086 = vmatmul.mubr.f32.gmra.mrb[0].mxu0 %v442
      %v1087 = vpop.f32.mrb[0].mxu0
      %v1088 = vadd.f32 0.0, %v1087
      %v1089 = vpop.f32.mrb[0].mxu0
      %v1090 = vadd.f32 0.0, %v1089
      %1091 = vmatprep.mubr.f32.mxu0 0.0
      %1092 = vmatmul.mubr.f32.gmra.mrb[0].mxu0 %v443
      %v1093 = vpop.f32.mrb[0].mxu0
      %v1094 = vadd.f32 0.0, %v1093
      %v1095 = vpop.f32.mrb[0].mxu0
      %v1096 = vadd.f32 0.0, %v1095
      %1097 = vdwg.mxu0
      %v1098 = vcombine.low %v575, %v652
      %v1099 = vcombine.high %v575, %v652
      %v1101 = vunpack.c.l.s4 1983009808
      %v1102 = vunpack.c.0.s8 %v1101
      %v1103 = vlaneseq
      %v1104 = vshrl.u32 %v1103, 7
      %v1105 = vsub.s32 %v1102, %v1104
      %v1106 = vrot.slane %v1098, %v1105
      %v1108 = vunpack.c.l.s4 1983009808
      %v1109 = vunpack.c.0.s8 %v1108
      %v1110 = vlaneseq
      %v1111 = vshrl.u32 %v1110, 7
      %v1112 = vsub.s32 %v1109, %v1111
      %v1113 = vrot.slane %v1099, %v1112
      %v1114 = vcombine.low %v577, %v654
      %v1115 = vcombine.high %v577, %v654
      %v1117 = vunpack.c.l.s4 1983009808
      %v1118 = vunpack.c.0.s8 %v1117
      %v1119 = vlaneseq
      %v1120 = vshrl.u32 %v1119, 7
      %v1121 = vsub.s32 %v1118, %v1120
      %v1122 = vrot.slane %v1114, %v1121
      %v1124 = vunpack.c.l.s4 1983009808
      %v1125 = vunpack.c.0.s8 %v1124
      %v1126 = vlaneseq
      %v1127 = vshrl.u32 %v1126, 7
      %v1128 = vsub.s32 %v1125, %v1127
      %v1129 = vrot.slane %v1115, %v1128
      %v1130 = vcombine.low %v1106, %v1122
      %v1131 = vcombine.high %v1106, %v1122
      %v1133 = vunpack.c.l.s4 1934713408
      %v1134 = vunpack.c.0.s8 %v1133
      %v1135 = vlaneseq
      %v1136 = vshrl.u32 %v1135, 7
      %v1137 = vsub.s32 %v1134, %v1136
      %v1138 = vrot.slane %v1130, %v1137
      %v1140 = vunpack.c.l.s4 1934713408
      %v1141 = vunpack.c.0.s8 %v1140
      %v1142 = vlaneseq
      %v1143 = vshrl.u32 %v1142, 7
      %v1144 = vsub.s32 %v1141, %v1143
      %v1145 = vrot.slane %v1131, %v1144
      %v1146 = vcombine.low %v1113, %v1129
      %v1147 = vcombine.high %v1113, %v1129
      %v1149 = vunpack.c.l.s4 1934713408
      %v1150 = vunpack.c.0.s8 %v1149
      %v1151 = vlaneseq
      %v1152 = vshrl.u32 %v1151, 7
      %v1153 = vsub.s32 %v1150, %v1152
      %v1154 = vrot.slane %v1146, %v1153
      %v1156 = vunpack.c.l.s4 1934713408
      %v1157 = vunpack.c.0.s8 %v1156
      %v1158 = vlaneseq
      %v1159 = vshrl.u32 %v1158, 7
      %v1160 = vsub.s32 %v1157, %v1159
      %v1161 = vrot.slane %v1147, %v1160
      %v1162 = vcombine.high %v1138, 0.0
      %v1163 = vcombine.high %v1145, 0.0
      %v1164 = vcombine.high %v1154, 0.0
      %v1165 = vcombine.high %v1161, 0.0
      %v1166 = vcombine.low %v581, %v658
      %v1167 = vcombine.high %v581, %v658
      %v1169 = vunpack.c.l.s4 1983009808
      %v1170 = vunpack.c.0.s8 %v1169
      %v1171 = vlaneseq
      %v1172 = vshrl.u32 %v1171, 7
      %v1173 = vsub.s32 %v1170, %v1172
      %v1174 = vrot.slane %v1166, %v1173
      %v1176 = vunpack.c.l.s4 1983009808
      %v1177 = vunpack.c.0.s8 %v1176
      %v1178 = vlaneseq
      %v1179 = vshrl.u32 %v1178, 7
      %v1180 = vsub.s32 %v1177, %v1179
      %v1181 = vrot.slane %v1167, %v1180
      %v1182 = vcombine.low %v583, %v660
      %v1183 = vcombine.high %v583, %v660
      %v1185 = vunpack.c.l.s4 1983009808
      %v1186 = vunpack.c.0.s8 %v1185
      %v1187 = vlaneseq
      %v1188 = vshrl.u32 %v1187, 7
      %v1189 = vsub.s32 %v1186, %v1188
      %v1190 = vrot.slane %v1182, %v1189
      %v1192 = vunpack.c.l.s4 1983009808
      %v1193 = vunpack.c.0.s8 %v1192
      %v1194 = vlaneseq
      %v1195 = vshrl.u32 %v1194, 7
      %v1196 = vsub.s32 %v1193, %v1195
      %v1197 = vrot.slane %v1183, %v1196
      %v1198 = vcombine.low %v1174, %v1190
      %v1199 = vcombine.high %v1174, %v1190
      %v1201 = vunpack.c.l.s4 1934713408
      %v1202 = vunpack.c.0.s8 %v1201
      %v1203 = vlaneseq
      %v1204 = vshrl.u32 %v1203, 7
      %v1205 = vsub.s32 %v1202, %v1204
      %v1206 = vrot.slane %v1198, %v1205
      %v1208 = vunpack.c.l.s4 1934713408
      %v1209 = vunpack.c.0.s8 %v1208
      %v1210 = vlaneseq
      %v1211 = vshrl.u32 %v1210, 7
      %v1212 = vsub.s32 %v1209, %v1211
      %v1213 = vrot.slane %v1199, %v1212
      %v1214 = vcombine.low %v1181, %v1197
      %v1215 = vcombine.high %v1181, %v1197
      %v1217 = vunpack.c.l.s4 1934713408
      %v1218 = vunpack.c.0.s8 %v1217
      %v1219 = vlaneseq
      %v1220 = vshrl.u32 %v1219, 7
      %v1221 = vsub.s32 %v1218, %v1220
      %v1222 = vrot.slane %v1214, %v1221
      %v1224 = vunpack.c.l.s4 1934713408
      %v1225 = vunpack.c.0.s8 %v1224
      %v1226 = vlaneseq
      %v1227 = vshrl.u32 %v1226, 7
      %v1228 = vsub.s32 %v1225, %v1227
      %v1229 = vrot.slane %v1215, %v1228
      %v1230 = vcombine.high %v1206, 0.0
      %v1231 = vcombine.high %v1213, 0.0
      %v1232 = vcombine.high %v1222, 0.0
      %v1233 = vcombine.high %v1229, 0.0
      %v1234 = vcombine.low %v1138, %v1145
      %v1236 = vunpack.c.l.s4 1983009808
      %v1237 = vunpack.c.0.s8 %v1236
      %v1238 = vlaneseq
      %v1239 = vshrl.u32 %v1238, 7
      %v1240 = vsub.s32 %v1237, %v1239
      %v1241 = vrot.slane %v1234, %v1240
      %v1242 = vcombine.low %v1162, %v1163
      %v1244 = vunpack.c.l.s4 1983009808
      %v1245 = vunpack.c.0.s8 %v1244
      %v1246 = vlaneseq
      %v1247 = vshrl.u32 %v1246, 7
      %v1248 = vsub.s32 %v1245, %v1247
      %v1249 = vrot.slane %v1242, %v1248
      %v1250 = vcombine.low %v1154, %v1161
      %v1252 = vunpack.c.l.s4 1983009808
      %v1253 = vunpack.c.0.s8 %v1252
      %v1254 = vlaneseq
      %v1255 = vshrl.u32 %v1254, 7
      %v1256 = vsub.s32 %v1253, %v1255
      %v1257 = vrot.slane %v1250, %v1256
      %v1258 = vcombine.low %v1164, %v1165
      %v1260 = vunpack.c.l.s4 1983009808
      %v1261 = vunpack.c.0.s8 %v1260
      %v1262 = vlaneseq
      %v1263 = vshrl.u32 %v1262, 7
      %v1264 = vsub.s32 %v1261, %v1263
      %v1265 = vrot.slane %v1258, %v1264
      %v1266 = vcombine.low %v1241, %v1249
      %v1267 = vcombine.high %v1241, %v1249
      %v1269 = vunpack.c.l.s4 1934713408
      %v1270 = vunpack.c.0.s8 %v1269
      %v1271 = vlaneseq
      %v1272 = vshrl.u32 %v1271, 7
      %v1273 = vsub.s32 %v1270, %v1272
      %v1274 = vrot.slane %v1266, %v1273
      %v1276 = vunpack.c.l.s4 1934713408
      %v1277 = vunpack.c.0.s8 %v1276
      %v1278 = vlaneseq
      %v1279 = vshrl.u32 %v1278, 7
      %v1280 = vsub.s32 %v1277, %v1279
      %v1281 = vrot.slane %v1267, %v1280
      %v1282 = vcombine.low %v1257, %v1265
      %v1283 = vcombine.high %v1257, %v1265
      %v1285 = vunpack.c.l.s4 1934713408
      %v1286 = vunpack.c.0.s8 %v1285
      %v1287 = vlaneseq
      %v1288 = vshrl.u32 %v1287, 7
      %v1289 = vsub.s32 %v1286, %v1288
      %v1290 = vrot.slane %v1282, %v1289
      %v1292 = vunpack.c.l.s4 1934713408
      %v1293 = vunpack.c.0.s8 %v1292
      %v1294 = vlaneseq
      %v1295 = vshrl.u32 %v1294, 7
      %v1296 = vsub.s32 %v1293, %v1295
      %v1297 = vrot.slane %v1283, %v1296
      %v1298 = vcombine.low %v1274, %v1290
      %v1299 = vcombine.high %v1274, %v1290
      %v1300 = vcombine.low %v1281, %v1297
      %v1301 = vcombine.high %v1281, %v1297
      %v1302 = vcombine.low %v1206, %v1213
      %v1304 = vunpack.c.l.s4 1983009808
      %v1305 = vunpack.c.0.s8 %v1304
      %v1306 = vlaneseq
      %v1307 = vshrl.u32 %v1306, 7
      %v1308 = vsub.s32 %v1305, %v1307
      %v1309 = vrot.slane %v1302, %v1308
      %v1310 = vcombine.low %v1230, %v1231
      %v1312 = vunpack.c.l.s4 1983009808
      %v1313 = vunpack.c.0.s8 %v1312
      %v1314 = vlaneseq
      %v1315 = vshrl.u32 %v1314, 7
      %v1316 = vsub.s32 %v1313, %v1315
      %v1317 = vrot.slane %v1310, %v1316
      %v1318 = vcombine.low %v1222, %v1229
      %v1320 = vunpack.c.l.s4 1983009808
      %v1321 = vunpack.c.0.s8 %v1320
      %v1322 = vlaneseq
      %v1323 = vshrl.u32 %v1322, 7
      %v1324 = vsub.s32 %v1321, %v1323
      %v1325 = vrot.slane %v1318, %v1324
      %v1326 = vcombine.low %v1232, %v1233
      %v1328 = vunpack.c.l.s4 1983009808
      %v1329 = vunpack.c.0.s8 %v1328
      %v1330 = vlaneseq
      %v1331 = vshrl.u32 %v1330, 7
      %v1332 = vsub.s32 %v1329, %v1331
      %v1333 = vrot.slane %v1326, %v1332
      %v1334 = vcombine.low %v1309, %v1317
      %v1335 = vcombine.high %v1309, %v1317
      %v1337 = vunpack.c.l.s4 1934713408
      %v1338 = vunpack.c.0.s8 %v1337
      %v1339 = vlaneseq
      %v1340 = vshrl.u32 %v1339, 7
      %v1341 = vsub.s32 %v1338, %v1340
      %v1342 = vrot.slane %v1334, %v1341
      %v1344 = vunpack.c.l.s4 1934713408
      %v1345 = vunpack.c.0.s8 %v1344
      %v1346 = vlaneseq
      %v1347 = vshrl.u32 %v1346, 7
      %v1348 = vsub.s32 %v1345, %v1347
      %v1349 = vrot.slane %v1335, %v1348
      %v1350 = vcombine.low %v1325, %v1333
      %v1351 = vcombine.high %v1325, %v1333
      %v1353 = vunpack.c.l.s4 1934713408
      %v1354 = vunpack.c.0.s8 %v1353
      %v1355 = vlaneseq
      %v1356 = vshrl.u32 %v1355, 7
      %v1357 = vsub.s32 %v1354, %v1356
      %v1358 = vrot.slane %v1350, %v1357
      %v1360 = vunpack.c.l.s4 1934713408
      %v1361 = vunpack.c.0.s8 %v1360
      %v1362 = vlaneseq
      %v1363 = vshrl.u32 %v1362, 7
      %v1364 = vsub.s32 %v1361, %v1363
      %v1365 = vrot.slane %v1351, %v1364
      %v1366 = vcombine.low %v1342, %v1358
      %v1367 = vcombine.high %v1342, %v1358
      %v1368 = vcombine.low %v1349, %v1365
      %v1369 = vcombine.high %v1349, %v1365
      %v1370 = vcombine.low %v793, %v870
      %v1371 = vcombine.high %v793, %v870
      %v1373 = vunpack.c.l.s4 1983009808
      %v1374 = vunpack.c.0.s8 %v1373
      %v1375 = vlaneseq
      %v1376 = vshrl.u32 %v1375, 7
      %v1377 = vsub.s32 %v1374, %v1376
      %v1378 = vrot.slane %v1370, %v1377
      %v1380 = vunpack.c.l.s4 1983009808
      %v1381 = vunpack.c.0.s8 %v1380
      %v1382 = vlaneseq
      %v1383 = vshrl.u32 %v1382, 7
      %v1384 = vsub.s32 %v1381, %v1383
      %v1385 = vrot.slane %v1371, %v1384
      %v1386 = vcombine.low %v795, %v872
      %v1387 = vcombine.high %v795, %v872
      %v1389 = vunpack.c.l.s4 1983009808
      %v1390 = vunpack.c.0.s8 %v1389
      %v1391 = vlaneseq
      %v1392 = vshrl.u32 %v1391, 7
      %v1393 = vsub.s32 %v1390, %v1392
      %v1394 = vrot.slane %v1386, %v1393
      %v1396 = vunpack.c.l.s4 1983009808
      %v1397 = vunpack.c.0.s8 %v1396
      %v1398 = vlaneseq
      %v1399 = vshrl.u32 %v1398, 7
      %v1400 = vsub.s32 %v1397, %v1399
      %v1401 = vrot.slane %v1387, %v1400
      %v1402 = vcombine.low %v1378, %v1394
      %v1403 = vcombine.high %v1378, %v1394
      %v1405 = vunpack.c.l.s4 1934713408
      %v1406 = vunpack.c.0.s8 %v1405
      %v1407 = vlaneseq
      %v1408 = vshrl.u32 %v1407, 7
      %v1409 = vsub.s32 %v1406, %v1408
      %v1410 = vrot.slane %v1402, %v1409
      %v1412 = vunpack.c.l.s4 1934713408
      %v1413 = vunpack.c.0.s8 %v1412
      %v1414 = vlaneseq
      %v1415 = vshrl.u32 %v1414, 7
      %v1416 = vsub.s32 %v1413, %v1415
      %v1417 = vrot.slane %v1403, %v1416
      %v1418 = vcombine.low %v1385, %v1401
      %v1419 = vcombine.high %v1385, %v1401
      %v1421 = vunpack.c.l.s4 1934713408
      %v1422 = vunpack.c.0.s8 %v1421
      %v1423 = vlaneseq
      %v1424 = vshrl.u32 %v1423, 7
      %v1425 = vsub.s32 %v1422, %v1424
      %v1426 = vrot.slane %v1418, %v1425
      %v1428 = vunpack.c.l.s4 1934713408
      %v1429 = vunpack.c.0.s8 %v1428
      %v1430 = vlaneseq
      %v1431 = vshrl.u32 %v1430, 7
      %v1432 = vsub.s32 %v1429, %v1431
      %v1433 = vrot.slane %v1419, %v1432
      %v1434 = vcombine.high %v1410, 0.0
      %v1435 = vcombine.high %v1417, 0.0
      %v1436 = vcombine.high %v1426, 0.0
      %v1437 = vcombine.high %v1433, 0.0
      %v1438 = vcombine.low %v799, %v876
      %v1439 = vcombine.high %v799, %v876
      %v1441 = vunpack.c.l.s4 1983009808
      %v1442 = vunpack.c.0.s8 %v1441
      %v1443 = vlaneseq
      %v1444 = vshrl.u32 %v1443, 7
      %v1445 = vsub.s32 %v1442, %v1444
      %v1446 = vrot.slane %v1438, %v1445
      %v1448 = vunpack.c.l.s4 1983009808
      %v1449 = vunpack.c.0.s8 %v1448
      %v1450 = vlaneseq
      %v1451 = vshrl.u32 %v1450, 7
      %v1452 = vsub.s32 %v1449, %v1451
      %v1453 = vrot.slane %v1439, %v1452
      %v1454 = vcombine.low %v801, %v878
      %v1455 = vcombine.high %v801, %v878
      %v1457 = vunpack.c.l.s4 1983009808
      %v1458 = vunpack.c.0.s8 %v1457
      %v1459 = vlaneseq
      %v1460 = vshrl.u32 %v1459, 7
      %v1461 = vsub.s32 %v1458, %v1460
      %v1462 = vrot.slane %v1454, %v1461
      %v1464 = vunpack.c.l.s4 1983009808
      %v1465 = vunpack.c.0.s8 %v1464
      %v1466 = vlaneseq
      %v1467 = vshrl.u32 %v1466, 7
      %v1468 = vsub.s32 %v1465, %v1467
      %v1469 = vrot.slane %v1455, %v1468
      %v1470 = vcombine.low %v1446, %v1462
      %v1471 = vcombine.high %v1446, %v1462
      %v1473 = vunpack.c.l.s4 1934713408
      %v1474 = vunpack.c.0.s8 %v1473
      %v1475 = vlaneseq
      %v1476 = vshrl.u32 %v1475, 7
      %v1477 = vsub.s32 %v1474, %v1476
      %v1478 = vrot.slane %v1470, %v1477
      %v1480 = vunpack.c.l.s4 1934713408
      %v1481 = vunpack.c.0.s8 %v1480
      %v1482 = vlaneseq
      %v1483 = vshrl.u32 %v1482, 7
      %v1484 = vsub.s32 %v1481, %v1483
      %v1485 = vrot.slane %v1471, %v1484
      %v1486 = vcombine.low %v1453, %v1469
      %v1487 = vcombine.high %v1453, %v1469
      %v1489 = vunpack.c.l.s4 1934713408
      %v1490 = vunpack.c.0.s8 %v1489
      %v1491 = vlaneseq
      %v1492 = vshrl.u32 %v1491, 7
      %v1493 = vsub.s32 %v1490, %v1492
      %v1494 = vrot.slane %v1486, %v1493
      %v1496 = vunpack.c.l.s4 1934713408
      %v1497 = vunpack.c.0.s8 %v1496
      %v1498 = vlaneseq
      %v1499 = vshrl.u32 %v1498, 7
      %v1500 = vsub.s32 %v1497, %v1499
      %v1501 = vrot.slane %v1487, %v1500
      %v1502 = vcombine.high %v1478, 0.0
      %v1503 = vcombine.high %v1485, 0.0
      %v1504 = vcombine.high %v1494, 0.0
      %v1505 = vcombine.high %v1501, 0.0
      %v1506 = vcombine.low %v1410, %v1417
      %v1508 = vunpack.c.l.s4 1983009808
      %v1509 = vunpack.c.0.s8 %v1508
      %v1510 = vlaneseq
      %v1511 = vshrl.u32 %v1510, 7
      %v1512 = vsub.s32 %v1509, %v1511
      %v1513 = vrot.slane %v1506, %v1512
      %v1514 = vcombine.low %v1434, %v1435
      %v1516 = vunpack.c.l.s4 1983009808
      %v1517 = vunpack.c.0.s8 %v1516
      %v1518 = vlaneseq
      %v1519 = vshrl.u32 %v1518, 7
      %v1520 = vsub.s32 %v1517, %v1519
      %v1521 = vrot.slane %v1514, %v1520
      %v1522 = vcombine.low %v1426, %v1433
      %v1524 = vunpack.c.l.s4 1983009808
      %v1525 = vunpack.c.0.s8 %v1524
      %v1526 = vlaneseq
      %v1527 = vshrl.u32 %v1526, 7
      %v1528 = vsub.s32 %v1525, %v1527
      %v1529 = vrot.slane %v1522, %v1528
      %v1530 = vcombine.low %v1436, %v1437
      %v1532 = vunpack.c.l.s4 1983009808
      %v1533 = vunpack.c.0.s8 %v1532
      %v1534 = vlaneseq
      %v1535 = vshrl.u32 %v1534, 7
      %v1536 = vsub.s32 %v1533, %v1535
      %v1537 = vrot.slane %v1530, %v1536
      %v1538 = vcombine.low %v1513, %v1521
      %v1539 = vcombine.high %v1513, %v1521
      %v1541 = vunpack.c.l.s4 1934713408
      %v1542 = vunpack.c.0.s8 %v1541
      %v1543 = vlaneseq
      %v1544 = vshrl.u32 %v1543, 7
      %v1545 = vsub.s32 %v1542, %v1544
      %v1546 = vrot.slane %v1538, %v1545
      %v1548 = vunpack.c.l.s4 1934713408
      %v1549 = vunpack.c.0.s8 %v1548
      %v1550 = vlaneseq
      %v1551 = vshrl.u32 %v1550, 7
      %v1552 = vsub.s32 %v1549, %v1551
      %v1553 = vrot.slane %v1539, %v1552
      %v1554 = vcombine.low %v1529, %v1537
      %v1555 = vcombine.high %v1529, %v1537
      %v1557 = vunpack.c.l.s4 1934713408
      %v1558 = vunpack.c.0.s8 %v1557
      %v1559 = vlaneseq
      %v1560 = vshrl.u32 %v1559, 7
      %v1561 = vsub.s32 %v1558, %v1560
      %v1562 = vrot.slane %v1554, %v1561
      %v1564 = vunpack.c.l.s4 1934713408
      %v1565 = vunpack.c.0.s8 %v1564
      %v1566 = vlaneseq
      %v1567 = vshrl.u32 %v1566, 7
      %v1568 = vsub.s32 %v1565, %v1567
      %v1569 = vrot.slane %v1555, %v1568
      %v1570 = vcombine.low %v1546, %v1562
      %v1571 = vcombine.high %v1546, %v1562
      %v1572 = vcombine.low %v1553, %v1569
      %v1573 = vcombine.high %v1553, %v1569
      %v1574 = vcombine.low %v1478, %v1485
      %v1576 = vunpack.c.l.s4 1983009808
      %v1577 = vunpack.c.0.s8 %v1576
      %v1578 = vlaneseq
      %v1579 = vshrl.u32 %v1578, 7
      %v1580 = vsub.s32 %v1577, %v1579
      %v1581 = vrot.slane %v1574, %v1580
      %v1582 = vcombine.low %v1502, %v1503
      %v1584 = vunpack.c.l.s4 1983009808
      %v1585 = vunpack.c.0.s8 %v1584
      %v1586 = vlaneseq
      %v1587 = vshrl.u32 %v1586, 7
      %v1588 = vsub.s32 %v1585, %v1587
      %v1589 = vrot.slane %v1582, %v1588
      %v1590 = vcombine.low %v1494, %v1501
      %v1592 = vunpack.c.l.s4 1983009808
      %v1593 = vunpack.c.0.s8 %v1592
      %v1594 = vlaneseq
      %v1595 = vshrl.u32 %v1594, 7
      %v1596 = vsub.s32 %v1593, %v1595
      %v1597 = vrot.slane %v1590, %v1596
      %v1598 = vcombine.low %v1504, %v1505
      %v1600 = vunpack.c.l.s4 1983009808
      %v1601 = vunpack.c.0.s8 %v1600
      %v1602 = vlaneseq
      %v1603 = vshrl.u32 %v1602, 7
      %v1604 = vsub.s32 %v1601, %v1603
      %v1605 = vrot.slane %v1598, %v1604
      %v1606 = vcombine.low %v1581, %v1589
      %v1607 = vcombine.high %v1581, %v1589
      %v1609 = vunpack.c.l.s4 1934713408
      %v1610 = vunpack.c.0.s8 %v1609
      %v1611 = vlaneseq
      %v1612 = vshrl.u32 %v1611, 7
      %v1613 = vsub.s32 %v1610, %v1612
      %v1614 = vrot.slane %v1606, %v1613
      %v1616 = vunpack.c.l.s4 1934713408
      %v1617 = vunpack.c.0.s8 %v1616
      %v1618 = vlaneseq
      %v1619 = vshrl.u32 %v1618, 7
      %v1620 = vsub.s32 %v1617, %v1619
      %v1621 = vrot.slane %v1607, %v1620
      %v1622 = vcombine.low %v1597, %v1605
      %v1623 = vcombine.high %v1597, %v1605
      %v1625 = vunpack.c.l.s4 1934713408
      %v1626 = vunpack.c.0.s8 %v1625
      %v1627 = vlaneseq
      %v1628 = vshrl.u32 %v1627, 7
      %v1629 = vsub.s32 %v1626, %v1628
      %v1630 = vrot.slane %v1622, %v1629
      %v1632 = vunpack.c.l.s4 1934713408
      %v1633 = vunpack.c.0.s8 %v1632
      %v1634 = vlaneseq
      %v1635 = vshrl.u32 %v1634, 7
      %v1636 = vsub.s32 %v1633, %v1635
      %v1637 = vrot.slane %v1623, %v1636
      %v1638 = vcombine.low %v1614, %v1630
      %v1639 = vcombine.high %v1614, %v1630
      %v1640 = vcombine.low %v1621, %v1637
      %v1641 = vcombine.high %v1621, %v1637
      %v1642 = vcombine.low %v1011, %v1088
      %v1643 = vcombine.high %v1011, %v1088
      %v1645 = vunpack.c.l.s4 1983009808
      %v1646 = vunpack.c.0.s8 %v1645
      %v1647 = vlaneseq
      %v1648 = vshrl.u32 %v1647, 7
      %v1649 = vsub.s32 %v1646, %v1648
      %v1650 = vrot.slane %v1642, %v1649
      %v1652 = vunpack.c.l.s4 1983009808
      %v1653 = vunpack.c.0.s8 %v1652
      %v1654 = vlaneseq
      %v1655 = vshrl.u32 %v1654, 7
      %v1656 = vsub.s32 %v1653, %v1655
      %v1657 = vrot.slane %v1643, %v1656
      %v1658 = vcombine.low %v1013, %v1090
      %v1659 = vcombine.high %v1013, %v1090
      %v1661 = vunpack.c.l.s4 1983009808
      %v1662 = vunpack.c.0.s8 %v1661
      %v1663 = vlaneseq
      %v1664 = vshrl.u32 %v1663, 7
      %v1665 = vsub.s32 %v1662, %v1664
      %v1666 = vrot.slane %v1658, %v1665
      %v1668 = vunpack.c.l.s4 1983009808
      %v1669 = vunpack.c.0.s8 %v1668
      %v1670 = vlaneseq
      %v1671 = vshrl.u32 %v1670, 7
      %v1672 = vsub.s32 %v1669, %v1671
      %v1673 = vrot.slane %v1659, %v1672
      %v1674 = vcombine.low %v1650, %v1666
      %v1675 = vcombine.high %v1650, %v1666
      %v1677 = vunpack.c.l.s4 1934713408
      %v1678 = vunpack.c.0.s8 %v1677
      %v1679 = vlaneseq
      %v1680 = vshrl.u32 %v1679, 7
      %v1681 = vsub.s32 %v1678, %v1680
      %v1682 = vrot.slane %v1674, %v1681
      %v1684 = vunpack.c.l.s4 1934713408
      %v1685 = vunpack.c.0.s8 %v1684
      %v1686 = vlaneseq
      %v1687 = vshrl.u32 %v1686, 7
      %v1688 = vsub.s32 %v1685, %v1687
      %v1689 = vrot.slane %v1675, %v1688
      %v1690 = vcombine.low %v1657, %v1673
      %v1691 = vcombine.high %v1657, %v1673
      %v1693 = vunpack.c.l.s4 1934713408
      %v1694 = vunpack.c.0.s8 %v1693
      %v1695 = vlaneseq
      %v1696 = vshrl.u32 %v1695, 7
      %v1697 = vsub.s32 %v1694, %v1696
      %v1698 = vrot.slane %v1690, %v1697
      %v1700 = vunpack.c.l.s4 1934713408
      %v1701 = vunpack.c.0.s8 %v1700
      %v1702 = vlaneseq
      %v1703 = vshrl.u32 %v1702, 7
      %v1704 = vsub.s32 %v1701, %v1703
      %v1705 = vrot.slane %v1691, %v1704
      %v1706 = vcombine.high %v1682, 0.0
      %v1707 = vcombine.high %v1689, 0.0
      %v1708 = vcombine.high %v1698, 0.0
      %v1709 = vcombine.high %v1705, 0.0
      %v1710 = vcombine.low %v1017, %v1094
      %v1711 = vcombine.high %v1017, %v1094
      %v1713 = vunpack.c.l.s4 1983009808
      %v1714 = vunpack.c.0.s8 %v1713
      %v1715 = vlaneseq
      %v1716 = vshrl.u32 %v1715, 7
      %v1717 = vsub.s32 %v1714, %v1716
      %v1718 = vrot.slane %v1710, %v1717
      %v1720 = vunpack.c.l.s4 1983009808
      %v1721 = vunpack.c.0.s8 %v1720
      %v1722 = vlaneseq
      %v1723 = vshrl.u32 %v1722, 7
      %v1724 = vsub.s32 %v1721, %v1723
      %v1725 = vrot.slane %v1711, %v1724
      %v1726 = vcombine.low %v1019, %v1096
      %v1727 = vcombine.high %v1019, %v1096
      %v1729 = vunpack.c.l.s4 1983009808
      %v1730 = vunpack.c.0.s8 %v1729
      %v1731 = vlaneseq
      %v1732 = vshrl.u32 %v1731, 7
      %v1733 = vsub.s32 %v1730, %v1732
      %v1734 = vrot.slane %v1726, %v1733
      %v1736 = vunpack.c.l.s4 1983009808
      %v1737 = vunpack.c.0.s8 %v1736
      %v1738 = vlaneseq
      %v1739 = vshrl.u32 %v1738, 7
      %v1740 = vsub.s32 %v1737, %v1739
      %v1741 = vrot.slane %v1727, %v1740
      %v1742 = vcombine.low %v1718, %v1734
      %v1743 = vcombine.high %v1718, %v1734
      %v1745 = vunpack.c.l.s4 1934713408
      %v1746 = vunpack.c.0.s8 %v1745
      %v1747 = vlaneseq
      %v1748 = vshrl.u32 %v1747, 7
      %v1749 = vsub.s32 %v1746, %v1748
      %v1750 = vrot.slane %v1742, %v1749
      %v1752 = vunpack.c.l.s4 1934713408
      %v1753 = vunpack.c.0.s8 %v1752
      %v1754 = vlaneseq
      %v1755 = vshrl.u32 %v1754, 7
      %v1756 = vsub.s32 %v1753, %v1755
      %v1757 = vrot.slane %v1743, %v1756
      %v1758 = vcombine.low %v1725, %v1741
      %v1759 = vcombine.high %v1725, %v1741
      %v1761 = vunpack.c.l.s4 1934713408
      %v1762 = vunpack.c.0.s8 %v1761
      %v1763 = vlaneseq
      %v1764 = vshrl.u32 %v1763, 7
      %v1765 = vsub.s32 %v1762, %v1764
      %v1766 = vrot.slane %v1758, %v1765
      %v1768 = vunpack.c.l.s4 1934713408
      %v1769 = vunpack.c.0.s8 %v1768
      %v1770 = vlaneseq
      %v1771 = vshrl.u32 %v1770, 7
      %v1772 = vsub.s32 %v1769, %v1771
      %v1773 = vrot.slane %v1759, %v1772
      %v1774 = vcombine.high %v1750, 0.0
      %v1775 = vcombine.high %v1757, 0.0
      %v1776 = vcombine.high %v1766, 0.0
      %v1777 = vcombine.high %v1773, 0.0
      %v1778 = vcombine.low %v1682, %v1689
      %v1780 = vunpack.c.l.s4 1983009808
      %v1781 = vunpack.c.0.s8 %v1780
      %v1782 = vlaneseq
      %v1783 = vshrl.u32 %v1782, 7
      %v1784 = vsub.s32 %v1781, %v1783
      %v1785 = vrot.slane %v1778, %v1784
      %v1786 = vcombine.low %v1706, %v1707
      %v1788 = vunpack.c.l.s4 1983009808
      %v1789 = vunpack.c.0.s8 %v1788
      %v1790 = vlaneseq
      %v1791 = vshrl.u32 %v1790, 7
      %v1792 = vsub.s32 %v1789, %v1791
      %v1793 = vrot.slane %v1786, %v1792
      %v1794 = vcombine.low %v1698, %v1705
      %v1796 = vunpack.c.l.s4 1983009808
      %v1797 = vunpack.c.0.s8 %v1796
      %v1798 = vlaneseq
      %v1799 = vshrl.u32 %v1798, 7
      %v1800 = vsub.s32 %v1797, %v1799
      %v1801 = vrot.slane %v1794, %v1800
      %v1802 = vcombine.low %v1708, %v1709
      %v1804 = vunpack.c.l.s4 1983009808
      %v1805 = vunpack.c.0.s8 %v1804
      %v1806 = vlaneseq
      %v1807 = vshrl.u32 %v1806, 7
      %v1808 = vsub.s32 %v1805, %v1807
      %v1809 = vrot.slane %v1802, %v1808
      %v1810 = vcombine.low %v1785, %v1793
      %v1811 = vcombine.high %v1785, %v1793
      %v1813 = vunpack.c.l.s4 1934713408
      %v1814 = vunpack.c.0.s8 %v1813
      %v1815 = vlaneseq
      %v1816 = vshrl.u32 %v1815, 7
      %v1817 = vsub.s32 %v1814, %v1816
      %v1818 = vrot.slane %v1810, %v1817
      %v1820 = vunpack.c.l.s4 1934713408
      %v1821 = vunpack.c.0.s8 %v1820
      %v1822 = vlaneseq
      %v1823 = vshrl.u32 %v1822, 7
      %v1824 = vsub.s32 %v1821, %v1823
      %v1825 = vrot.slane %v1811, %v1824
      %v1826 = vcombine.low %v1801, %v1809
      %v1827 = vcombine.high %v1801, %v1809
      %v1829 = vunpack.c.l.s4 1934713408
      %v1830 = vunpack.c.0.s8 %v1829
      %v1831 = vlaneseq
      %v1832 = vshrl.u32 %v1831, 7
      %v1833 = vsub.s32 %v1830, %v1832
      %v1834 = vrot.slane %v1826, %v1833
      %v1836 = vunpack.c.l.s4 1934713408
      %v1837 = vunpack.c.0.s8 %v1836
      %v1838 = vlaneseq
      %v1839 = vshrl.u32 %v1838, 7
      %v1840 = vsub.s32 %v1837, %v1839
      %v1841 = vrot.slane %v1827, %v1840
      %v1842 = vcombine.low %v1818, %v1834
      %v1843 = vcombine.high %v1818, %v1834
      %v1844 = vcombine.low %v1825, %v1841
      %v1845 = vcombine.high %v1825, %v1841
      %v1846 = vcombine.low %v1750, %v1757
      %v1848 = vunpack.c.l.s4 1983009808
      %v1849 = vunpack.c.0.s8 %v1848
      %v1850 = vlaneseq
      %v1851 = vshrl.u32 %v1850, 7
      %v1852 = vsub.s32 %v1849, %v1851
      %v1853 = vrot.slane %v1846, %v1852
      %v1854 = vcombine.low %v1774, %v1775
      %v1856 = vunpack.c.l.s4 1983009808
      %v1857 = vunpack.c.0.s8 %v1856
      %v1858 = vlaneseq
      %v1859 = vshrl.u32 %v1858, 7
      %v1860 = vsub.s32 %v1857, %v1859
      %v1861 = vrot.slane %v1854, %v1860
      %v1862 = vcombine.low %v1766, %v1773
      %v1864 = vunpack.c.l.s4 1983009808
      %v1865 = vunpack.c.0.s8 %v1864
      %v1866 = vlaneseq
      %v1867 = vshrl.u32 %v1866, 7
      %v1868 = vsub.s32 %v1865, %v1867
      %v1869 = vrot.slane %v1862, %v1868
      %v1870 = vcombine.low %v1776, %v1777
      %v1872 = vunpack.c.l.s4 1983009808
      %v1873 = vunpack.c.0.s8 %v1872
      %v1874 = vlaneseq
      %v1875 = vshrl.u32 %v1874, 7
      %v1876 = vsub.s32 %v1873, %v1875
      %v1877 = vrot.slane %v1870, %v1876
      %v1878 = vcombine.low %v1853, %v1861
      %v1879 = vcombine.high %v1853, %v1861
      %v1881 = vunpack.c.l.s4 1934713408
      %v1882 = vunpack.c.0.s8 %v1881
      %v1883 = vlaneseq
      %v1884 = vshrl.u32 %v1883, 7
      %v1885 = vsub.s32 %v1882, %v1884
      %v1886 = vrot.slane %v1878, %v1885
      %v1888 = vunpack.c.l.s4 1934713408
      %v1889 = vunpack.c.0.s8 %v1888
      %v1890 = vlaneseq
      %v1891 = vshrl.u32 %v1890, 7
      %v1892 = vsub.s32 %v1889, %v1891
      %v1893 = vrot.slane %v1879, %v1892
      %v1894 = vcombine.low %v1869, %v1877
      %v1895 = vcombine.high %v1869, %v1877
      %v1897 = vunpack.c.l.s4 1934713408
      %v1898 = vunpack.c.0.s8 %v1897
      %v1899 = vlaneseq
      %v1900 = vshrl.u32 %v1899, 7
      %v1901 = vsub.s32 %v1898, %v1900
      %v1902 = vrot.slane %v1894, %v1901
      %v1904 = vunpack.c.l.s4 1934713408
      %v1905 = vunpack.c.0.s8 %v1904
      %v1906 = vlaneseq
      %v1907 = vshrl.u32 %v1906, 7
      %v1908 = vsub.s32 %v1905, %v1907
      %v1909 = vrot.slane %v1895, %v1908
      %v1910 = vcombine.low %v1886, %v1902
      %v1911 = vcombine.high %v1886, %v1902
      %v1912 = vcombine.low %v1893, %v1909
      %v1913 = vcombine.high %v1893, %v1909
      %1914 = vmatprep.subr.mxu0 0.0
      %1915 = vmatpush1.xpose.msra.mxu0 %v1570
      %1916 = vmatprep.subr.mxu0 0.0
      %1917 = vmatpush1.xpose.msra.mxu0 %v1638
      %1918 = vmatprep.subr.mxu0 0.0
      %1919 = vmatpush1.xpose.msra.mxu0 0.0
      %1920 = vmatprep.subr.mxu0 0.0
      %1921 = vmatpush1.xpose.msra.mxu0 0.0
      %1922 = vmatprep.subr.mxu0 0.0
      %1923 = vmatpush1.xpose.msra.mxu0 0.0
      %1924 = vmatprep.subr.mxu0 0.0
      %1925 = vmatpush1.xpose.msra.mxu0 0.0
      %1926 = vmatprep.subr.mxu0 0.0
      %1927 = vmatpush1.xpose.msra.mxu0 0.0
      %1928 = vmatprep.subr.mxu0 0.0
      %1929 = vmatpush1.xpose.msra.mxu0 0.0
      %1930 = vmatprep.subr.mxu0 0.0
      %1931 = vmatpush1.xpose.msra.mxu0 0.0
      %1932 = vmatprep.subr.mxu0 0.0
      %1933 = vmatpush1.xpose.msra.mxu0 0.0
      %1934 = vmatprep.subr.mxu0 0.0
      %1935 = vmatpush1.xpose.msra.mxu0 0.0
      %1936 = vmatprep.subr.mxu0 0.0
      %1937 = vmatpush1.xpose.msra.mxu0 0.0
      %1938 = vmatprep.subr.mxu0 0.0
      %1939 = vmatpush1.xpose.msra.mxu0 0.0
      %1940 = vmatprep.subr.mxu0 0.0
      %1941 = vmatpush1.xpose.msra.mxu0 0.0
      %1942 = vmatprep.subr.mxu0 0.0
      %1943 = vmatpush1.xpose.msra.mxu0 0.0
      %1944 = vmatprep.subr.mxu0 0.0
      %1945 = vmatpush1.xpose.msra.mxu0 0.0
      %1946 = vmatprep.subr.mxu0 0.0
      %1947 = vmatpush1.xpose.msra.mxu0 0.0
      %1948 = vmatprep.subr.mxu0 0.0
      %1949 = vmatpush1.xpose.msra.mxu0 0.0
      %1950 = vmatprep.subr.mxu0 0.0
      %1951 = vmatpush1.xpose.msra.mxu0 0.0
      %1952 = vmatprep.subr.mxu0 0.0
      %1953 = vmatpush1.xpose.msra.mxu0 0.0
      %1954 = vmatprep.subr.mxu0 0.0
      %1955 = vmatpush1.xpose.msra.mxu0 0.0
      %1956 = vmatprep.subr.mxu0 0.0
      %1957 = vmatpush1.xpose.msra.mxu0 0.0
      %1958 = vmatprep.subr.mxu0 0.0
      %1959 = vmatpush1.xpose.msra.mxu0 0.0
      %1960 = vmatprep.subr.mxu0 0.0
      %1961 = vmatpush1.xpose.msra.mxu0 0.0
      %1962 = vmatprep.subr.mxu0 0.0
      %1963 = vmatpush1.xpose.msra.mxu0 0.0
      %1964 = vmatprep.subr.mxu0 0.0
      %1965 = vmatpush1.xpose.msra.mxu0 0.0
      %1966 = vmatprep.subr.mxu0 0.0
      %1967 = vmatpush1.xpose.msra.mxu0 0.0
      %1968 = vmatprep.subr.mxu0 0.0
      %1969 = vmatpush1.xpose.msra.mxu0 0.0
      %1970 = vmatprep.subr.mxu0 0.0
      %1971 = vmatpush1.xpose.msra.mxu0 0.0
      %1972 = vmatprep.subr.mxu0 0.0
      %1973 = vmatpush1.xpose.msra.mxu0 0.0
      %1974 = vmatprep.subr.mxu0 0.0
      %1975 = vmatpush1.xpose.msra.mxu0 0.0
      %1976 = vmatprep.subr.mxu0 0.0
      %1977 = vmatpush1.xpose.msra.mxu0 0.0
      %1978 = vmatprep.mubr.f32.mxu0 0.0
      %1979 = vmatmul.mubr.f32.gmra.mrb[0].mxu0 %v1298
      %v1980 = vpop.f32.mrb[0].mxu0
      %v1981 = vadd.f32 0.0, %v1980
      %v1982 = vpop.f32.mrb[0].mxu0
      %1983 = vmatprep.mubr.f32.mxu0 0.0
      %1984 = vmatmul.mubr.f32.gmra.mrb[0].mxu0 %v1366
      %v1985 = vpop.f32.mrb[0].mxu0
      %v1986 = vadd.f32 0.0, %v1985
      %v1987 = vpop.f32.mrb[0].mxu0
      %1988 = vdwg.mxu0
      %1989 = vmatprep.subr.mxu0 0.0
      %1990 = vmatpush1.xpose.msra.mxu0 %v1571
      %1991 = vmatprep.subr.mxu0 0.0
      %1992 = vmatpush1.xpose.msra.mxu0 %v1639
      %1993 = vmatprep.subr.mxu0 0.0
      %1994 = vmatpush1.xpose.msra.mxu0 0.0
      %1995 = vmatprep.subr.mxu0 0.0
      %1996 = vmatpush1.xpose.msra.mxu0 0.0
      %1997 = vmatprep.subr.mxu0 0.0
      %1998 = vmatpush1.xpose.msra.mxu0 0.0
      %1999 = vmatprep.subr.mxu0 0.0
      %2000 = vmatpush1.xpose.msra.mxu0 0.0
      %2001 = vmatprep.subr.mxu0 0.0
      %2002 = vmatpush1.xpose.msra.mxu0 0.0
      %2003 = vmatprep.subr.mxu0 0.0
      %2004 = vmatpush1.xpose.msra.mxu0 0.0
      %2005 = vmatprep.subr.mxu0 0.0
      %2006 = vmatpush1.xpose.msra.mxu0 0.0
      %2007 = vmatprep.subr.mxu0 0.0
      %2008 = vmatpush1.xpose.msra.mxu0 0.0
      %2009 = vmatprep.subr.mxu0 0.0
      %2010 = vmatpush1.xpose.msra.mxu0 0.0
      %2011 = vmatprep.subr.mxu0 0.0
      %2012 = vmatpush1.xpose.msra.mxu0 0.0
      %2013 = vmatprep.subr.mxu0 0.0
      %2014 = vmatpush1.xpose.msra.mxu0 0.0
      %2015 = vmatprep.subr.mxu0 0.0
      %2016 = vmatpush1.xpose.msra.mxu0 0.0
      %2017 = vmatprep.subr.mxu0 0.0
      %2018 = vmatpush1.xpose.msra.mxu0 0.0
      %2019 = vmatprep.subr.mxu0 0.0
      %2020 = vmatpush1.xpose.msra.mxu0 0.0
      %2021 = vmatprep.subr.mxu0 0.0
      %2022 = vmatpush1.xpose.msra.mxu0 0.0
      %2023 = vmatprep.subr.mxu0 0.0
      %2024 = vmatpush1.xpose.msra.mxu0 0.0
      %2025 = vmatprep.subr.mxu0 0.0
      %2026 = vmatpush1.xpose.msra.mxu0 0.0
      %2027 = vmatprep.subr.mxu0 0.0
      %2028 = vmatpush1.xpose.msra.mxu0 0.0
      %2029 = vmatprep.subr.mxu0 0.0
      %2030 = vmatpush1.xpose.msra.mxu0 0.0
      %2031 = vmatprep.subr.mxu0 0.0
      %2032 = vmatpush1.xpose.msra.mxu0 0.0
      %2033 = vmatprep.subr.mxu0 0.0
      %2034 = vmatpush1.xpose.msra.mxu0 0.0
      %2035 = vmatprep.subr.mxu0 0.0
      %2036 = vmatpush1.xpose.msra.mxu0 0.0
      %2037 = vmatprep.subr.mxu0 0.0
      %2038 = vmatpush1.xpose.msra.mxu0 0.0
      %2039 = vmatprep.subr.mxu0 0.0
      %2040 = vmatpush1.xpose.msra.mxu0 0.0
      %2041 = vmatprep.subr.mxu0 0.0
      %2042 = vmatpush1.xpose.msra.mxu0 0.0
      %2043 = vmatprep.subr.mxu0 0.0
      %2044 = vmatpush1.xpose.msra.mxu0 0.0
      %2045 = vmatprep.subr.mxu0 0.0
      %2046 = vmatpush1.xpose.msra.mxu0 0.0
      %2047 = vmatprep.subr.mxu0 0.0
      %2048 = vmatpush1.xpose.msra.mxu0 0.0
      %2049 = vmatprep.subr.mxu0 0.0
      %2050 = vmatpush1.xpose.msra.mxu0 0.0
      %2051 = vmatprep.subr.mxu0 0.0
      %2052 = vmatpush1.xpose.msra.mxu0 0.0
      %2053 = vmatprep.mubr.f32.mxu0 0.0
      %2054 = vmatmul.mubr.f32.gmra.mrb[0].mxu0 %v1299
      %v2055 = vpop.f32.mrb[0].mxu0
      %v2056 = vadd.f32 0.0, %v2055
      %v2057 = vpop.f32.mrb[0].mxu0
      %2058 = vmatprep.mubr.f32.mxu0 0.0
      %2059 = vmatmul.mubr.f32.gmra.mrb[0].mxu0 %v1367
      %v2060 = vpop.f32.mrb[0].mxu0
      %v2061 = vadd.f32 0.0, %v2060
      %v2062 = vpop.f32.mrb[0].mxu0
      %2063 = vdwg.mxu0
      %2064 = vmatprep.subr.mxu0 0.0
      %2065 = vmatpush1.xpose.msra.mxu0 %v1572
      %2066 = vmatprep.subr.mxu0 0.0
      %2067 = vmatpush1.xpose.msra.mxu0 %v1640
      %2068 = vmatprep.subr.mxu0 0.0
      %2069 = vmatpush1.xpose.msra.mxu0 0.0
      %2070 = vmatprep.subr.mxu0 0.0
      %2071 = vmatpush1.xpose.msra.mxu0 0.0
      %2072 = vmatprep.subr.mxu0 0.0
      %2073 = vmatpush1.xpose.msra.mxu0 0.0
      %2074 = vmatprep.subr.mxu0 0.0
      %2075 = vmatpush1.xpose.msra.mxu0 0.0
      %2076 = vmatprep.subr.mxu0 0.0
      %2077 = vmatpush1.xpose.msra.mxu0 0.0
      %2078 = vmatprep.subr.mxu0 0.0
      %2079 = vmatpush1.xpose.msra.mxu0 0.0
      %2080 = vmatprep.subr.mxu0 0.0
      %2081 = vmatpush1.xpose.msra.mxu0 0.0
      %2082 = vmatprep.subr.mxu0 0.0
      %2083 = vmatpush1.xpose.msra.mxu0 0.0
      %2084 = vmatprep.subr.mxu0 0.0
      %2085 = vmatpush1.xpose.msra.mxu0 0.0
      %2086 = vmatprep.subr.mxu0 0.0
      %2087 = vmatpush1.xpose.msra.mxu0 0.0
      %2088 = vmatprep.subr.mxu0 0.0
      %2089 = vmatpush1.xpose.msra.mxu0 0.0
      %2090 = vmatprep.subr.mxu0 0.0
      %2091 = vmatpush1.xpose.msra.mxu0 0.0
      %2092 = vmatprep.subr.mxu0 0.0
      %2093 = vmatpush1.xpose.msra.mxu0 0.0
      %2094 = vmatprep.subr.mxu0 0.0
      %2095 = vmatpush1.xpose.msra.mxu0 0.0
      %2096 = vmatprep.subr.mxu0 0.0
      %2097 = vmatpush1.xpose.msra.mxu0 0.0
      %2098 = vmatprep.subr.mxu0 0.0
      %2099 = vmatpush1.xpose.msra.mxu0 0.0
      %2100 = vmatprep.subr.mxu0 0.0
      %2101 = vmatpush1.xpose.msra.mxu0 0.0
      %2102 = vmatprep.subr.mxu0 0.0
      %2103 = vmatpush1.xpose.msra.mxu0 0.0
      %2104 = vmatprep.subr.mxu0 0.0
      %2105 = vmatpush1.xpose.msra.mxu0 0.0
      %2106 = vmatprep.subr.mxu0 0.0
      %2107 = vmatpush1.xpose.msra.mxu0 0.0
      %2108 = vmatprep.subr.mxu0 0.0
      %2109 = vmatpush1.xpose.msra.mxu0 0.0
      %2110 = vmatprep.subr.mxu0 0.0
      %2111 = vmatpush1.xpose.msra.mxu0 0.0
      %2112 = vmatprep.subr.mxu0 0.0
      %2113 = vmatpush1.xpose.msra.mxu0 0.0
      %2114 = vmatprep.subr.mxu0 0.0
      %2115 = vmatpush1.xpose.msra.mxu0 0.0
      %2116 = vmatprep.subr.mxu0 0.0
      %2117 = vmatpush1.xpose.msra.mxu0 0.0
      %2118 = vmatprep.subr.mxu0 0.0
      %2119 = vmatpush1.xpose.msra.mxu0 0.0
      %2120 = vmatprep.subr.mxu0 0.0
      %2121 = vmatpush1.xpose.msra.mxu0 0.0
      %2122 = vmatprep.subr.mxu0 0.0
      %2123 = vmatpush1.xpose.msra.mxu0 0.0
      %2124 = vmatprep.subr.mxu0 0.0
      %2125 = vmatpush1.xpose.msra.mxu0 0.0
      %2126 = vmatprep.subr.mxu0 0.0
      %2127 = vmatpush1.xpose.msra.mxu0 0.0
      %2128 = vmatprep.mubr.f32.mxu0 0.0
      %2129 = vmatmul.mubr.f32.gmra.mrb[0].mxu0 %v1300
      %v2130 = vpop.f32.mrb[0].mxu0
      %v2131 = vadd.f32 0.0, %v2130
      %v2132 = vpop.f32.mrb[0].mxu0
      %2133 = vmatprep.mubr.f32.mxu0 0.0
      %2134 = vmatmul.mubr.f32.gmra.mrb[0].mxu0 %v1368
      %v2135 = vpop.f32.mrb[0].mxu0
      %v2136 = vadd.f32 0.0, %v2135
      %v2137 = vpop.f32.mrb[0].mxu0
      %2138 = vdwg.mxu0
      %2139 = vmatprep.subr.mxu0 0.0
      %2140 = vmatpush1.xpose.msra.mxu0 %v1573
      %2141 = vmatprep.subr.mxu0 0.0
      %2142 = vmatpush1.xpose.msra.mxu0 %v1641
      %2143 = vmatprep.subr.mxu0 0.0
      %2144 = vmatpush1.xpose.msra.mxu0 0.0
      %2145 = vmatprep.subr.mxu0 0.0
      %2146 = vmatpush1.xpose.msra.mxu0 0.0
      %2147 = vmatprep.subr.mxu0 0.0
      %2148 = vmatpush1.xpose.msra.mxu0 0.0
      %2149 = vmatprep.subr.mxu0 0.0
      %2150 = vmatpush1.xpose.msra.mxu0 0.0
      %2151 = vmatprep.subr.mxu0 0.0
      %2152 = vmatpush1.xpose.msra.mxu0 0.0
      %2153 = vmatprep.subr.mxu0 0.0
      %2154 = vmatpush1.xpose.msra.mxu0 0.0
      %2155 = vmatprep.subr.mxu0 0.0
      %2156 = vmatpush1.xpose.msra.mxu0 0.0
      %2157 = vmatprep.subr.mxu0 0.0
      %2158 = vmatpush1.xpose.msra.mxu0 0.0
      %2159 = vmatprep.subr.mxu0 0.0
      %2160 = vmatpush1.xpose.msra.mxu0 0.0
      %2161 = vmatprep.subr.mxu0 0.0
      %2162 = vmatpush1.xpose.msra.mxu0 0.0
      %2163 = vmatprep.subr.mxu0 0.0
      %2164 = vmatpush1.xpose.msra.mxu0 0.0
      %2165 = vmatprep.subr.mxu0 0.0
      %2166 = vmatpush1.xpose.msra.mxu0 0.0
      %2167 = vmatprep.subr.mxu0 0.0
      %2168 = vmatpush1.xpose.msra.mxu0 0.0
      %2169 = vmatprep.subr.mxu0 0.0
      %2170 = vmatpush1.xpose.msra.mxu0 0.0
      %2171 = vmatprep.subr.mxu0 0.0
      %2172 = vmatpush1.xpose.msra.mxu0 0.0
      %2173 = vmatprep.subr.mxu0 0.0
      %2174 = vmatpush1.xpose.msra.mxu0 0.0
      %2175 = vmatprep.subr.mxu0 0.0
      %2176 = vmatpush1.xpose.msra.mxu0 0.0
      %2177 = vmatprep.subr.mxu0 0.0
      %2178 = vmatpush1.xpose.msra.mxu0 0.0
      %2179 = vmatprep.subr.mxu0 0.0
      %2180 = vmatpush1.xpose.msra.mxu0 0.0
      %2181 = vmatprep.subr.mxu0 0.0
      %2182 = vmatpush1.xpose.msra.mxu0 0.0
      %2183 = vmatprep.subr.mxu0 0.0
      %2184 = vmatpush1.xpose.msra.mxu0 0.0
      %2185 = vmatprep.subr.mxu0 0.0
      %2186 = vmatpush1.xpose.msra.mxu0 0.0
      %2187 = vmatprep.subr.mxu0 0.0
      %2188 = vmatpush1.xpose.msra.mxu0 0.0
      %2189 = vmatprep.subr.mxu0 0.0
      %2190 = vmatpush1.xpose.msra.mxu0 0.0
      %2191 = vmatprep.subr.mxu0 0.0
      %2192 = vmatpush1.xpose.msra.mxu0 0.0
      %2193 = vmatprep.subr.mxu0 0.0
      %2194 = vmatpush1.xpose.msra.mxu0 0.0
      %2195 = vmatprep.subr.mxu0 0.0
      %2196 = vmatpush1.xpose.msra.mxu0 0.0
      %2197 = vmatprep.subr.mxu0 0.0
      %2198 = vmatpush1.xpose.msra.mxu0 0.0
      %2199 = vmatprep.subr.mxu0 0.0
      %2200 = vmatpush1.xpose.msra.mxu0 0.0
      %2201 = vmatprep.subr.mxu0 0.0
      %2202 = vmatpush1.xpose.msra.mxu0 0.0
      %2203 = vmatprep.mubr.f32.mxu0 0.0
      %2204 = vmatmul.mubr.f32.gmra.mrb[0].mxu0 %v1301
      %v2205 = vpop.f32.mrb[0].mxu0
      %v2206 = vadd.f32 0.0, %v2205
      %v2207 = vpop.f32.mrb[0].mxu0
      %2208 = vmatprep.mubr.f32.mxu0 0.0
      %2209 = vmatmul.mubr.f32.gmra.mrb[0].mxu0 %v1369
      %v2210 = vpop.f32.mrb[0].mxu0
      %v2211 = vadd.f32 0.0, %v2210
      %v2212 = vpop.f32.mrb[0].mxu0
      %2213 = vdwg.mxu0
      %v2214 = vmul.f32 %v1981, 0.5
      %v2215 = vmul.f32 %v1986, 0.5
      %v2216 = vmul.f32 %v2056, 0.5
      %v2217 = vmul.f32 %v2061, 0.5
      %v2218 = vmul.f32 %v2131, 0.5
      %v2219 = vmul.f32 %v2136, 0.5
      %v2220 = vmul.f32 %v2206, 0.5
      %v2221 = vmul.f32 %v2211, 0.5
      %vm2222 = vcmask 130048
      %v2223 = vsel %vm2222, %v2214, -inf
      %2224 = vmax.xlane.f32.xlu0 %v2223
      %v2225 = vpop.xlane.xlu0 %2224
      %v2226 = vsel %vm2222, %v2215, -inf
      %2227 = vmax.xlane.f32.xlu0 %v2226
      %v2228 = vpop.xlane.xlu0 %2227
      %v2229 = vsel %vm2222, %v2216, -inf
      %2230 = vmax.xlane.f32.xlu0 %v2229
      %v2231 = vpop.xlane.xlu0 %2230
      %v2232 = vsel %vm2222, %v2217, -inf
      %2233 = vmax.xlane.f32.xlu0 %v2232
      %v2234 = vpop.xlane.xlu0 %2233
      %v2235 = vsel %vm2222, %v2218, -inf
      %2236 = vmax.xlane.f32.xlu0 %v2235
      %v2237 = vpop.xlane.xlu0 %2236
      %v2238 = vsel %vm2222, %v2219, -inf
      %2239 = vmax.xlane.f32.xlu0 %v2238
      %v2240 = vpop.xlane.xlu0 %2239
      %v2241 = vsel %vm2222, %v2220, -inf
      %2242 = vmax.xlane.f32.xlu0 %v2241
      %v2243 = vpop.xlane.xlu0 %2242
      %v2244 = vsel %vm2222, %v2221, -inf
      %2245 = vmax.xlane.f32.xlu0 %v2244
      %v2246 = vpop.xlane.xlu0 %2245
      %v2247 = vsub.f32 %v2214, %v2225
      %v2248 = vsub.f32 %v2215, %v2228
      %v2249 = vsub.f32 %v2216, %v2231
      %v2250 = vsub.f32 %v2217, %v2234
      %v2251 = vsub.f32 %v2218, %v2237
      %v2252 = vsub.f32 %v2219, %v2240
      %v2253 = vsub.f32 %v2220, %v2243
      %v2254 = vsub.f32 %v2221, %v2246
      %v2255 = vmul.f32 %v2247, 1.442695
      %v2256 = vpow.pop %v2255
      %v2257 = vmul.f32 %v2248, 1.442695
      %v2258 = vpow.pop %v2257
      %v2259 = vmul.f32 %v2249, 1.442695
      %v2260 = vpow.pop %v2259
      %v2261 = vmul.f32 %v2250, 1.442695
      %v2262 = vpow.pop %v2261
      %v2263 = vmul.f32 %v2251, 1.442695
      %v2264 = vpow.pop %v2263
      %v2265 = vmul.f32 %v2252, 1.442695
      %v2266 = vpow.pop %v2265
      %v2267 = vmul.f32 %v2253, 1.442695
      %v2268 = vpow.pop %v2267
      %v2269 = vmul.f32 %v2254, 1.442695
      %v2270 = vpow.pop %v2269
      %v2271 = vsel %vm2222, %v2256, 0.0
      %2272 = vadd.xlane.f32.xlu0 %v2271
      %v2273 = vpop.xlane.xlu0 %2272
      %v2274 = vsel %vm2222, %v2258, 0.0
      %2275 = vadd.xlane.f32.xlu0 %v2274
      %v2276 = vpop.xlane.xlu0 %2275
      %v2277 = vsel %vm2222, %v2260, 0.0
      %2278 = vadd.xlane.f32.xlu0 %v2277
      %v2279 = vpop.xlane.xlu0 %2278
      %v2280 = vsel %vm2222, %v2262, 0.0
      %2281 = vadd.xlane.f32.xlu0 %v2280
      %v2282 = vpop.xlane.xlu0 %2281
      %v2283 = vsel %vm2222, %v2264, 0.0
      %2284 = vadd.xlane.f32.xlu0 %v2283
      %v2285 = vpop.xlane.xlu0 %2284
      %v2286 = vsel %vm2222, %v2266, 0.0
      %2287 = vadd.xlane.f32.xlu0 %v2286
      %v2288 = vpop.xlane.xlu0 %2287
      %v2289 = vsel %vm2222, %v2268, 0.0
      %2290 = vadd.xlane.f32.xlu0 %v2289
      %v2291 = vpop.xlane.xlu0 %2290
      %v2292 = vsel %vm2222, %v2270, 0.0
      %2293 = vadd.xlane.f32.xlu0 %v2292
      %v2294 = vpop.xlane.xlu0 %2293
      %v2295 = vrcp.pop %v2273
      %v2296 = vmul.f32 %v2256, %v2295
      %v2297 = vrcp.pop %v2276
      %v2298 = vmul.f32 %v2258, %v2297
      %v2299 = vrcp.pop %v2279
      %v2300 = vmul.f32 %v2260, %v2299
      %v2301 = vrcp.pop %v2282
      %v2302 = vmul.f32 %v2262, %v2301
      %v2303 = vrcp.pop %v2285
      %v2304 = vmul.f32 %v2264, %v2303
      %v2305 = vrcp.pop %v2288
      %v2306 = vmul.f32 %v2266, %v2305
      %v2307 = vrcp.pop %v2291
      %v2308 = vmul.f32 %v2268, %v2307
      %v2309 = vrcp.pop %v2294
      %v2310 = vmul.f32 %v2270, %v2309
      %v2312 = vsel %vm2222, %v2296, 0
      %v2315 = vsel %vm2222, %v2298, 0
      %2317 = vmatprep.subr.mxu0 0.0
      %2318 = vmatpush1.msra.mxu0 %v1842
      %2319 = vmatprep.subr.mxu0 0.0
      %2320 = vmatpush1.msra.mxu0 %v1910
      %2321 = vmatprep.subr.mxu0 0.0
      %2322 = vmatpush1.msra.mxu0 0.0
      %2323 = vmatprep.subr.mxu0 0.0
      %2324 = vmatpush1.msra.mxu0 0.0
      %2325 = vmatprep.subr.mxu0 0.0
      %2326 = vmatpush1.msra.mxu0 0.0
      %2327 = vmatprep.subr.mxu0 0.0
      %2328 = vmatpush1.msra.mxu0 0.0
      %2329 = vmatprep.subr.mxu0 0.0
      %2330 = vmatpush1.msra.mxu0 0.0
      %2331 = vmatprep.subr.mxu0 0.0
      %2332 = vmatpush1.msra.mxu0 0.0
      %2333 = vmatprep.subr.mxu0 0.0
      %2334 = vmatpush1.msra.mxu0 0.0
      %2335 = vmatprep.subr.mxu0 0.0
      %2336 = vmatpush1.msra.mxu0 0.0
      %2337 = vmatprep.subr.mxu0 0.0
      %2338 = vmatpush1.msra.mxu0 0.0
      %2339 = vmatprep.subr.mxu0 0.0
      %2340 = vmatpush1.msra.mxu0 0.0
      %2341 = vmatprep.subr.mxu0 0.0
      %2342 = vmatpush1.msra.mxu0 0.0
      %2343 = vmatprep.subr.mxu0 0.0
      %2344 = vmatpush1.msra.mxu0 0.0
      %2345 = vmatprep.subr.mxu0 0.0
      %2346 = vmatpush1.msra.mxu0 0.0
      %2347 = vmatprep.subr.mxu0 0.0
      %2348 = vmatpush1.msra.mxu0 0.0
      %2349 = vmatprep.subr.mxu0 0.0
      %2350 = vmatpush1.msra.mxu0 0.0
      %2351 = vmatprep.subr.mxu0 0.0
      %2352 = vmatpush1.msra.mxu0 0.0
      %2353 = vmatprep.subr.mxu0 0.0
      %2354 = vmatpush1.msra.mxu0 0.0
      %2355 = vmatprep.subr.mxu0 0.0
      %2356 = vmatpush1.msra.mxu0 0.0
      %2357 = vmatprep.subr.mxu0 0.0
      %2358 = vmatpush1.msra.mxu0 0.0
      %2359 = vmatprep.subr.mxu0 0.0
      %2360 = vmatpush1.msra.mxu0 0.0
      %2361 = vmatprep.subr.mxu0 0.0
      %2362 = vmatpush1.msra.mxu0 0.0
      %2363 = vmatprep.subr.mxu0 0.0
      %2364 = vmatpush1.msra.mxu0 0.0
      %2365 = vmatprep.subr.mxu0 0.0
      %2366 = vmatpush1.msra.mxu0 0.0
      %2367 = vmatprep.subr.mxu0 0.0
      %2368 = vmatpush1.msra.mxu0 0.0
      %2369 = vmatprep.subr.mxu0 0.0
      %2370 = vmatpush1.msra.mxu0 0.0
      %2371 = vmatprep.subr.mxu0 0.0
      %2372 = vmatpush1.msra.mxu0 0.0
      %2373 = vmatprep.subr.mxu0 0.0
      %2374 = vmatpush1.msra.mxu0 0.0
      %2375 = vmatprep.subr.mxu0 0.0
      %2376 = vmatpush1.msra.mxu0 0.0
      %2377 = vmatprep.subr.mxu0 0.0
      %2378 = vmatpush1.msra.mxu0 0.0
      %2379 = vmatprep.subr.mxu0 0.0
      %2380 = vmatpush1.msra.mxu0 0.0
      %2381 = vmatprep.mubr.f32.mxu0 0.0
      %2382 = vmatmul.mubr.f32.gmra.mrb[0].mxu0 %v2312
      %v2383 = vpop.f32.mrb[0].mxu0
      %v2384 = vadd.f32 0.0, %v2383
      %v2385 = vpop.f32.mrb[0].mxu0
      %2386 = vmatprep.mubr.f32.mxu0 0.0
      %2387 = vmatmul.mubr.f32.gmra.mrb[0].mxu0 %v2315
      %v2388 = vpop.f32.mrb[0].mxu0
      %v2389 = vadd.f32 0.0, %v2388
      %v2390 = vpop.f32.mrb[0].mxu0
      %2391 = vdwg.mxu0
      %v2393 = vsel %vm2222, %v2300, 0
      %v2396 = vsel %vm2222, %v2302, 0
      %2398 = vmatprep.subr.mxu0 0.0
      %2399 = vmatpush1.msra.mxu0 %v1843
      %2400 = vmatprep.subr.mxu0 0.0
      %2401 = vmatpush1.msra.mxu0 %v1911
      %2402 = vmatprep.subr.mxu0 0.0
      %2403 = vmatpush1.msra.mxu0 0.0
      %2404 = vmatprep.subr.mxu0 0.0
      %2405 = vmatpush1.msra.mxu0 0.0
      %2406 = vmatprep.subr.mxu0 0.0
      %2407 = vmatpush1.msra.mxu0 0.0
      %2408 = vmatprep.subr.mxu0 0.0
      %2409 = vmatpush1.msra.mxu0 0.0
      %2410 = vmatprep.subr.mxu0 0.0
      %2411 = vmatpush1.msra.mxu0 0.0
      %2412 = vmatprep.subr.mxu0 0.0
      %2413 = vmatpush1.msra.mxu0 0.0
      %2414 = vmatprep.subr.mxu0 0.0
      %2415 = vmatpush1.msra.mxu0 0.0
      %2416 = vmatprep.subr.mxu0 0.0
      %2417 = vmatpush1.msra.mxu0 0.0
      %2418 = vmatprep.subr.mxu0 0.0
      %2419 = vmatpush1.msra.mxu0 0.0
      %2420 = vmatprep.subr.mxu0 0.0
      %2421 = vmatpush1.msra.mxu0 0.0
      %2422 = vmatprep.subr.mxu0 0.0
      %2423 = vmatpush1.msra.mxu0 0.0
      %2424 = vmatprep.subr.mxu0 0.0
      %2425 = vmatpush1.msra.mxu0 0.0
      %2426 = vmatprep.subr.mxu0 0.0
      %2427 = vmatpush1.msra.mxu0 0.0
      %2428 = vmatprep.subr.mxu0 0.0
      %2429 = vmatpush1.msra.mxu0 0.0
      %2430 = vmatprep.subr.mxu0 0.0
      %2431 = vmatpush1.msra.mxu0 0.0
      %2432 = vmatprep.subr.mxu0 0.0
      %2433 = vmatpush1.msra.mxu0 0.0
      %2434 = vmatprep.subr.mxu0 0.0
      %2435 = vmatpush1.msra.mxu0 0.0
      %2436 = vmatprep.subr.mxu0 0.0
      %2437 = vmatpush1.msra.mxu0 0.0
      %2438 = vmatprep.subr.mxu0 0.0
      %2439 = vmatpush1.msra.mxu0 0.0
      %2440 = vmatprep.subr.mxu0 0.0
      %2441 = vmatpush1.msra.mxu0 0.0
      %2442 = vmatprep.subr.mxu0 0.0
      %2443 = vmatpush1.msra.mxu0 0.0
      %2444 = vmatprep.subr.mxu0 0.0
      %2445 = vmatpush1.msra.mxu0 0.0
      %2446 = vmatprep.subr.mxu0 0.0
      %2447 = vmatpush1.msra.mxu0 0.0
      %2448 = vmatprep.subr.mxu0 0.0
      %2449 = vmatpush1.msra.mxu0 0.0
      %2450 = vmatprep.subr.mxu0 0.0
      %2451 = vmatpush1.msra.mxu0 0.0
      %2452 = vmatprep.subr.mxu0 0.0
      %2453 = vmatpush1.msra.mxu0 0.0
      %2454 = vmatprep.subr.mxu0 0.0
      %2455 = vmatpush1.msra.mxu0 0.0
      %2456 = vmatprep.subr.mxu0 0.0
      %2457 = vmatpush1.msra.mxu0 0.0
      %2458 = vmatprep.subr.mxu0 0.0
      %2459 = vmatpush1.msra.mxu0 0.0
      %2460 = vmatprep.subr.mxu0 0.0
      %2461 = vmatpush1.msra.mxu0 0.0
      %2462 = vmatprep.mubr.f32.mxu0 0.0
      %2463 = vmatmul.mubr.f32.gmra.mrb[0].mxu0 %v2393
      %v2464 = vpop.f32.mrb[0].mxu0
      %v2465 = vadd.f32 0.0, %v2464
      %v2466 = vpop.f32.mrb[0].mxu0
      %2467 = vmatprep.mubr.f32.mxu0 0.0
      %2468 = vmatmul.mubr.f32.gmra.mrb[0].mxu0 %v2396
      %v2469 = vpop.f32.mrb[0].mxu0
      %v2470 = vadd.f32 0.0, %v2469
      %v2471 = vpop.f32.mrb[0].mxu0
      %2472 = vdwg.mxu0
      %v2474 = vsel %vm2222, %v2304, 0
      %v2477 = vsel %vm2222, %v2306, 0
      %2479 = vmatprep.subr.mxu0 0.0
      %2480 = vmatpush1.msra.mxu0 %v1844
      %2481 = vmatprep.subr.mxu0 0.0
      %2482 = vmatpush1.msra.mxu0 %v1912
      %2483 = vmatprep.subr.mxu0 0.0
      %2484 = vmatpush1.msra.mxu0 0.0
      %2485 = vmatprep.subr.mxu0 0.0
      %2486 = vmatpush1.msra.mxu0 0.0
      %2487 = vmatprep.subr.mxu0 0.0
      %2488 = vmatpush1.msra.mxu0 0.0
      %2489 = vmatprep.subr.mxu0 0.0
      %2490 = vmatpush1.msra.mxu0 0.0
      %2491 = vmatprep.subr.mxu0 0.0
      %2492 = vmatpush1.msra.mxu0 0.0
      %2493 = vmatprep.subr.mxu0 0.0
      %2494 = vmatpush1.msra.mxu0 0.0
      %2495 = vmatprep.subr.mxu0 0.0
      %2496 = vmatpush1.msra.mxu0 0.0
      %2497 = vmatprep.subr.mxu0 0.0
      %2498 = vmatpush1.msra.mxu0 0.0
      %2499 = vmatprep.subr.mxu0 0.0
      %2500 = vmatpush1.msra.mxu0 0.0
      %2501 = vmatprep.subr.mxu0 0.0
      %2502 = vmatpush1.msra.mxu0 0.0
      %2503 = vmatprep.subr.mxu0 0.0
      %2504 = vmatpush1.msra.mxu0 0.0
      %2505 = vmatprep.subr.mxu0 0.0
      %2506 = vmatpush1.msra.mxu0 0.0
      %2507 = vmatprep.subr.mxu0 0.0
      %2508 = vmatpush1.msra.mxu0 0.0
      %2509 = vmatprep.subr.mxu0 0.0
      %2510 = vmatpush1.msra.mxu0 0.0
      %2511 = vmatprep.subr.mxu0 0.0
      %2512 = vmatpush1.msra.mxu0 0.0
      %2513 = vmatprep.subr.mxu0 0.0
      %2514 = vmatpush1.msra.mxu0 0.0
      %2515 = vmatprep.subr.mxu0 0.0
      %2516 = vmatpush1.msra.mxu0 0.0
      %2517 = vmatprep.subr.mxu0 0.0
      %2518 = vmatpush1.msra.mxu0 0.0
      %2519 = vmatprep.subr.mxu0 0.0
      %2520 = vmatpush1.msra.mxu0 0.0
      %2521 = vmatprep.subr.mxu0 0.0
      %2522 = vmatpush1.msra.mxu0 0.0
      %2523 = vmatprep.subr.mxu0 0.0
      %2524 = vmatpush1.msra.mxu0 0.0
      %2525 = vmatprep.subr.mxu0 0.0
      %2526 = vmatpush1.msra.mxu0 0.0
      %2527 = vmatprep.subr.mxu0 0.0
      %2528 = vmatpush1.msra.mxu0 0.0
      %2529 = vmatprep.subr.mxu0 0.0
      %2530 = vmatpush1.msra.mxu0 0.0
      %2531 = vmatprep.subr.mxu0 0.0
      %2532 = vmatpush1.msra.mxu0 0.0
      %2533 = vmatprep.subr.mxu0 0.0
      %2534 = vmatpush1.msra.mxu0 0.0
      %2535 = vmatprep.subr.mxu0 0.0
      %2536 = vmatpush1.msra.mxu0 0.0
      %2537 = vmatprep.subr.mxu0 0.0
      %2538 = vmatpush1.msra.mxu0 0.0
      %2539 = vmatprep.subr.mxu0 0.0
      %2540 = vmatpush1.msra.mxu0 0.0
      %2541 = vmatprep.subr.mxu0 0.0
      %2542 = vmatpush1.msra.mxu0 0.0
      %2543 = vmatprep.mubr.f32.mxu0 0.0
      %2544 = vmatmul.mubr.f32.gmra.mrb[0].mxu0 %v2474
      %v2545 = vpop.f32.mrb[0].mxu0
      %v2546 = vadd.f32 0.0, %v2545
      %v2547 = vpop.f32.mrb[0].mxu0
      %2548 = vmatprep.mubr.f32.mxu0 0.0
      %2549 = vmatmul.mubr.f32.gmra.mrb[0].mxu0 %v2477
      %v2550 = vpop.f32.mrb[0].mxu0
      %v2551 = vadd.f32 0.0, %v2550
      %v2552 = vpop.f32.mrb[0].mxu0
      %2553 = vdwg.mxu0
      %v2555 = vsel %vm2222, %v2308, 0
      %v2558 = vsel %vm2222, %v2310, 0
      %2560 = vmatprep.subr.mxu0 0.0
      %2561 = vmatpush1.msra.mxu0 %v1845
      %2562 = vmatprep.subr.mxu0 0.0
      %2563 = vmatpush1.msra.mxu0 %v1913
      %2564 = vmatprep.subr.mxu0 0.0
      %2565 = vmatpush1.msra.mxu0 0.0
      %2566 = vmatprep.subr.mxu0 0.0
      %2567 = vmatpush1.msra.mxu0 0.0
      %2568 = vmatprep.subr.mxu0 0.0
      %2569 = vmatpush1.msra.mxu0 0.0
      %2570 = vmatprep.subr.mxu0 0.0
      %2571 = vmatpush1.msra.mxu0 0.0
      %2572 = vmatprep.subr.mxu0 0.0
      %2573 = vmatpush1.msra.mxu0 0.0
      %2574 = vmatprep.subr.mxu0 0.0
      %2575 = vmatpush1.msra.mxu0 0.0
      %2576 = vmatprep.subr.mxu0 0.0
      %2577 = vmatpush1.msra.mxu0 0.0
      %2578 = vmatprep.subr.mxu0 0.0
      %2579 = vmatpush1.msra.mxu0 0.0
      %2580 = vmatprep.subr.mxu0 0.0
      %2581 = vmatpush1.msra.mxu0 0.0
      %2582 = vmatprep.subr.mxu0 0.0
      %2583 = vmatpush1.msra.mxu0 0.0
      %2584 = vmatprep.subr.mxu0 0.0
      %2585 = vmatpush1.msra.mxu0 0.0
      %2586 = vmatprep.subr.mxu0 0.0
      %2587 = vmatpush1.msra.mxu0 0.0
      %2588 = vmatprep.subr.mxu0 0.0
      %2589 = vmatpush1.msra.mxu0 0.0
      %2590 = vmatprep.subr.mxu0 0.0
      %2591 = vmatpush1.msra.mxu0 0.0
      %2592 = vmatprep.subr.mxu0 0.0
      %2593 = vmatpush1.msra.mxu0 0.0
      %2594 = vmatprep.subr.mxu0 0.0
      %2595 = vmatpush1.msra.mxu0 0.0
      %2596 = vmatprep.subr.mxu0 0.0
      %2597 = vmatpush1.msra.mxu0 0.0
      %2598 = vmatprep.subr.mxu0 0.0
      %2599 = vmatpush1.msra.mxu0 0.0
      %2600 = vmatprep.subr.mxu0 0.0
      %2601 = vmatpush1.msra.mxu0 0.0
      %2602 = vmatprep.subr.mxu0 0.0
      %2603 = vmatpush1.msra.mxu0 0.0
      %2604 = vmatprep.subr.mxu0 0.0
      %2605 = vmatpush1.msra.mxu0 0.0
      %2606 = vmatprep.subr.mxu0 0.0
      %2607 = vmatpush1.msra.mxu0 0.0
      %2608 = vmatprep.subr.mxu0 0.0
      %2609 = vmatpush1.msra.mxu0 0.0
      %2610 = vmatprep.subr.mxu0 0.0
      %2611 = vmatpush1.msra.mxu0 0.0
      %2612 = vmatprep.subr.mxu0 0.0
      %2613 = vmatpush1.msra.mxu0 0.0
      %2614 = vmatprep.subr.mxu0 0.0
      %2615 = vmatpush1.msra.mxu0 0.0
      %2616 = vmatprep.subr.mxu0 0.0
      %2617 = vmatpush1.msra.mxu0 0.0
      %2618 = vmatprep.subr.mxu0 0.0
      %2619 = vmatpush1.msra.mxu0 0.0
      %2620 = vmatprep.subr.mxu0 0.0
      %2621 = vmatpush1.msra.mxu0 0.0
      %2622 = vmatprep.subr.mxu0 0.0
      %2623 = vmatpush1.msra.mxu0 0.0
      %2624 = vmatprep.mubr.f32.mxu0 0.0
      %2625 = vmatmul.mubr.f32.gmra.mrb[0].mxu0 %v2555
      %v2626 = vpop.f32.mrb[0].mxu0
      %v2627 = vadd.f32 0.0, %v2626
      %v2628 = vpop.f32.mrb[0].mxu0
      %2629 = vmatprep.mubr.f32.mxu0 0.0
      %2630 = vmatmul.mubr.f32.gmra.mrb[0].mxu0 %v2558
      %v2631 = vpop.f32.mrb[0].mxu0
      %v2632 = vadd.f32 0.0, %v2631
      %v2633 = vpop.f32.mrb[0].mxu0
      %2634 = vdwg.mxu0
      %v2635 = vcombine.low %v2384, %v2546
      %v2636 = vcombine.high %v2384, %v2546
      %v2638 = vunpack.c.l.s4 1983009808
      %v2639 = vunpack.c.0.s8 %v2638
      %v2640 = vlaneseq
      %v2641 = vshrl.u32 %v2640, 7
      %v2642 = vsub.s32 %v2639, %v2641
      %v2643 = vrot.slane %v2635, %v2642
      %v2645 = vunpack.c.l.s4 1983009808
      %v2646 = vunpack.c.0.s8 %v2645
      %v2647 = vlaneseq
      %v2648 = vshrl.u32 %v2647, 7
      %v2649 = vsub.s32 %v2646, %v2648
      %v2650 = vrot.slane %v2636, %v2649
      %v2651 = vcombine.low %v2465, %v2627
      %v2652 = vcombine.high %v2465, %v2627
      %v2654 = vunpack.c.l.s4 1983009808
      %v2655 = vunpack.c.0.s8 %v2654
      %v2656 = vlaneseq
      %v2657 = vshrl.u32 %v2656, 7
      %v2658 = vsub.s32 %v2655, %v2657
      %v2659 = vrot.slane %v2651, %v2658
      %v2661 = vunpack.c.l.s4 1983009808
      %v2662 = vunpack.c.0.s8 %v2661
      %v2663 = vlaneseq
      %v2664 = vshrl.u32 %v2663, 7
      %v2665 = vsub.s32 %v2662, %v2664
      %v2666 = vrot.slane %v2652, %v2665
      %v2667 = vcombine.low %v2643, %v2659
      %v2668 = vcombine.high %v2643, %v2659
      %v2670 = vunpack.c.l.s4 1934713408
      %v2671 = vunpack.c.0.s8 %v2670
      %v2672 = vlaneseq
      %v2673 = vshrl.u32 %v2672, 7
      %v2674 = vsub.s32 %v2671, %v2673
      %v2675 = vrot.slane %v2667, %v2674
      %v2677 = vunpack.c.l.s4 1934713408
      %v2678 = vunpack.c.0.s8 %v2677
      %v2679 = vlaneseq
      %v2680 = vshrl.u32 %v2679, 7
      %v2681 = vsub.s32 %v2678, %v2680
      %v2682 = vrot.slane %v2668, %v2681
      %v2683 = vcombine.low %v2650, %v2666
      %v2684 = vcombine.high %v2650, %v2666
      %v2686 = vunpack.c.l.s4 1934713408
      %v2687 = vunpack.c.0.s8 %v2686
      %v2688 = vlaneseq
      %v2689 = vshrl.u32 %v2688, 7
      %v2690 = vsub.s32 %v2687, %v2689
      %v2691 = vrot.slane %v2683, %v2690
      %v2693 = vunpack.c.l.s4 1934713408
      %v2694 = vunpack.c.0.s8 %v2693
      %v2695 = vlaneseq
      %v2696 = vshrl.u32 %v2695, 7
      %v2697 = vsub.s32 %v2694, %v2696
      %v2698 = vrot.slane %v2684, %v2697
      %v2699 = vcombine.high %v2675, 0.0
      %v2700 = vcombine.high %v2682, 0.0
      %v2701 = vcombine.high %v2691, 0.0
      %v2702 = vcombine.high %v2698, 0.0
      %v2703 = vcombine.low %v2389, %v2551
      %v2704 = vcombine.high %v2389, %v2551
      %v2706 = vunpack.c.l.s4 1983009808
      %v2707 = vunpack.c.0.s8 %v2706
      %v2708 = vlaneseq
      %v2709 = vshrl.u32 %v2708, 7
      %v2710 = vsub.s32 %v2707, %v2709
      %v2711 = vrot.slane %v2703, %v2710
      %v2713 = vunpack.c.l.s4 1983009808
      %v2714 = vunpack.c.0.s8 %v2713
      %v2715 = vlaneseq
      %v2716 = vshrl.u32 %v2715, 7
      %v2717 = vsub.s32 %v2714, %v2716
      %v2718 = vrot.slane %v2704, %v2717
      %v2719 = vcombine.low %v2470, %v2632
      %v2720 = vcombine.high %v2470, %v2632
      %v2722 = vunpack.c.l.s4 1983009808
      %v2723 = vunpack.c.0.s8 %v2722
      %v2724 = vlaneseq
      %v2725 = vshrl.u32 %v2724, 7
      %v2726 = vsub.s32 %v2723, %v2725
      %v2727 = vrot.slane %v2719, %v2726
      %v2729 = vunpack.c.l.s4 1983009808
      %v2730 = vunpack.c.0.s8 %v2729
      %v2731 = vlaneseq
      %v2732 = vshrl.u32 %v2731, 7
      %v2733 = vsub.s32 %v2730, %v2732
      %v2734 = vrot.slane %v2720, %v2733
      %v2735 = vcombine.low %v2711, %v2727
      %v2736 = vcombine.high %v2711, %v2727
      %v2738 = vunpack.c.l.s4 1934713408
      %v2739 = vunpack.c.0.s8 %v2738
      %v2740 = vlaneseq
      %v2741 = vshrl.u32 %v2740, 7
      %v2742 = vsub.s32 %v2739, %v2741
      %v2743 = vrot.slane %v2735, %v2742
      %v2745 = vunpack.c.l.s4 1934713408
      %v2746 = vunpack.c.0.s8 %v2745
      %v2747 = vlaneseq
      %v2748 = vshrl.u32 %v2747, 7
      %v2749 = vsub.s32 %v2746, %v2748
      %v2750 = vrot.slane %v2736, %v2749
      %v2751 = vcombine.low %v2718, %v2734
      %v2752 = vcombine.high %v2718, %v2734
      %v2754 = vunpack.c.l.s4 1934713408
      %v2755 = vunpack.c.0.s8 %v2754
      %v2756 = vlaneseq
      %v2757 = vshrl.u32 %v2756, 7
      %v2758 = vsub.s32 %v2755, %v2757
      %v2759 = vrot.slane %v2751, %v2758
      %v2761 = vunpack.c.l.s4 1934713408
      %v2762 = vunpack.c.0.s8 %v2761
      %v2763 = vlaneseq
      %v2764 = vshrl.u32 %v2763, 7
      %v2765 = vsub.s32 %v2762, %v2764
      %v2766 = vrot.slane %v2752, %v2765
      %v2767 = vcombine.high %v2743, 0.0
      %v2768 = vcombine.high %v2750, 0.0
      %v2769 = vcombine.high %v2759, 0.0
      %v2770 = vcombine.high %v2766, 0.0
      %v2771 = vcombine.low %v2675, %v2682
      %v2773 = vunpack.c.l.s4 1983009808
      %v2774 = vunpack.c.0.s8 %v2773
      %v2775 = vlaneseq
      %v2776 = vshrl.u32 %v2775, 7
      %v2777 = vsub.s32 %v2774, %v2776
      %v2778 = vrot.slane %v2771, %v2777
      %v2779 = vcombine.low %v2699, %v2700
      %v2781 = vunpack.c.l.s4 1983009808
      %v2782 = vunpack.c.0.s8 %v2781
      %v2783 = vlaneseq
      %v2784 = vshrl.u32 %v2783, 7
      %v2785 = vsub.s32 %v2782, %v2784
      %v2786 = vrot.slane %v2779, %v2785
      %v2787 = vcombine.low %v2691, %v2698
      %v2789 = vunpack.c.l.s4 1983009808
      %v2790 = vunpack.c.0.s8 %v2789
      %v2791 = vlaneseq
      %v2792 = vshrl.u32 %v2791, 7
      %v2793 = vsub.s32 %v2790, %v2792
      %v2794 = vrot.slane %v2787, %v2793
      %v2795 = vcombine.low %v2701, %v2702
      %v2797 = vunpack.c.l.s4 1983009808
      %v2798 = vunpack.c.0.s8 %v2797
      %v2799 = vlaneseq
      %v2800 = vshrl.u32 %v2799, 7
      %v2801 = vsub.s32 %v2798, %v2800
      %v2802 = vrot.slane %v2795, %v2801
      %v2803 = vcombine.low %v2778, %v2786
      %v2804 = vcombine.high %v2778, %v2786
      %v2806 = vunpack.c.l.s4 1934713408
      %v2807 = vunpack.c.0.s8 %v2806
      %v2808 = vlaneseq
      %v2809 = vshrl.u32 %v2808, 7
      %v2810 = vsub.s32 %v2807, %v2809
      %v2811 = vrot.slane %v2803, %v2810
      %v2813 = vunpack.c.l.s4 1934713408
      %v2814 = vunpack.c.0.s8 %v2813
      %v2815 = vlaneseq
      %v2816 = vshrl.u32 %v2815, 7
      %v2817 = vsub.s32 %v2814, %v2816
      %v2818 = vrot.slane %v2804, %v2817
      %v2819 = vcombine.low %v2794, %v2802
      %v2820 = vcombine.high %v2794, %v2802
      %v2822 = vunpack.c.l.s4 1934713408
      %v2823 = vunpack.c.0.s8 %v2822
      %v2824 = vlaneseq
      %v2825 = vshrl.u32 %v2824, 7
      %v2826 = vsub.s32 %v2823, %v2825
      %v2827 = vrot.slane %v2819, %v2826
      %v2829 = vunpack.c.l.s4 1934713408
      %v2830 = vunpack.c.0.s8 %v2829
      %v2831 = vlaneseq
      %v2832 = vshrl.u32 %v2831, 7
      %v2833 = vsub.s32 %v2830, %v2832
      %v2834 = vrot.slane %v2820, %v2833
      %v2835 = vcombine.low %v2811, %v2827
      %v2836 = vcombine.high %v2811, %v2827
      %v2837 = vcombine.low %v2818, %v2834
      %v2838 = vcombine.high %v2818, %v2834
      %v2839 = vcombine.low %v2743, %v2750
      %v2841 = vunpack.c.l.s4 1983009808
      %v2842 = vunpack.c.0.s8 %v2841
      %v2843 = vlaneseq
      %v2844 = vshrl.u32 %v2843, 7
      %v2845 = vsub.s32 %v2842, %v2844
      %v2846 = vrot.slane %v2839, %v2845
      %v2847 = vcombine.low %v2767, %v2768
      %v2849 = vunpack.c.l.s4 1983009808
      %v2850 = vunpack.c.0.s8 %v2849
      %v2851 = vlaneseq
      %v2852 = vshrl.u32 %v2851, 7
      %v2853 = vsub.s32 %v2850, %v2852
      %v2854 = vrot.slane %v2847, %v2853
      %v2855 = vcombine.low %v2759, %v2766
      %v2857 = vunpack.c.l.s4 1983009808
      %v2858 = vunpack.c.0.s8 %v2857
      %v2859 = vlaneseq
      %v2860 = vshrl.u32 %v2859, 7
      %v2861 = vsub.s32 %v2858, %v2860
      %v2862 = vrot.slane %v2855, %v2861
      %v2863 = vcombine.low %v2769, %v2770
      %v2865 = vunpack.c.l.s4 1983009808
      %v2866 = vunpack.c.0.s8 %v2865
      %v2867 = vlaneseq
      %v2868 = vshrl.u32 %v2867, 7
      %v2869 = vsub.s32 %v2866, %v2868
      %v2870 = vrot.slane %v2863, %v2869
      %v2871 = vcombine.low %v2846, %v2854
      %v2872 = vcombine.high %v2846, %v2854
      %v2874 = vunpack.c.l.s4 1934713408
      %v2875 = vunpack.c.0.s8 %v2874
      %v2876 = vlaneseq
      %v2877 = vshrl.u32 %v2876, 7
      %v2878 = vsub.s32 %v2875, %v2877
      %v2879 = vrot.slane %v2871, %v2878
      %v2881 = vunpack.c.l.s4 1934713408
      %v2882 = vunpack.c.0.s8 %v2881
      %v2883 = vlaneseq
      %v2884 = vshrl.u32 %v2883, 7
      %v2885 = vsub.s32 %v2882, %v2884
      %v2886 = vrot.slane %v2872, %v2885
      %v2887 = vcombine.low %v2862, %v2870
      %v2888 = vcombine.high %v2862, %v2870
      %v2890 = vunpack.c.l.s4 1934713408
      %v2891 = vunpack.c.0.s8 %v2890
      %v2892 = vlaneseq
      %v2893 = vshrl.u32 %v2892, 7
      %v2894 = vsub.s32 %v2891, %v2893
      %v2895 = vrot.slane %v2887, %v2894
      %v2897 = vunpack.c.l.s4 1934713408
      %v2898 = vunpack.c.0.s8 %v2897
      %v2899 = vlaneseq
      %v2900 = vshrl.u32 %v2899, 7
      %v2901 = vsub.s32 %v2898, %v2900
      %v2902 = vrot.slane %v2888, %v2901
      %v2903 = vcombine.low %v2879, %v2895
      %v2904 = vcombine.high %v2879, %v2895
      %v2905 = vcombine.low %v2886, %v2902
      %v2906 = vcombine.high %v2886, %v2902
      %v2907 = vld [vmem:[%s7] sm:$0xff]
      %v2908 = vld [vmem:[%s7 + $0x8] sm:$0xff]
      %v2909 = vld [vmem:[%s7 + $0x10] sm:$0xff]
      %v2910 = vld [vmem:[%s7 + $0x18] sm:$0xff]
      %v2911 = vld [vmem:[%s7 + $0x20] sm:$0xff]
      %v2912 = vld [vmem:[%s7 + $0x28] sm:$0xff]
      %v2913 = vld [vmem:[%s7 + $0x30] sm:$0xff]
      %v2914 = vld [vmem:[%s7 + $0x38] sm:$0xff]
      %v2915 = vld [vmem:[%s7 + $0x40] sm:$0xff]
      %v2916 = vld [vmem:[%s7 + $0x48] sm:$0xff]
      %v2917 = vld [vmem:[%s7 + $0x50] sm:$0xff]
      %v2918 = vld [vmem:[%s7 + $0x58] sm:$0xff]
      %v2919 = vld [vmem:[%s7 + $0x60] sm:$0xff]
      %v2920 = vld [vmem:[%s7 + $0x68] sm:$0xff]
      %v2921 = vld [vmem:[%s7 + $0x70] sm:$0xff]
      %v2922 = vld [vmem:[%s7 + $0x78] sm:$0xff]
      %v2923 = vld [vmem:[%s7 + $0x80] sm:$0xff]
      %v2924 = vld [vmem:[%s7 + $0x88] sm:$0xff]
      %v2925 = vld [vmem:[%s7 + $0x90] sm:$0xff]
      %v2926 = vld [vmem:[%s7 + $0x98] sm:$0xff]
      %v2927 = vld [vmem:[%s7 + $0xa0] sm:$0xff]
      %v2928 = vld [vmem:[%s7 + $0xa8] sm:$0xff]
      %v2929 = vld [vmem:[%s7 + $0xb0] sm:$0xff]
      %v2930 = vld [vmem:[%s7 + $0xb8] sm:$0xff]
      %v2931 = vld [vmem:[%s7 + $0xc0] sm:$0xff]
      %v2932 = vld [vmem:[%s7 + $0xc8] sm:$0xff]
      %v2933 = vld [vmem:[%s7 + $0xd0] sm:$0xff]
      %v2934 = vld [vmem:[%s7 + $0xd8] sm:$0xff]
      %v2935 = vld [vmem:[%s7 + $0xe0] sm:$0xff]
      %v2936 = vld [vmem:[%s7 + $0xe8] sm:$0xff]
      %v2937 = vld [vmem:[%s7 + $0xf0] sm:$0xff]
      %v2938 = vld [vmem:[%s7 + $0xf8] sm:$0xff]
      %v2939 = vld [vmem:[%s7 + $0x100] sm:$0xff]
      %v2940 = vld [vmem:[%s7 + $0x108] sm:$0xff]
      %v2941 = vld [vmem:[%s7 + $0x110] sm:$0xff]
      %v2942 = vld [vmem:[%s7 + $0x118] sm:$0xff]
      %v2943 = vld [vmem:[%s7 + $0x120] sm:$0xff]
      %v2944 = vld [vmem:[%s7 + $0x128] sm:$0xff]
      %v2945 = vld [vmem:[%s7 + $0x130] sm:$0xff]
      %v2946 = vld [vmem:[%s7 + $0x138] sm:$0xff]
      %v2947 = vld [vmem:[%s7 + $0x140] sm:$0xff]
      %v2948 = vld [vmem:[%s7 + $0x148] sm:$0xff]
      %v2949 = vld [vmem:[%s7 + $0x150] sm:$0xff]
      %v2950 = vld [vmem:[%s7 + $0x158] sm:$0xff]
      %v2951 = vld [vmem:[%s7 + $0x160] sm:$0xff]
      %v2952 = vld [vmem:[%s7 + $0x168] sm:$0xff]
      %v2953 = vld [vmem:[%s7 + $0x170] sm:$0xff]
      %v2954 = vld [vmem:[%s7 + $0x178] sm:$0xff]
      %v2955 = vld [vmem:[%s7 + $0x180] sm:$0xff]
      %v2956 = vld [vmem:[%s7 + $0x188] sm:$0xff]
      %v2957 = vld [vmem:[%s7 + $0x190] sm:$0xff]
      %v2958 = vld [vmem:[%s7 + $0x198] sm:$0xff]
      %v2959 = vld [vmem:[%s7 + $0x1a0] sm:$0xff]
      %v2960 = vld [vmem:[%s7 + $0x1a8] sm:$0xff]
      %v2961 = vld [vmem:[%s7 + $0x1b0] sm:$0xff]
      %v2962 = vld [vmem:[%s7 + $0x1b8] sm:$0xff]
      %v2963 = vld [vmem:[%s7 + $0x1c0] sm:$0xff]
      %v2964 = vld [vmem:[%s7 + $0x1c8] sm:$0xff]
      %v2965 = vld [vmem:[%s7 + $0x1d0] sm:$0xff]
      %v2966 = vld [vmem:[%s7 + $0x1d8] sm:$0xff]
      %v2967 = vld [vmem:[%s7 + $0x1e0] sm:$0xff]
      %v2968 = vld [vmem:[%s7 + $0x1e8] sm:$0xff]
      %v2969 = vld [vmem:[%s7 + $0x1f0] sm:$0xff]
      %v2970 = vld [vmem:[%s7 + $0x1f8] sm:$0xff]
      %2971 = vmatprep.subr.mxu0 0.0
      %2972 = vmatpush1.msra.mxu0 %v2907
      %2973 = vmatprep.subr.mxu0 0.0
      %2974 = vmatpush1.msra.mxu0 %v2908
      %2975 = vmatprep.subr.mxu0 0.0
      %2976 = vmatpush1.msra.mxu0 %v2909
      %2977 = vmatprep.subr.mxu0 0.0
      %2978 = vmatpush1.msra.mxu0 %v2910
      %2979 = vmatprep.subr.mxu0 0.0
      %2980 = vmatpush1.msra.mxu0 %v2911
      %2981 = vmatprep.subr.mxu0 0.0
      %2982 = vmatpush1.msra.mxu0 %v2912
      %2983 = vmatprep.subr.mxu0 0.0
      %2984 = vmatpush1.msra.mxu0 %v2913
      %2985 = vmatprep.subr.mxu0 0.0
      %2986 = vmatpush1.msra.mxu0 %v2914
      %2987 = vmatprep.subr.mxu0 0.0
      %2988 = vmatpush1.msra.mxu0 %v2915
      %2989 = vmatprep.subr.mxu0 0.0
      %2990 = vmatpush1.msra.mxu0 %v2916
      %2991 = vmatprep.subr.mxu0 0.0
      %2992 = vmatpush1.msra.mxu0 %v2917
      %2993 = vmatprep.subr.mxu0 0.0
      %2994 = vmatpush1.msra.mxu0 %v2918
      %2995 = vmatprep.subr.mxu0 0.0
      %2996 = vmatpush1.msra.mxu0 %v2919
      %2997 = vmatprep.subr.mxu0 0.0
      %2998 = vmatpush1.msra.mxu0 %v2920
      %2999 = vmatprep.subr.mxu0 0.0
      %3000 = vmatpush1.msra.mxu0 %v2921
      %3001 = vmatprep.subr.mxu0 0.0
      %3002 = vmatpush1.msra.mxu0 %v2922
      %3003 = vmatprep.subr.mxu0 0.0
      %3004 = vmatpush1.msra.mxu0 %v2923
      %3005 = vmatprep.subr.mxu0 0.0
      %3006 = vmatpush1.msra.mxu0 %v2924
      %3007 = vmatprep.subr.mxu0 0.0
      %3008 = vmatpush1.msra.mxu0 %v2925
      %3009 = vmatprep.subr.mxu0 0.0
      %3010 = vmatpush1.msra.mxu0 %v2926
      %3011 = vmatprep.subr.mxu0 0.0
      %3012 = vmatpush1.msra.mxu0 %v2927
      %3013 = vmatprep.subr.mxu0 0.0
      %3014 = vmatpush1.msra.mxu0 %v2928
      %3015 = vmatprep.subr.mxu0 0.0
      %3016 = vmatpush1.msra.mxu0 %v2929
      %3017 = vmatprep.subr.mxu0 0.0
      %3018 = vmatpush1.msra.mxu0 %v2930
      %3019 = vmatprep.subr.mxu0 0.0
      %3020 = vmatpush1.msra.mxu0 %v2931
      %3021 = vmatprep.subr.mxu0 0.0
      %3022 = vmatpush1.msra.mxu0 %v2932
      %3023 = vmatprep.subr.mxu0 0.0
      %3024 = vmatpush1.msra.mxu0 %v2933
      %3025 = vmatprep.subr.mxu0 0.0
      %3026 = vmatpush1.msra.mxu0 %v2934
      %3027 = vmatprep.subr.mxu0 0.0
      %3028 = vmatpush1.msra.mxu0 %v2935
      %3029 = vmatprep.subr.mxu0 0.0
      %3030 = vmatpush1.msra.mxu0 %v2936
      %3031 = vmatprep.subr.mxu0 0.0
      %3032 = vmatpush1.msra.mxu0 %v2937
      %3033 = vmatprep.subr.mxu0 0.0
      %3034 = vmatpush1.msra.mxu0 %v2938
      %3035 = vmatprep.mubr.f32.mxu0 %v2836
      %3036 = vmatmul.mubr.f32.gmra.mrb[0].mxu0 %v2835
      %v3037 = vpop.f32.mrb[0].mxu0
      %v3038 = vadd.f32 0.0, %v3037
      %v3039 = vpop.f32.mrb[0].mxu0
      %3040 = vmatprep.mubr.f32.mxu0 %v2904
      %3041 = vmatmul.mubr.f32.gmra.mrb[0].mxu0 %v2903
      %v3042 = vpop.f32.mrb[0].mxu0
      %v3043 = vadd.f32 0.0, %v3042
      %v3044 = vpop.f32.mrb[0].mxu0
      %3045 = vdwg.mxu0
      %3046 = vmatprep.subr.mxu0 0.0
      %3047 = vmatpush1.msra.mxu0 %v2939
      %3048 = vmatprep.subr.mxu0 0.0
      %3049 = vmatpush1.msra.mxu0 %v2940
      %3050 = vmatprep.subr.mxu0 0.0
      %3051 = vmatpush1.msra.mxu0 %v2941
      %3052 = vmatprep.subr.mxu0 0.0
      %3053 = vmatpush1.msra.mxu0 %v2942
      %3054 = vmatprep.subr.mxu0 0.0
      %3055 = vmatpush1.msra.mxu0 %v2943
      %3056 = vmatprep.subr.mxu0 0.0
      %3057 = vmatpush1.msra.mxu0 %v2944
      %3058 = vmatprep.subr.mxu0 0.0
      %3059 = vmatpush1.msra.mxu0 %v2945
      %3060 = vmatprep.subr.mxu0 0.0
      %3061 = vmatpush1.msra.mxu0 %v2946
      %3062 = vmatprep.subr.mxu0 0.0
      %3063 = vmatpush1.msra.mxu0 %v2947
      %3064 = vmatprep.subr.mxu0 0.0
      %3065 = vmatpush1.msra.mxu0 %v2948
      %3066 = vmatprep.subr.mxu0 0.0
      %3067 = vmatpush1.msra.mxu0 %v2949
      %3068 = vmatprep.subr.mxu0 0.0
      %3069 = vmatpush1.msra.mxu0 %v2950
      %3070 = vmatprep.subr.mxu0 0.0
      %3071 = vmatpush1.msra.mxu0 %v2951
      %3072 = vmatprep.subr.mxu0 0.0
      %3073 = vmatpush1.msra.mxu0 %v2952
      %3074 = vmatprep.subr.mxu0 0.0
      %3075 = vmatpush1.msra.mxu0 %v2953
      %3076 = vmatprep.subr.mxu0 0.0
      %3077 = vmatpush1.msra.mxu0 %v2954
      %3078 = vmatprep.subr.mxu0 0.0
      %3079 = vmatpush1.msra.mxu0 %v2955
      %3080 = vmatprep.subr.mxu0 0.0
      %3081 = vmatpush1.msra.mxu0 %v2956
      %3082 = vmatprep.subr.mxu0 0.0
      %3083 = vmatpush1.msra.mxu0 %v2957
      %3084 = vmatprep.subr.mxu0 0.0
      %3085 = vmatpush1.msra.mxu0 %v2958
      %3086 = vmatprep.subr.mxu0 0.0
      %3087 = vmatpush1.msra.mxu0 %v2959
      %3088 = vmatprep.subr.mxu0 0.0
      %3089 = vmatpush1.msra.mxu0 %v2960
      %3090 = vmatprep.subr.mxu0 0.0
      %3091 = vmatpush1.msra.mxu0 %v2961
      %3092 = vmatprep.subr.mxu0 0.0
      %3093 = vmatpush1.msra.mxu0 %v2962
      %3094 = vmatprep.subr.mxu0 0.0
      %3095 = vmatpush1.msra.mxu0 %v2963
      %3096 = vmatprep.subr.mxu0 0.0
      %3097 = vmatpush1.msra.mxu0 %v2964
      %3098 = vmatprep.subr.mxu0 0.0
      %3099 = vmatpush1.msra.mxu0 %v2965
      %3100 = vmatprep.subr.mxu0 0.0
      %3101 = vmatpush1.msra.mxu0 %v2966
      %3102 = vmatprep.subr.mxu0 0.0
      %3103 = vmatpush1.msra.mxu0 %v2967
      %3104 = vmatprep.subr.mxu0 0.0
      %3105 = vmatpush1.msra.mxu0 %v2968
      %3106 = vmatprep.subr.mxu0 0.0
      %3107 = vmatpush1.msra.mxu0 %v2969
      %3108 = vmatprep.subr.mxu0 0.0
      %3109 = vmatpush1.msra.mxu0 %v2970
      %3110 = vmatprep.mubr.f32.mxu0 %v2838
      %3111 = vmatmul.mubr.f32.gmra.mrb[0].mxu0 %v2837
      %v3112 = vpop.f32.mrb[0].mxu0
      %v3113 = vadd.f32 %v3038, %v3112
      %v3114 = vpop.f32.mrb[0].mxu0
      %3115 = vmatprep.mubr.f32.mxu0 %v2906
      %3116 = vmatmul.mubr.f32.gmra.mrb[0].mxu0 %v2905
      %v3117 = vpop.f32.mrb[0].mxu0
      %v3118 = vadd.f32 %v3043, %v3117
      %v3119 = vpop.f32.mrb[0].mxu0
      %3120 = vdwg.mxu0
      %v3121 = vadd.f32 %v365, %v3113
      %v3122 = vadd.f32 %v366, %v3118
      %3123 = vst [vmem:[%s363] sm:$0xff] %v3121
      %3124 = vst [vmem:[%s363 + $0x8] sm:$0xff] %v3122
      %s3125 = smul.u32 2, %s24
      %p3126 = scmp.lt.s32.totalorder %s23, 1
      %s3127 = scalar_select %p3126, %s23, 1
      %p3128 = scmp.lt.s32.totalorder %s3125, 1
      %s3129 = scalar_select %p3128, %s3125, 1
      %s3130 = smul.addr %s3127, 2
      %s3131 = sadd.s32 %s3129, %s3130
      %s3132 = smul.addr %s3131, 8
      %s3133 = scalar_lea.vmem %s8, %s3132
      // Predicated region
      $region53: #{transformer_block.2} parent=51 // pred_check
        %p3134 = pneg %p231
      $region54: #{transformer_block.2} parent=51 // pred_check_branch
        %3136 = sbr.rel (%p3134) target = $region56
      $region55: #{transformer_block.2} parent=51 // pred_region
        %s3137 = smul.u32 2, %s24
      $region56: #{transformer_block.2} parent=51 // pred_fallthru
        _
    $region52: #{transformer_block.2} parent=5 // pred_fallthru
      _
    %p3138 = scmp.le.s32.totalorder 2, %s14
    // Predicated region
    $region57: #{transformer_block.2} parent=5 // pred_check
      %p3139 = pneg %p3138
    $region58: #{transformer_block.2} parent=5 // pred_check_branch
      %3141 = sbr.rel (%p3139) target = $region60
    $region59: #{transformer_block.2} parent=5 // pred_region
      %s3142 = ssub.s32 %s14, 2
      // Predicated region
      $region61: #{transformer_block.2} parent=59 // pred_check
        %p3143 = pneg %p237
      $region62: #{transformer_block.2} parent=59 // pred_check_branch
        %3145 = sbr.rel (%p3143) target = $region64
      $region63: #{transformer_block.2} parent=59 // pred_region
        %s3146 = smul.u32 2, %s26
        %p3147 = scmp.lt.s32.totalorder %s25, 1
        %s3148 = scalar_select %p3147, %s25, 1
        %p3149 = scmp.lt.s32.totalorder %s3146, 1
        %s3150 = scalar_select %p3149, %s3146, 1
        %s3151 = smul.addr %s3148, 2
        %s3152 = sadd.s32 %s3150, %s3151
        %s3153 = smul.addr %s3152, 8
        %s3154 = scalar_lea.vmem %s8, %s3153
      $region64: #{transformer_block.2} parent=59 // pred_fallthru
        _
    $region60: #{transformer_block.2} parent=5 // pred_fallthru
      _
  $region6: #{transformer_block.2} parent=0 // loop_footer
    %s18 = sadd.s32 1, %s14
  $region7: #{transformer_block.2} parent=0 // loop_footer_branch
    %13 = sbr.rel target = $region3
  $region8: #{transformer_block.2} parent=0 // loop_exit
    _

</llo_original>
